<compile_context>
chip_gen: v7x
topology: tpu7x:2x2x1
jax: 0.10.0
libtpu: 0.0.40
codegen_flags: <defaults>
</compile_context>

<pallas_src>
import functools

import numpy as np
import jax
import jax.numpy as jnp
from jax.experimental import pallas as pl
from jax.experimental.pallas import tpu as pltpu

EPS = 1e-5  # PyTorch BatchNorm1d default


# ---------------------------------------------------------------- kernel ----

def _batchnorm(x, gamma, beta):
    # BatchNorm1d (training mode): per-channel stats over the embedding axis,
    # biased variance.  x: (M, E), gamma/beta: (M, 1).
    mean = jnp.mean(x, axis=1, keepdims=True)
    var = jnp.mean(jnp.square(x - mean), axis=1, keepdims=True)
    return gamma * (x - mean) * jax.lax.rsqrt(var + EPS) + beta


def _encoder_kernel(x_ref, wqkv_ref, bqkv_ref, sp_ref, wzT_ref, bz_ref,
                    wffT_ref, bff_ref, gamma_ref, beta_ref, o_ref,
                    *, num_heads):
    M, E = x_ref.shape
    H = num_heads
    Dh = E // H                      # == M (asserted in the wrapper)

    x = x_ref[...]                                            # (M, E)

    # --- fused QKV projection: one MXU matmul against stacked weights -------
    # qkv[r, m] = sum_c Wqkv[r, c] * x[m, c] + b[r]   (rows: [Wq/Dh; Wk; Wv'])
    qkv = jax.lax.dot_general(
        wqkv_ref[...], x, (((1,), (1,)), ((), ())),
        preferred_element_type=jnp.float32) + bqkv_ref[...]    # (3E, M)

    # --- attention: all heads in one kernel body (H is small, unrolled) -----
    mha = bz_ref[...]                                         # (1, E) -> broadcasts up
    for h in range(H):
        q_h = qkv[h * M:(h + 1) * M, :]                       # (M, Dh), 1/len_head folded in
        v_h = qkv[2 * E + h * M:2 * E + (h + 1) * M, :]       # (M, Dh), rows pre-permuted

        # K'[h]^T rebuilt with constant 0/1 selection matmuls (MXU), which
        # reproduces the module's `.T.reshape(...)` on K without any narrow
        # lane slices or in-kernel reshapes.
        kk = jnp.zeros((Dh, M), jnp.float32)
        for b in range(H):
            k_blk = qkv[E + b * Dh:E + (b + 1) * Dh, :]       # (Dh, M)
            sp_hb = sp_ref[(h * H + b) * M:(h * H + b + 1) * M, :]   # (M, M)
            kk = kk + jnp.dot(k_blk, sp_hb,
                              preferred_element_type=jnp.float32)

        s = jnp.dot(q_h, kk, preferred_element_type=jnp.float32)    # (M, M)
        s = s - jnp.max(s, axis=-1, keepdims=True)
        p = jnp.exp(s)
        p = p * pl.reciprocal(jnp.sum(p, axis=-1, keepdims=True), approx=True)
        z_h = jnp.dot(p, v_h, preferred_element_type=jnp.float32)   # (M, Dh)

        # output projection (WZ), accumulated head by head into a lane-dense
        # (M, E) value — no narrow stores, no Z scratch.
        mha = mha + jnp.dot(z_h, wzT_ref[h * Dh:(h + 1) * Dh, :],
                            preferred_element_type=jnp.float32)

    gamma = gamma_ref[...]                                    # (M, 1)
    beta = beta_ref[...]

    # --- skip = MHA(inp) + BatchNorm1d(inp) ---
    skip = mha + _batchnorm(x, gamma, beta)

    # --- out = ff(BatchNorm1d(skip)) + skip ---
    o_ref[...] = (jnp.dot(_batchnorm(skip, gamma, beta), wffT_ref[...],
                          preferred_element_type=jnp.float32)
                  + bff_ref[...] + skip)


# ---------------------------------------------------------------- forward ---

@functools.partial(jax.jit, static_argnums=(2,))
def encoder_forward(inp, params, num_heads):
    """inp: (1, num_embeddings, len_embedding) float32."""
    B, M, E = inp.shape
    H = num_heads
    assert B == 1, "the module's MHA reshapes only make sense for batch == 1"
    assert E % H == 0
    Dh = E // H
    # TODO(synk): the fused kernel specializes the module's literal
    # `.reshape(num_heads, num_embeddings, len_head)` semantics to
    # num_embeddings == len_head and num_heads | num_embeddings (the tested
    # configuration); other shape combinations need the general reshape path.
    assert M == Dh and M % H == 0
    G = M // H

    x = inp[0]                                                # (M, E)

    # ---- trace-time parameter preprocessing (free: weights only) ----------
    # fold the 1/len_head softmax scaling into Wq / bq
    wq = params["wq_w"] / Dh
    bq = params["wq_b"] / Dh

    # relabel the key/value index j -> j' = (j % H) * G + (j // H) so that the
    # module's odd K layout becomes block-structured; softmax + the weighted
    # sum with V are invariant to this relabelling as long as V is relabelled
    # the same way, which is done here by permuting the rows of Wv / bv.
    jp = np.arange(M)
    sigma = (jp % G) * H + jp // G                            # new j' -> original j
    perm = (np.arange(H)[:, None] * M + sigma[None, :]).reshape(-1)
    wv = params["wv_w"][perm]
    bv = params["wv_b"][perm]

    w_qkv = jnp.concatenate([wq, params["wk_w"], wv], axis=0)         # (3E, E)
    b_qkv = jnp.concatenate([bq, params["wk_b"], bv])[:, None]        # (3E, 1)

    # constant 0/1 selection matrices that assemble K'[h]^T inside the kernel
    # via MXU matmuls: sp[h, b, h*G + a, b*G + a] = 1.
    sp = np.zeros((H, H, M, M), np.float32)
    for h in range(H):
        for b in range(H):
            for a in range(G):
                sp[h, b, h * G + a, b * G + a] = 1.0
    sp = jnp.asarray(sp.reshape(H * H * M, M))

    out = pl.pallas_call(
        functools.partial(_encoder_kernel, num_heads=H),
        out_shape=jax.ShapeDtypeStruct((M, E), jnp.float32),
        grid=(1,),
        in_specs=[
            pl.BlockSpec((M, E), lambda i: (0, 0)),            # x
            pl.BlockSpec((3 * E, E), lambda i: (0, 0)),        # stacked Wqkv
            pl.BlockSpec((3 * E, 1), lambda i: (0, 0)),        # stacked bias
            pl.BlockSpec((H * H * M, M), lambda i: (0, 0)),    # selection mats
            pl.BlockSpec((E, E), lambda i: (0, 0)),            # Wz^T
            pl.BlockSpec((1, E), lambda i: (0, 0)),            # bz
            pl.BlockSpec((E, E), lambda i: (0, 0)),            # Wff^T
            pl.BlockSpec((1, E), lambda i: (0, 0)),            # bff
            pl.BlockSpec((M, 1), lambda i: (0, 0)),            # gamma
            pl.BlockSpec((M, 1), lambda i: (0, 0)),            # beta
        ],
        out_specs=pl.BlockSpec((M, E), lambda i: (0, 0)),
        compiler_params=pltpu.CompilerParams(
            dimension_semantics=("arbitrary",)),
    )(x, w_qkv, b_qkv, sp,
      params["wz_w"].T, params["wz_b"][None, :],
      params["ff_w"].T, params["ff_b"][None, :],
      params["bn_gamma"][:, None], params["bn_beta"][:, None])

    return out[None]                                          # (1, M, E)


# ------------------------------------------------------- pure-JAX reference -

def encoder_ref(inp, params, num_heads):
    B, M, E = inp.shape
    Dh = E // num_heads
    x = inp[0]

    def bn(y):
        mean = y.mean(axis=1, keepdims=True)
        var = ((y - mean) ** 2).mean(axis=1, keepdims=True)
        return (params["bn_gamma"][:, None] * (y - mean)
                / jnp.sqrt(var + EPS) + params["bn_beta"][:, None])

    x_cl = x.T
    k_raw = params["wk_w"] @ x_cl + params["wk_b"][:, None]
    q_raw = params["wq_w"] @ x_cl + params["wq_b"][:, None]
    v_raw = params["wv_w"] @ x_cl + params["wv_b"][:, None]
    K = jnp.transpose(k_raw[None], (2, 1, 0)).reshape(num_heads, M, Dh)
    Q = q_raw[None].reshape(num_heads, M, Dh)
    V = v_raw[None].reshape(num_heads, M, Dh)
    score = jnp.einsum("hmd,hnd->hmn", Q, K) / Dh
    p = jax.nn.softmax(score, axis=2)
    Z = jnp.einsum("hmn,hnd->hmd", p, V)
    Z = jnp.moveaxis(Z, 1, 2).reshape(E, M)
    mha_out = (params["wz_w"] @ Z + params["wz_b"][:, None]).T
    skip = mha_out + bn(x)
    out = bn(skip) @ params["ff_w"].T + params["ff_b"] + skip
    return out[None]


# -------------------------------------------------------------------- main --

if __name__ == "__main__":
    # small shapes consistent with the module: batch=1 (required),
    # num_embeddings=16, len_embedding=64, num_heads=4 -> len_head=16
    M, E, H = 16, 64, 4

    key = jax.random.PRNGKey(0)
    keys = jax.random.split(key, 11)

    def rnd(k, shape, scale=0.1):
        return (scale * jax.random.normal(k, shape)).astype(jnp.float32)

    params = {
        "wk_w": rnd(keys[0], (E, E)), "wk_b": rnd(keys[1], (E,)),
        "wq_w": rnd(keys[2], (E, E)), "wq_b": rnd(keys[3], (E,)),
        "wv_w": rnd(keys[4], (E, E)), "wv_b": rnd(keys[5], (E,)),
        "wz_w": rnd(keys[6], (E, E)), "wz_b": rnd(keys[7], (E,)),
        "ff_w": rnd(keys[8], (E, E)), "ff_b": rnd(keys[9], (E,)),
        "bn_gamma": jnp.ones((M,), jnp.float32),   # PyTorch BN init
        "bn_beta": jnp.zeros((M,), jnp.float32),
    }
    inp = rnd(keys[10], (1, M, E), scale=1.0)

    out = jax.block_until_ready(encoder_forward(inp, params, H))
    ref = encoder_ref(inp, params, H)

    assert out.shape == (1, M, E)
    # tolerance accounts for the approximate EUP reciprocal used in the
    # softmax normalization (everything else is exact f32).
    assert jnp.allclose(out, ref, atol=2e-3, rtol=2e-3), "mismatch vs reference"
    print("KERNEL_OK")
</pallas_src>

<mosaic_0001>
module attributes {stable_mosaic.version = 11 : i64} {
  func.func @_encoder_kernel(%arg0: i32, %arg1: memref<16x64xf32, #tpu.memory_space<vmem>>, %arg2: memref<192x64xf32, #tpu.memory_space<vmem>>, %arg3: memref<192x1xf32, #tpu.memory_space<vmem>>, %arg4: memref<256x16xf32, #tpu.memory_space<vmem>>, %arg5: memref<64x64xf32, #tpu.memory_space<vmem>>, %arg6: memref<1x64xf32, #tpu.memory_space<vmem>>, %arg7: memref<64x64xf32, #tpu.memory_space<vmem>>, %arg8: memref<1x64xf32, #tpu.memory_space<vmem>>, %arg9: memref<16x1xf32, #tpu.memory_space<vmem>>, %arg10: memref<16x1xf32, #tpu.memory_space<vmem>>, %arg11: memref<16x64xf32, #tpu.memory_space<vmem>>) attributes {dimension_semantics = [#tpu.dimension_semantics<arbitrary>], iteration_bounds = array<i64: 1>, scalar_prefetch = 0 : i64, scratch_operands = 0 : i64, tpu.core_type = #tpu.core_type<tc>, window_params = [{pipeline_mode = #tpu.pipeline_mode<synchronous>, transform_indices = @transform_0, window_bounds = array<i64: 16, 64>}, {pipeline_mode = #tpu.pipeline_mode<synchronous>, transform_indices = @transform_1, window_bounds = array<i64: 192, 64>}, {pipeline_mode = #tpu.pipeline_mode<synchronous>, transform_indices = @transform_2, window_bounds = array<i64: 192, 1>}, {pipeline_mode = #tpu.pipeline_mode<synchronous>, transform_indices = @transform_3, window_bounds = array<i64: 256, 16>}, {pipeline_mode = #tpu.pipeline_mode<synchronous>, transform_indices = @transform_4, window_bounds = array<i64: 64, 64>}, {pipeline_mode = #tpu.pipeline_mode<synchronous>, transform_indices = @transform_5, window_bounds = array<i64: 1, 64>}, {pipeline_mode = #tpu.pipeline_mode<synchronous>, transform_indices = @transform_6, window_bounds = array<i64: 64, 64>}, {pipeline_mode = #tpu.pipeline_mode<synchronous>, transform_indices = @transform_7, window_bounds = array<i64: 1, 64>}, {pipeline_mode = #tpu.pipeline_mode<synchronous>, transform_indices = @transform_8, window_bounds = array<i64: 16, 1>}, {pipeline_mode = #tpu.pipeline_mode<synchronous>, transform_indices = @transform_9, window_bounds = array<i64: 16, 1>}, {pipeline_mode = #tpu.pipeline_mode<synchronous>, transform_indices = @transform_10, window_bounds = array<i64: 16, 64>}]} {
    %c0 = arith.constant 0 : index
    %c0_0 = arith.constant 0 : index
    %0 = vector.load %arg1[%c0, %c0_0] : memref<16x64xf32, #tpu.memory_space<vmem>>, vector<16x64xf32>
    %c0_1 = arith.constant 0 : index
    %c0_2 = arith.constant 0 : index
    %1 = vector.load %arg2[%c0_1, %c0_2] : memref<192x64xf32, #tpu.memory_space<vmem>>, vector<192x64xf32>
    %cst = arith.constant dense<0.000000e+00> : vector<192x16xf32>
    %2 = tpu.matmul %1, %0, %cst {dimension_numbers = #tpu.dot_dimension_numbers<[1], [1], [0], [0], [0, 0, 1, 0], [], []>} : vector<192x64xf32>, vector<16x64xf32>, vector<192x16xf32> -> vector<192x16xf32>
    %c0_3 = arith.constant 0 : index
    %c0_4 = arith.constant 0 : index
    %3 = vector.load %arg3[%c0_3, %c0_4] : memref<192x1xf32, #tpu.memory_space<vmem>>, vector<192x1xf32>
    %4 = vector.broadcast %3 : vector<192x1xf32> to vector<192x16xf32>
    %5 = arith.addf %2, %4 : vector<192x16xf32>
    %c0_5 = arith.constant 0 : index
    %c0_6 = arith.constant 0 : index
    %6 = vector.load %arg6[%c0_5, %c0_6] : memref<1x64xf32, #tpu.memory_space<vmem>>, vector<1x64xf32>
    %7 = vector.extract_strided_slice %5 {offsets = [0, 0], sizes = [16, 16], strides = [1, 1]} : vector<192x16xf32> to vector<16x16xf32>
    %8 = vector.extract_strided_slice %5 {offsets = [128, 0], sizes = [16, 16], strides = [1, 1]} : vector<192x16xf32> to vector<16x16xf32>
    %cst_7 = arith.constant 0.000000e+00 : f32
    %9 = vector.broadcast %cst_7 : f32 to vector<16x16xf32>
    %10 = vector.extract_strided_slice %5 {offsets = [64, 0], sizes = [16, 16], strides = [1, 1]} : vector<192x16xf32> to vector<16x16xf32>
    %c0_8 = arith.constant 0 : index
    %c0_9 = arith.constant 0 : index
    %11 = vector.load %arg4[%c0_8, %c0_9] : memref<256x16xf32, #tpu.memory_space<vmem>>, vector<16x16xf32>
    %cst_10 = arith.constant dense<0.000000e+00> : vector<16x16xf32>
    %12 = tpu.matmul %10, %11, %cst_10 {dimension_numbers = #tpu.dot_dimension_numbers<[1], [0], [0], [1], [0, 0, 1, 1], [], []>} : vector<16x16xf32>, vector<16x16xf32>, vector<16x16xf32> -> vector<16x16xf32>
    %13 = arith.addf %9, %12 : vector<16x16xf32>
    %14 = vector.extract_strided_slice %5 {offsets = [80, 0], sizes = [16, 16], strides = [1, 1]} : vector<192x16xf32> to vector<16x16xf32>
    %c16 = arith.constant 16 : index
    %c0_11 = arith.constant 0 : index
    %15 = vector.load %arg4[%c16, %c0_11] : memref<256x16xf32, #tpu.memory_space<vmem>>, vector<16x16xf32>
    %cst_12 = arith.constant dense<0.000000e+00> : vector<16x16xf32>
    %16 = tpu.matmul %14, %15, %cst_12 {dimension_numbers = #tpu.dot_dimension_numbers<[1], [0], [0], [1], [0, 0, 1, 1], [], []>} : vector<16x16xf32>, vector<16x16xf32>, vector<16x16xf32> -> vector<16x16xf32>
    %17 = arith.addf %13, %16 : vector<16x16xf32>
    %18 = vector.extract_strided_slice %5 {offsets = [96, 0], sizes = [16, 16], strides = [1, 1]} : vector<192x16xf32> to vector<16x16xf32>
    %c32 = arith.constant 32 : index
    %c0_13 = arith.constant 0 : index
    %19 = vector.load %arg4[%c32, %c0_13] : memref<256x16xf32, #tpu.memory_space<vmem>>, vector<16x16xf32>
    %cst_14 = arith.constant dense<0.000000e+00> : vector<16x16xf32>
    %20 = tpu.matmul %18, %19, %cst_14 {dimension_numbers = #tpu.dot_dimension_numbers<[1], [0], [0], [1], [0, 0, 1, 1], [], []>} : vector<16x16xf32>, vector<16x16xf32>, vector<16x16xf32> -> vector<16x16xf32>
    %21 = arith.addf %17, %20 : vector<16x16xf32>
    %22 = vector.extract_strided_slice %5 {offsets = [112, 0], sizes = [16, 16], strides = [1, 1]} : vector<192x16xf32> to vector<16x16xf32>
    %c48 = arith.constant 48 : index
    %c0_15 = arith.constant 0 : index
    %23 = vector.load %arg4[%c48, %c0_15] : memref<256x16xf32, #tpu.memory_space<vmem>>, vector<16x16xf32>
    %cst_16 = arith.constant dense<0.000000e+00> : vector<16x16xf32>
    %24 = tpu.matmul %22, %23, %cst_16 {dimension_numbers = #tpu.dot_dimension_numbers<[1], [0], [0], [1], [0, 0, 1, 1], [], []>} : vector<16x16xf32>, vector<16x16xf32>, vector<16x16xf32> -> vector<16x16xf32>
    %25 = arith.addf %21, %24 : vector<16x16xf32>
    %cst_17 = arith.constant dense<0.000000e+00> : vector<16x16xf32>
    %26 = tpu.matmul %7, %25, %cst_17 {dimension_numbers = #tpu.dot_dimension_numbers<[1], [0], [0], [1], [0, 0, 1, 1], [], []>} : vector<16x16xf32>, vector<16x16xf32>, vector<16x16xf32> -> vector<16x16xf32>
    %cst_18 = arith.constant dense<0xFF800000> : vector<16xf32>
    %27 = vector.multi_reduction <maximumf>, %26, %cst_18 [1] : vector<16x16xf32> to vector<16xf32>
    %28 = vector.shape_cast %27 : vector<16xf32> to vector<16x1xf32>
    %29 = vector.broadcast %28 : vector<16x1xf32> to vector<16x16xf32>
    %30 = arith.subf %26, %29 : vector<16x16xf32>
    %31 = math.exp %30 : vector<16x16xf32>
    %cst_19 = arith.constant dense<0.000000e+00> : vector<16xf32>
    %32 = vector.multi_reduction <add>, %31, %cst_19 [1] : vector<16x16xf32> to vector<16xf32>
    %33 = vector.shape_cast %32 : vector<16xf32> to vector<16x1xf32>
    %34 = tpu.reciprocal %33 {approx = true} : vector<16x1xf32> -> vector<16x1xf32>
    %35 = vector.broadcast %34 : vector<16x1xf32> to vector<16x16xf32>
    %36 = arith.mulf %31, %35 : vector<16x16xf32>
    %cst_20 = arith.constant dense<0.000000e+00> : vector<16x16xf32>
    %37 = tpu.matmul %36, %8, %cst_20 {dimension_numbers = #tpu.dot_dimension_numbers<[1], [0], [0], [1], [0, 0, 1, 1], [], []>} : vector<16x16xf32>, vector<16x16xf32>, vector<16x16xf32> -> vector<16x16xf32>
    %c0_21 = arith.constant 0 : index
    %c0_22 = arith.constant 0 : index
    %38 = vector.load %arg5[%c0_21, %c0_22] : memref<64x64xf32, #tpu.memory_space<vmem>>, vector<16x64xf32>
    %cst_23 = arith.constant dense<0.000000e+00> : vector<16x64xf32>
    %39 = tpu.matmul %37, %38, %cst_23 {dimension_numbers = #tpu.dot_dimension_numbers<[1], [0], [0], [1], [0, 0, 1, 1], [], []>} : vector<16x16xf32>, vector<16x64xf32>, vector<16x64xf32> -> vector<16x64xf32>
    %40 = vector.broadcast %6 : vector<1x64xf32> to vector<16x64xf32>
    %41 = arith.addf %40, %39 : vector<16x64xf32>
    %42 = vector.extract_strided_slice %5 {offsets = [16, 0], sizes = [16, 16], strides = [1, 1]} : vector<192x16xf32> to vector<16x16xf32>
    %43 = vector.extract_strided_slice %5 {offsets = [144, 0], sizes = [16, 16], strides = [1, 1]} : vector<192x16xf32> to vector<16x16xf32>
    %cst_24 = arith.constant 0.000000e+00 : f32
    %44 = vector.broadcast %cst_24 : f32 to vector<16x16xf32>
    %45 = vector.extract_strided_slice %5 {offsets = [64, 0], sizes = [16, 16], strides = [1, 1]} : vector<192x16xf32> to vector<16x16xf32>
    %c64 = arith.constant 64 : index
    %c0_25 = arith.constant 0 : index
    %46 = vector.load %arg4[%c64, %c0_25] : memref<256x16xf32, #tpu.memory_space<vmem>>, vector<16x16xf32>
    %cst_26 = arith.constant dense<0.000000e+00> : vector<16x16xf32>
    %47 = tpu.matmul %45, %46, %cst_26 {dimension_numbers = #tpu.dot_dimension_numbers<[1], [0], [0], [1], [0, 0, 1, 1], [], []>} : vector<16x16xf32>, vector<16x16xf32>, vector<16x16xf32> -> vector<16x16xf32>
    %48 = arith.addf %44, %47 : vector<16x16xf32>
    %49 = vector.extract_strided_slice %5 {offsets = [80, 0], sizes = [16, 16], strides = [1, 1]} : vector<192x16xf32> to vector<16x16xf32>
    %c80 = arith.constant 80 : index
    %c0_27 = arith.constant 0 : index
    %50 = vector.load %arg4[%c80, %c0_27] : memref<256x16xf32, #tpu.memory_space<vmem>>, vector<16x16xf32>
    %cst_28 = arith.constant dense<0.000000e+00> : vector<16x16xf32>
    %51 = tpu.matmul %49, %50, %cst_28 {dimension_numbers = #tpu.dot_dimension_numbers<[1], [0], [0], [1], [0, 0, 1, 1], [], []>} : vector<16x16xf32>, vector<16x16xf32>, vector<16x16xf32> -> vector<16x16xf32>
    %52 = arith.addf %48, %51 : vector<16x16xf32>
    %53 = vector.extract_strided_slice %5 {offsets = [96, 0], sizes = [16, 16], strides = [1, 1]} : vector<192x16xf32> to vector<16x16xf32>
    %c96 = arith.constant 96 : index
    %c0_29 = arith.constant 0 : index
    %54 = vector.load %arg4[%c96, %c0_29] : memref<256x16xf32, #tpu.memory_space<vmem>>, vector<16x16xf32>
    %cst_30 = arith.constant dense<0.000000e+00> : vector<16x16xf32>
    %55 = tpu.matmul %53, %54, %cst_30 {dimension_numbers = #tpu.dot_dimension_numbers<[1], [0], [0], [1], [0, 0, 1, 1], [], []>} : vector<16x16xf32>, vector<16x16xf32>, vector<16x16xf32> -> vector<16x16xf32>
    %56 = arith.addf %52, %55 : vector<16x16xf32>
    %57 = vector.extract_strided_slice %5 {offsets = [112, 0], sizes = [16, 16], strides = [1, 1]} : vector<192x16xf32> to vector<16x16xf32>
    %c112 = arith.constant 112 : index
    %c0_31 = arith.constant 0 : index
    %58 = vector.load %arg4[%c112, %c0_31] : memref<256x16xf32, #tpu.memory_space<vmem>>, vector<16x16xf32>
    %cst_32 = arith.constant dense<0.000000e+00> : vector<16x16xf32>
    %59 = tpu.matmul %57, %58, %cst_32 {dimension_numbers = #tpu.dot_dimension_numbers<[1], [0], [0], [1], [0, 0, 1, 1], [], []>} : vector<16x16xf32>, vector<16x16xf32>, vector<16x16xf32> -> vector<16x16xf32>
    %60 = arith.addf %56, %59 : vector<16x16xf32>
    %cst_33 = arith.constant dense<0.000000e+00> : vector<16x16xf32>
    %61 = tpu.matmul %42, %60, %cst_33 {dimension_numbers = #tpu.dot_dimension_numbers<[1], [0], [0], [1], [0, 0, 1, 1], [], []>} : vector<16x16xf32>, vector<16x16xf32>, vector<16x16xf32> -> vector<16x16xf32>
    %cst_34 = arith.constant dense<0xFF800000> : vector<16xf32>
    %62 = vector.multi_reduction <maximumf>, %61, %cst_34 [1] : vector<16x16xf32> to vector<16xf32>
    %63 = vector.shape_cast %62 : vector<16xf32> to vector<16x1xf32>
    %64 = vector.broadcast %63 : vector<16x1xf32> to vector<16x16xf32>
    %65 = arith.subf %61, %64 : vector<16x16xf32>
    %66 = math.exp %65 : vector<16x16xf32>
    %cst_35 = arith.constant dense<0.000000e+00> : vector<16xf32>
    %67 = vector.multi_reduction <add>, %66, %cst_35 [1] : vector<16x16xf32> to vector<16xf32>
    %68 = vector.shape_cast %67 : vector<16xf32> to vector<16x1xf32>
    %69 = tpu.reciprocal %68 {approx = true} : vector<16x1xf32> -> vector<16x1xf32>
    %70 = vector.broadcast %69 : vector<16x1xf32> to vector<16x16xf32>
    %71 = arith.mulf %66, %70 : vector<16x16xf32>
    %cst_36 = arith.constant dense<0.000000e+00> : vector<16x16xf32>
    %72 = tpu.matmul %71, %43, %cst_36 {dimension_numbers = #tpu.dot_dimension_numbers<[1], [0], [0], [1], [0, 0, 1, 1], [], []>} : vector<16x16xf32>, vector<16x16xf32>, vector<16x16xf32> -> vector<16x16xf32>
    %c16_37 = arith.constant 16 : index
    %c0_38 = arith.constant 0 : index
    %73 = vector.load %arg5[%c16_37, %c0_38] : memref<64x64xf32, #tpu.memory_space<vmem>>, vector<16x64xf32>
    %cst_39 = arith.constant dense<0.000000e+00> : vector<16x64xf32>
    %74 = tpu.matmul %72, %73, %cst_39 {dimension_numbers = #tpu.dot_dimension_numbers<[1], [0], [0], [1], [0, 0, 1, 1], [], []>} : vector<16x16xf32>, vector<16x64xf32>, vector<16x64xf32> -> vector<16x64xf32>
    %75 = arith.addf %41, %74 : vector<16x64xf32>
    %76 = vector.extract_strided_slice %5 {offsets = [32, 0], sizes = [16, 16], strides = [1, 1]} : vector<192x16xf32> to vector<16x16xf32>
    %77 = vector.extract_strided_slice %5 {offsets = [160, 0], sizes = [16, 16], strides = [1, 1]} : vector<192x16xf32> to vector<16x16xf32>
    %cst_40 = arith.constant 0.000000e+00 : f32
    %78 = vector.broadcast %cst_40 : f32 to vector<16x16xf32>
    %79 = vector.extract_strided_slice %5 {offsets = [64, 0], sizes = [16, 16], strides = [1, 1]} : vector<192x16xf32> to vector<16x16xf32>
    %c128 = arith.constant 128 : index
    %c0_41 = arith.constant 0 : index
    %80 = vector.load %arg4[%c128, %c0_41] : memref<256x16xf32, #tpu.memory_space<vmem>>, vector<16x16xf32>
    %cst_42 = arith.constant dense<0.000000e+00> : vector<16x16xf32>
    %81 = tpu.matmul %79, %80, %cst_42 {dimension_numbers = #tpu.dot_dimension_numbers<[1], [0], [0], [1], [0, 0, 1, 1], [], []>} : vector<16x16xf32>, vector<16x16xf32>, vector<16x16xf32> -> vector<16x16xf32>
    %82 = arith.addf %78, %81 : vector<16x16xf32>
    %83 = vector.extract_strided_slice %5 {offsets = [80, 0], sizes = [16, 16], strides = [1, 1]} : vector<192x16xf32> to vector<16x16xf32>
    %c144 = arith.constant 144 : index
    %c0_43 = arith.constant 0 : index
    %84 = vector.load %arg4[%c144, %c0_43] : memref<256x16xf32, #tpu.memory_space<vmem>>, vector<16x16xf32>
    %cst_44 = arith.constant dense<0.000000e+00> : vector<16x16xf32>
    %85 = tpu.matmul %83, %84, %cst_44 {dimension_numbers = #tpu.dot_dimension_numbers<[1], [0], [0], [1], [0, 0, 1, 1], [], []>} : vector<16x16xf32>, vector<16x16xf32>, vector<16x16xf32> -> vector<16x16xf32>
    %86 = arith.addf %82, %85 : vector<16x16xf32>
    %87 = vector.extract_strided_slice %5 {offsets = [96, 0], sizes = [16, 16], strides = [1, 1]} : vector<192x16xf32> to vector<16x16xf32>
    %c160 = arith.constant 160 : index
    %c0_45 = arith.constant 0 : index
    %88 = vector.load %arg4[%c160, %c0_45] : memref<256x16xf32, #tpu.memory_space<vmem>>, vector<16x16xf32>
    %cst_46 = arith.constant dense<0.000000e+00> : vector<16x16xf32>
    %89 = tpu.matmul %87, %88, %cst_46 {dimension_numbers = #tpu.dot_dimension_numbers<[1], [0], [0], [1], [0, 0, 1, 1], [], []>} : vector<16x16xf32>, vector<16x16xf32>, vector<16x16xf32> -> vector<16x16xf32>
    %90 = arith.addf %86, %89 : vector<16x16xf32>
    %91 = vector.extract_strided_slice %5 {offsets = [112, 0], sizes = [16, 16], strides = [1, 1]} : vector<192x16xf32> to vector<16x16xf32>
    %c176 = arith.constant 176 : index
    %c0_47 = arith.constant 0 : index
    %92 = vector.load %arg4[%c176, %c0_47] : memref<256x16xf32, #tpu.memory_space<vmem>>, vector<16x16xf32>
    %cst_48 = arith.constant dense<0.000000e+00> : vector<16x16xf32>
    %93 = tpu.matmul %91, %92, %cst_48 {dimension_numbers = #tpu.dot_dimension_numbers<[1], [0], [0], [1], [0, 0, 1, 1], [], []>} : vector<16x16xf32>, vector<16x16xf32>, vector<16x16xf32> -> vector<16x16xf32>
    %94 = arith.addf %90, %93 : vector<16x16xf32>
    %cst_49 = arith.constant dense<0.000000e+00> : vector<16x16xf32>
    %95 = tpu.matmul %76, %94, %cst_49 {dimension_numbers = #tpu.dot_dimension_numbers<[1], [0], [0], [1], [0, 0, 1, 1], [], []>} : vector<16x16xf32>, vector<16x16xf32>, vector<16x16xf32> -> vector<16x16xf32>
    %cst_50 = arith.constant dense<0xFF800000> : vector<16xf32>
    %96 = vector.multi_reduction <maximumf>, %95, %cst_50 [1] : vector<16x16xf32> to vector<16xf32>
    %97 = vector.shape_cast %96 : vector<16xf32> to vector<16x1xf32>
    %98 = vector.broadcast %97 : vector<16x1xf32> to vector<16x16xf32>
    %99 = arith.subf %95, %98 : vector<16x16xf32>
    %100 = math.exp %99 : vector<16x16xf32>
    %cst_51 = arith.constant dense<0.000000e+00> : vector<16xf32>
    %101 = vector.multi_reduction <add>, %100, %cst_51 [1] : vector<16x16xf32> to vector<16xf32>
    %102 = vector.shape_cast %101 : vector<16xf32> to vector<16x1xf32>
    %103 = tpu.reciprocal %102 {approx = true} : vector<16x1xf32> -> vector<16x1xf32>
    %104 = vector.broadcast %103 : vector<16x1xf32> to vector<16x16xf32>
    %105 = arith.mulf %100, %104 : vector<16x16xf32>
    %cst_52 = arith.constant dense<0.000000e+00> : vector<16x16xf32>
    %106 = tpu.matmul %105, %77, %cst_52 {dimension_numbers = #tpu.dot_dimension_numbers<[1], [0], [0], [1], [0, 0, 1, 1], [], []>} : vector<16x16xf32>, vector<16x16xf32>, vector<16x16xf32> -> vector<16x16xf32>
    %c32_53 = arith.constant 32 : index
    %c0_54 = arith.constant 0 : index
    %107 = vector.load %arg5[%c32_53, %c0_54] : memref<64x64xf32, #tpu.memory_space<vmem>>, vector<16x64xf32>
    %cst_55 = arith.constant dense<0.000000e+00> : vector<16x64xf32>
    %108 = tpu.matmul %106, %107, %cst_55 {dimension_numbers = #tpu.dot_dimension_numbers<[1], [0], [0], [1], [0, 0, 1, 1], [], []>} : vector<16x16xf32>, vector<16x64xf32>, vector<16x64xf32> -> vector<16x64xf32>
    %109 = arith.addf %75, %108 : vector<16x64xf32>
    %110 = vector.extract_strided_slice %5 {offsets = [48, 0], sizes = [16, 16], strides = [1, 1]} : vector<192x16xf32> to vector<16x16xf32>
    %111 = vector.extract_strided_slice %5 {offsets = [176, 0], sizes = [16, 16], strides = [1, 1]} : vector<192x16xf32> to vector<16x16xf32>
    %cst_56 = arith.constant 0.000000e+00 : f32
    %112 = vector.broadcast %cst_56 : f32 to vector<16x16xf32>
    %113 = vector.extract_strided_slice %5 {offsets = [64, 0], sizes = [16, 16], strides = [1, 1]} : vector<192x16xf32> to vector<16x16xf32>
    %c192 = arith.constant 192 : index
    %c0_57 = arith.constant 0 : index
    %114 = vector.load %arg4[%c192, %c0_57] : memref<256x16xf32, #tpu.memory_space<vmem>>, vector<16x16xf32>
    %cst_58 = arith.constant dense<0.000000e+00> : vector<16x16xf32>
    %115 = tpu.matmul %113, %114, %cst_58 {dimension_numbers = #tpu.dot_dimension_numbers<[1], [0], [0], [1], [0, 0, 1, 1], [], []>} : vector<16x16xf32>, vector<16x16xf32>, vector<16x16xf32> -> vector<16x16xf32>
    %116 = arith.addf %112, %115 : vector<16x16xf32>
    %117 = vector.extract_strided_slice %5 {offsets = [80, 0], sizes = [16, 16], strides = [1, 1]} : vector<192x16xf32> to vector<16x16xf32>
    %c208 = arith.constant 208 : index
    %c0_59 = arith.constant 0 : index
    %118 = vector.load %arg4[%c208, %c0_59] : memref<256x16xf32, #tpu.memory_space<vmem>>, vector<16x16xf32>
    %cst_60 = arith.constant dense<0.000000e+00> : vector<16x16xf32>
    %119 = tpu.matmul %117, %118, %cst_60 {dimension_numbers = #tpu.dot_dimension_numbers<[1], [0], [0], [1], [0, 0, 1, 1], [], []>} : vector<16x16xf32>, vector<16x16xf32>, vector<16x16xf32> -> vector<16x16xf32>
    %120 = arith.addf %116, %119 : vector<16x16xf32>
    %121 = vector.extract_strided_slice %5 {offsets = [96, 0], sizes = [16, 16], strides = [1, 1]} : vector<192x16xf32> to vector<16x16xf32>
    %c224 = arith.constant 224 : index
    %c0_61 = arith.constant 0 : index
    %122 = vector.load %arg4[%c224, %c0_61] : memref<256x16xf32, #tpu.memory_space<vmem>>, vector<16x16xf32>
    %cst_62 = arith.constant dense<0.000000e+00> : vector<16x16xf32>
    %123 = tpu.matmul %121, %122, %cst_62 {dimension_numbers = #tpu.dot_dimension_numbers<[1], [0], [0], [1], [0, 0, 1, 1], [], []>} : vector<16x16xf32>, vector<16x16xf32>, vector<16x16xf32> -> vector<16x16xf32>
    %124 = arith.addf %120, %123 : vector<16x16xf32>
    %125 = vector.extract_strided_slice %5 {offsets = [112, 0], sizes = [16, 16], strides = [1, 1]} : vector<192x16xf32> to vector<16x16xf32>
    %c240 = arith.constant 240 : index
    %c0_63 = arith.constant 0 : index
    %126 = vector.load %arg4[%c240, %c0_63] : memref<256x16xf32, #tpu.memory_space<vmem>>, vector<16x16xf32>
    %cst_64 = arith.constant dense<0.000000e+00> : vector<16x16xf32>
    %127 = tpu.matmul %125, %126, %cst_64 {dimension_numbers = #tpu.dot_dimension_numbers<[1], [0], [0], [1], [0, 0, 1, 1], [], []>} : vector<16x16xf32>, vector<16x16xf32>, vector<16x16xf32> -> vector<16x16xf32>
    %128 = arith.addf %124, %127 : vector<16x16xf32>
    %cst_65 = arith.constant dense<0.000000e+00> : vector<16x16xf32>
    %129 = tpu.matmul %110, %128, %cst_65 {dimension_numbers = #tpu.dot_dimension_numbers<[1], [0], [0], [1], [0, 0, 1, 1], [], []>} : vector<16x16xf32>, vector<16x16xf32>, vector<16x16xf32> -> vector<16x16xf32>
    %cst_66 = arith.constant dense<0xFF800000> : vector<16xf32>
    %130 = vector.multi_reduction <maximumf>, %129, %cst_66 [1] : vector<16x16xf32> to vector<16xf32>
    %131 = vector.shape_cast %130 : vector<16xf32> to vector<16x1xf32>
    %132 = vector.broadcast %131 : vector<16x1xf32> to vector<16x16xf32>
    %133 = arith.subf %129, %132 : vector<16x16xf32>
    %134 = math.exp %133 : vector<16x16xf32>
    %cst_67 = arith.constant dense<0.000000e+00> : vector<16xf32>
    %135 = vector.multi_reduction <add>, %134, %cst_67 [1] : vector<16x16xf32> to vector<16xf32>
    %136 = vector.shape_cast %135 : vector<16xf32> to vector<16x1xf32>
    %137 = tpu.reciprocal %136 {approx = true} : vector<16x1xf32> -> vector<16x1xf32>
    %138 = vector.broadcast %137 : vector<16x1xf32> to vector<16x16xf32>
    %139 = arith.mulf %134, %138 : vector<16x16xf32>
    %cst_68 = arith.constant dense<0.000000e+00> : vector<16x16xf32>
    %140 = tpu.matmul %139, %111, %cst_68 {dimension_numbers = #tpu.dot_dimension_numbers<[1], [0], [0], [1], [0, 0, 1, 1], [], []>} : vector<16x16xf32>, vector<16x16xf32>, vector<16x16xf32> -> vector<16x16xf32>
    %c48_69 = arith.constant 48 : index
    %c0_70 = arith.constant 0 : index
    %141 = vector.load %arg5[%c48_69, %c0_70] : memref<64x64xf32, #tpu.memory_space<vmem>>, vector<16x64xf32>
    %cst_71 = arith.constant dense<0.000000e+00> : vector<16x64xf32>
    %142 = tpu.matmul %140, %141, %cst_71 {dimension_numbers = #tpu.dot_dimension_numbers<[1], [0], [0], [1], [0, 0, 1, 1], [], []>} : vector<16x16xf32>, vector<16x64xf32>, vector<16x64xf32> -> vector<16x64xf32>
    %143 = arith.addf %109, %142 : vector<16x64xf32>
    %c0_72 = arith.constant 0 : index
    %c0_73 = arith.constant 0 : index
    %144 = vector.load %arg9[%c0_72, %c0_73] : memref<16x1xf32, #tpu.memory_space<vmem>>, vector<16x1xf32>
    %c0_74 = arith.constant 0 : index
    %c0_75 = arith.constant 0 : index
    %145 = vector.load %arg10[%c0_74, %c0_75] : memref<16x1xf32, #tpu.memory_space<vmem>>, vector<16x1xf32>
    %cst_76 = arith.constant dense<0.000000e+00> : vector<16xf32>
    %146 = vector.multi_reduction <add>, %0, %cst_76 [1] : vector<16x64xf32> to vector<16xf32>
    %147 = vector.shape_cast %146 : vector<16xf32> to vector<16x1xf32>
    %cst_77 = arith.constant 6.400000e+01 : f32
    %148 = vector.broadcast %cst_77 : f32 to vector<16x1xf32>
    %149 = arith.divf %147, %148 : vector<16x1xf32>
    %150 = vector.broadcast %149 : vector<16x1xf32> to vector<16x64xf32>
    %151 = arith.subf %0, %150 : vector<16x64xf32>
    %152 = arith.mulf %151, %151 : vector<16x64xf32>
    %cst_78 = arith.constant dense<0.000000e+00> : vector<16xf32>
    %153 = vector.multi_reduction <add>, %152, %cst_78 [1] : vector<16x64xf32> to vector<16xf32>
    %154 = vector.shape_cast %153 : vector<16xf32> to vector<16x1xf32>
    %cst_79 = arith.constant 6.400000e+01 : f32
    %155 = vector.broadcast %cst_79 : f32 to vector<16x1xf32>
    %156 = arith.divf %154, %155 : vector<16x1xf32>
    %157 = vector.broadcast %149 : vector<16x1xf32> to vector<16x64xf32>
    %158 = arith.subf %0, %157 : vector<16x64xf32>
    %159 = vector.broadcast %144 : vector<16x1xf32> to vector<16x64xf32>
    %160 = arith.mulf %159, %158 : vector<16x64xf32>
    %cst_80 = arith.constant 9.99999974E-6 : f32
    %161 = vector.broadcast %cst_80 : f32 to vector<16x1xf32>
    %162 = arith.addf %156, %161 : vector<16x1xf32>
    %163 = math.rsqrt %162 : vector<16x1xf32>
    %164 = vector.broadcast %163 : vector<16x1xf32> to vector<16x64xf32>
    %165 = arith.mulf %160, %164 : vector<16x64xf32>
    %166 = vector.broadcast %145 : vector<16x1xf32> to vector<16x64xf32>
    %167 = arith.addf %165, %166 : vector<16x64xf32>
    %168 = arith.addf %143, %167 : vector<16x64xf32>
    %cst_81 = arith.constant dense<0.000000e+00> : vector<16xf32>
    %169 = vector.multi_reduction <add>, %168, %cst_81 [1] : vector<16x64xf32> to vector<16xf32>
    %170 = vector.shape_cast %169 : vector<16xf32> to vector<16x1xf32>
    %cst_82 = arith.constant 6.400000e+01 : f32
    %171 = vector.broadcast %cst_82 : f32 to vector<16x1xf32>
    %172 = arith.divf %170, %171 : vector<16x1xf32>
    %173 = vector.broadcast %172 : vector<16x1xf32> to vector<16x64xf32>
    %174 = arith.subf %168, %173 : vector<16x64xf32>
    %175 = arith.mulf %174, %174 : vector<16x64xf32>
    %cst_83 = arith.constant dense<0.000000e+00> : vector<16xf32>
    %176 = vector.multi_reduction <add>, %175, %cst_83 [1] : vector<16x64xf32> to vector<16xf32>
    %177 = vector.shape_cast %176 : vector<16xf32> to vector<16x1xf32>
    %cst_84 = arith.constant 6.400000e+01 : f32
    %178 = vector.broadcast %cst_84 : f32 to vector<16x1xf32>
    %179 = arith.divf %177, %178 : vector<16x1xf32>
    %180 = vector.broadcast %172 : vector<16x1xf32> to vector<16x64xf32>
    %181 = arith.subf %168, %180 : vector<16x64xf32>
    %182 = vector.broadcast %144 : vector<16x1xf32> to vector<16x64xf32>
    %183 = arith.mulf %182, %181 : vector<16x64xf32>
    %cst_85 = arith.constant 9.99999974E-6 : f32
    %184 = vector.broadcast %cst_85 : f32 to vector<16x1xf32>
    %185 = arith.addf %179, %184 : vector<16x1xf32>
    %186 = math.rsqrt %185 : vector<16x1xf32>
    %187 = vector.broadcast %186 : vector<16x1xf32> to vector<16x64xf32>
    %188 = arith.mulf %183, %187 : vector<16x64xf32>
    %189 = vector.broadcast %145 : vector<16x1xf32> to vector<16x64xf32>
    %190 = arith.addf %188, %189 : vector<16x64xf32>
    %c0_86 = arith.constant 0 : index
    %c0_87 = arith.constant 0 : index
    %191 = vector.load %arg7[%c0_86, %c0_87] : memref<64x64xf32, #tpu.memory_space<vmem>>, vector<64x64xf32>
    %cst_88 = arith.constant dense<0.000000e+00> : vector<16x64xf32>
    %192 = tpu.matmul %190, %191, %cst_88 {dimension_numbers = #tpu.dot_dimension_numbers<[1], [0], [0], [1], [0, 0, 1, 1], [], []>} : vector<16x64xf32>, vector<64x64xf32>, vector<16x64xf32> -> vector<16x64xf32>
    %c0_89 = arith.constant 0 : index
    %c0_90 = arith.constant 0 : index
    %193 = vector.load %arg8[%c0_89, %c0_90] : memref<1x64xf32, #tpu.memory_space<vmem>>, vector<1x64xf32>
    %194 = vector.broadcast %193 : vector<1x64xf32> to vector<16x64xf32>
    %195 = arith.addf %192, %194 : vector<16x64xf32>
    %196 = arith.addf %195, %168 : vector<16x64xf32>
    %c0_91 = arith.constant 0 : index
    %c0_92 = arith.constant 0 : index
    %197 = vector.load %arg11[%c0_91, %c0_92] : memref<16x64xf32, #tpu.memory_space<vmem>>, vector<16x64xf32>
    tpu.vector_store %arg11[%c0_91, %c0_92], %196 {strides = array<i32>} : memref<16x64xf32, #tpu.memory_space<vmem>>, vector<16x64xf32>,
    return
  }
  func.func @transform_0(%arg0: i32) -> (i32, i32) {
    %c0_i32 = arith.constant 0 : i32
    %c0_i32_0 = arith.constant 0 : i32
    %c0_i32_1 = arith.constant 0 : i32
    return %c0_i32, %c0_i32_0 : i32, i32
  }
  func.func @transform_1(%arg0: i32) -> (i32, i32) {
    %c0_i32 = arith.constant 0 : i32
    %c0_i32_0 = arith.constant 0 : i32
    %c0_i32_1 = arith.constant 0 : i32
    return %c0_i32, %c0_i32_0 : i32, i32
  }
  func.func @transform_2(%arg0: i32) -> (i32, i32) {
    %c0_i32 = arith.constant 0 : i32
    %c0_i32_0 = arith.constant 0 : i32
    %c0_i32_1 = arith.constant 0 : i32
    return %c0_i32, %c0_i32_0 : i32, i32
  }
  func.func @transform_3(%arg0: i32) -> (i32, i32) {
    %c0_i32 = arith.constant 0 : i32
    %c0_i32_0 = arith.constant 0 : i32
    %c0_i32_1 = arith.constant 0 : i32
    return %c0_i32, %c0_i32_0 : i32, i32
  }
  func.func @transform_4(%arg0: i32) -> (i32, i32) {
    %c0_i32 = arith.constant 0 : i32
    %c0_i32_0 = arith.constant 0 : i32
    %c0_i32_1 = arith.constant 0 : i32
    return %c0_i32, %c0_i32_0 : i32, i32
  }
  func.func @transform_5(%arg0: i32) -> (i32, i32) {
    %c0_i32 = arith.constant 0 : i32
    %c0_i32_0 = arith.constant 0 : i32
    %c0_i32_1 = arith.constant 0 : i32
    return %c0_i32, %c0_i32_0 : i32, i32
  }
  func.func @transform_6(%arg0: i32) -> (i32, i32) {
    %c0_i32 = arith.constant 0 : i32
    %c0_i32_0 = arith.constant 0 : i32
    %c0_i32_1 = arith.constant 0 : i32
    return %c0_i32, %c0_i32_0 : i32, i32
  }
  func.func @transform_7(%arg0: i32) -> (i32, i32) {
    %c0_i32 = arith.constant 0 : i32
    %c0_i32_0 = arith.constant 0 : i32
    %c0_i32_1 = arith.constant 0 : i32
    return %c0_i32, %c0_i32_0 : i32, i32
  }
  func.func @transform_8(%arg0: i32) -> (i32, i32) {
    %c0_i32 = arith.constant 0 : i32
    %c0_i32_0 = arith.constant 0 : i32
    %c0_i32_1 = arith.constant 0 : i32
    return %c0_i32, %c0_i32_0 : i32, i32
  }
  func.func @transform_9(%arg0: i32) -> (i32, i32) {
    %c0_i32 = arith.constant 0 : i32
    %c0_i32_0 = arith.constant 0 : i32
    %c0_i32_1 = arith.constant 0 : i32
    return %c0_i32, %c0_i32_0 : i32, i32
  }
  func.func @transform_10(%arg0: i32) -> (i32, i32) {
    %c0_i32 = arith.constant 0 : i32
    %c0_i32_0 = arith.constant 0 : i32
    %c0_i32_1 = arith.constant 0 : i32
    return %c0_i32, %c0_i32_0 : i32, i32
  }
}

</mosaic_0001>

<llo_original>
// kernel: encoder_forward.1
$region0: #{encoder_forward.1}
  #allocation0 [shape = 'u32[]', space=smem, size = 0x4, offset = 0x4, fixed_abs, tag = 'smem constant byte address 0x4 - core index']
  #allocation1 [shape = 'u32[144,128]{1,0:T(1,128)}', space=vmem, size = 0x12000, scoped, tag = 'internal scratch']
  %s0 = inlined_call_operand.vmem [shape: f32[16,64], index: 0, kind: input, shape index: {}]
  %s1 = inlined_call_operand.vmem [shape: f32[192,64], index: 1, kind: input, shape index: {}]
  %s2 = inlined_call_operand.vmem [shape: f32[192,1], index: 2, kind: input, shape index: {}]
  %s3 = inlined_call_operand.vmem [shape: f32[256,16], index: 3, kind: input, shape index: {}]
  %s4 = inlined_call_operand.vmem [shape: f32[64,64], index: 4, kind: input, shape index: {}]
  %s5 = inlined_call_operand.vmem [shape: f32[1,64], index: 5, kind: input, shape index: {}]
  %s6 = inlined_call_operand.vmem [shape: f32[64,64], index: 6, kind: input, shape index: {}]
  %s7 = inlined_call_operand.vmem [shape: f32[1,64], index: 7, kind: input, shape index: {}]
  %s8 = inlined_call_operand.vmem [shape: f32[16,1], index: 8, kind: input, shape index: {}]
  %s9 = inlined_call_operand.vmem [shape: f32[16,1], index: 9, kind: input, shape index: {}]
  %s10 = inlined_call_operand.hbm [shape: f32[16,64], index: 10, kind: output, shape index: {}]
  %s11 = sld [smem:[#allocation0]]
  $region50: #{encoder_forward.1} parent=0
    _
  %s13 = ssub.s32 1, %s11
  %s14 = scalar_select 0, %s13, %s11
  $region1: #{encoder_forward.1} parent=0
    #allocation2 [shape = 'u8[8192]{0}', space=vmem, size = 0x2000, scoped, tag = 'output window, operand 0, single buffered']
    #allocation3 [shape = 's32[1]{0}', space=sflag, size = 0x4, scoped, tag = 'scoped memory for encoder_forward.1']
    %15 = vsyncpa [#allocation3], 0
    // Predicated region
    $region2: #{encoder_forward.1} parent=1 // pred_check
      _
    $region3: #{encoder_forward.1} parent=1 // pred_check_branch
      %17 = sbr.rel (0) target = $region5
    $region4: #{encoder_forward.1} parent=1 // pred_region
      _
    $region5: #{encoder_forward.1} parent=1 // pred_fallthru
      _
    // Predicated region
    $region6: #{encoder_forward.1} parent=1 // pred_check
      _
    $region7: #{encoder_forward.1} parent=1 // pred_check_branch
      %19 = sbr.rel (0) target = $region9
    $region8: #{encoder_forward.1} parent=1 // pred_region
      _
    $region9: #{encoder_forward.1} parent=1 // pred_fallthru
      _
    // Predicated region
    $region10: #{encoder_forward.1} parent=1 // pred_check
      _
    $region11: #{encoder_forward.1} parent=1 // pred_check_branch
      %21 = sbr.rel (0) target = $region13
    $region12: #{encoder_forward.1} parent=1 // pred_region
      _
    $region13: #{encoder_forward.1} parent=1 // pred_fallthru
      _
    // Predicated region
    $region14: #{encoder_forward.1} parent=1 // pred_check
      _
    $region15: #{encoder_forward.1} parent=1 // pred_check_branch
      %23 = sbr.rel (0) target = $region17
    $region16: #{encoder_forward.1} parent=1 // pred_region
      _
    $region17: #{encoder_forward.1} parent=1 // pred_fallthru
      _
    // Predicated region
    $region18: #{encoder_forward.1} parent=1 // pred_check
      _
    $region19: #{encoder_forward.1} parent=1 // pred_check_branch
      %25 = sbr.rel (0) target = $region21
    $region20: #{encoder_forward.1} parent=1 // pred_region
      _
    $region21: #{encoder_forward.1} parent=1 // pred_fallthru
      _
    // Predicated region
    $region22: #{encoder_forward.1} parent=1 // pred_check
      _
    $region23: #{encoder_forward.1} parent=1 // pred_check_branch
      %27 = sbr.rel (0) target = $region25
    $region24: #{encoder_forward.1} parent=1 // pred_region
      _
    $region25: #{encoder_forward.1} parent=1 // pred_fallthru
      _
    // Predicated region
    $region26: #{encoder_forward.1} parent=1 // pred_check
      _
    $region27: #{encoder_forward.1} parent=1 // pred_check_branch
      %29 = sbr.rel (0) target = $region29
    $region28: #{encoder_forward.1} parent=1 // pred_region
      _
    $region29: #{encoder_forward.1} parent=1 // pred_fallthru
      _
    // Predicated region
    $region30: #{encoder_forward.1} parent=1 // pred_check
      _
    $region31: #{encoder_forward.1} parent=1 // pred_check_branch
      %31 = sbr.rel (0) target = $region33
    $region32: #{encoder_forward.1} parent=1 // pred_region
      _
    $region33: #{encoder_forward.1} parent=1 // pred_fallthru
      _
    // Predicated region
    $region34: #{encoder_forward.1} parent=1 // pred_check
      _
    $region35: #{encoder_forward.1} parent=1 // pred_check_branch
      %33 = sbr.rel (0) target = $region37
    $region36: #{encoder_forward.1} parent=1 // pred_region
      _
    $region37: #{encoder_forward.1} parent=1 // pred_fallthru
      _
    // Predicated region
    $region38: #{encoder_forward.1} parent=1 // pred_check
      _
    $region39: #{encoder_forward.1} parent=1 // pred_check_branch
      %35 = sbr.rel (0) target = $region41
    $region40: #{encoder_forward.1} parent=1 // pred_region
      _
    $region41: #{encoder_forward.1} parent=1 // pred_fallthru
      _
    %v36 = vld [vmem:[%s0] sm:$0xff]
    %v37 = vld [vmem:[%s0 + $0x8] sm:$0xff]
    %v38 = vld [vmem:[%s1] sm:$0xff]
    %v39 = vld [vmem:[%s1 + $0x8] sm:$0xff]
    %v40 = vld [vmem:[%s1 + $0x10] sm:$0xff]
    %v41 = vld [vmem:[%s1 + $0x18] sm:$0xff]
    %v42 = vld [vmem:[%s1 + $0x20] sm:$0xff]
    %v43 = vld [vmem:[%s1 + $0x28] sm:$0xff]
    %v44 = vld [vmem:[%s1 + $0x30] sm:$0xff]
    %v45 = vld [vmem:[%s1 + $0x38] sm:$0xff]
    %v46 = vld [vmem:[%s1 + $0x40] sm:$0xff]
    %v47 = vld [vmem:[%s1 + $0x48] sm:$0xff]
    %v48 = vld [vmem:[%s1 + $0x50] sm:$0xff]
    %v49 = vld [vmem:[%s1 + $0x58] sm:$0xff]
    %v50 = vld [vmem:[%s1 + $0x60] sm:$0xff]
    %v51 = vld [vmem:[%s1 + $0x68] sm:$0xff]
    %v52 = vld [vmem:[%s1 + $0x70] sm:$0xff]
    %v53 = vld [vmem:[%s1 + $0x78] sm:$0xff]
    %v54 = vld [vmem:[%s1 + $0x80] sm:$0xff]
    %v55 = vld [vmem:[%s1 + $0x88] sm:$0xff]
    %v56 = vld [vmem:[%s1 + $0x90] sm:$0xff]
    %v57 = vld [vmem:[%s1 + $0x98] sm:$0xff]
    %v58 = vld [vmem:[%s1 + $0xa0] sm:$0xff]
    %v59 = vld [vmem:[%s1 + $0xa8] sm:$0xff]
    %v60 = vld [vmem:[%s1 + $0xb0] sm:$0xff]
    %v61 = vld [vmem:[%s1 + $0xb8] sm:$0xff]
    %v62 = vld [vmem:[%s2] sm:$0xff]
    %v63 = vld [vmem:[%s2 + $0x8] sm:$0xff]
    %v64 = vld [vmem:[%s2 + $0x10] sm:$0xff]
    %v65 = vld [vmem:[%s2 + $0x18] sm:$0xff]
    %v66 = vld [vmem:[%s2 + $0x20] sm:$0xff]
    %v67 = vld [vmem:[%s2 + $0x28] sm:$0xff]
    %v68 = vld [vmem:[%s2 + $0x30] sm:$0xff]
    %v69 = vld [vmem:[%s2 + $0x38] sm:$0xff]
    %v70 = vld [vmem:[%s2 + $0x40] sm:$0xff]
    %v71 = vld [vmem:[%s2 + $0x48] sm:$0xff]
    %v72 = vld [vmem:[%s2 + $0x50] sm:$0xff]
    %v73 = vld [vmem:[%s2 + $0x58] sm:$0xff]
    %v74 = vld [vmem:[%s2 + $0x60] sm:$0xff]
    %v75 = vld [vmem:[%s2 + $0x68] sm:$0xff]
    %v76 = vld [vmem:[%s2 + $0x70] sm:$0xff]
    %v77 = vld [vmem:[%s2 + $0x78] sm:$0xff]
    %v78 = vld [vmem:[%s2 + $0x80] sm:$0xff]
    %v79 = vld [vmem:[%s2 + $0x88] sm:$0xff]
    %v80 = vld [vmem:[%s2 + $0x90] sm:$0xff]
    %v81 = vld [vmem:[%s2 + $0x98] sm:$0xff]
    %v82 = vld [vmem:[%s2 + $0xa0] sm:$0xff]
    %v83 = vld [vmem:[%s2 + $0xa8] sm:$0xff]
    %v84 = vld [vmem:[%s2 + $0xb0] sm:$0xff]
    %v85 = vld [vmem:[%s2 + $0xb8] sm:$0xff]
    %87 = vset.pattern.permute.xlu0 0
    %88 = vperm.xlu0 %87, %v62
    %v89 = vpop.permute.xlu0 %88
    %92 = vset.pattern.permute.xlu0 0
    %93 = vperm.xlu0 %92, %v63
    %v94 = vpop.permute.xlu0 %93
    %97 = vset.pattern.permute.xlu0 0
    %98 = vperm.xlu0 %97, %v64
    %v99 = vpop.permute.xlu0 %98
    %102 = vset.pattern.permute.xlu0 0
    %103 = vperm.xlu0 %102, %v65
    %v104 = vpop.permute.xlu0 %103
    %107 = vset.pattern.permute.xlu0 0
    %108 = vperm.xlu0 %107, %v66
    %v109 = vpop.permute.xlu0 %108
    %112 = vset.pattern.permute.xlu0 0
    %113 = vperm.xlu0 %112, %v67
    %v114 = vpop.permute.xlu0 %113
    %117 = vset.pattern.permute.xlu0 0
    %118 = vperm.xlu0 %117, %v68
    %v119 = vpop.permute.xlu0 %118
    %122 = vset.pattern.permute.xlu0 0
    %123 = vperm.xlu0 %122, %v69
    %v124 = vpop.permute.xlu0 %123
    %127 = vset.pattern.permute.xlu0 0
    %128 = vperm.xlu0 %127, %v70
    %v129 = vpop.permute.xlu0 %128
    %132 = vset.pattern.permute.xlu0 0
    %133 = vperm.xlu0 %132, %v71
    %v134 = vpop.permute.xlu0 %133
    %137 = vset.pattern.permute.xlu0 0
    %138 = vperm.xlu0 %137, %v72
    %v139 = vpop.permute.xlu0 %138
    %142 = vset.pattern.permute.xlu0 0
    %143 = vperm.xlu0 %142, %v73
    %v144 = vpop.permute.xlu0 %143
    %147 = vset.pattern.permute.xlu0 0
    %148 = vperm.xlu0 %147, %v74
    %v149 = vpop.permute.xlu0 %148
    %152 = vset.pattern.permute.xlu0 0
    %153 = vperm.xlu0 %152, %v75
    %v154 = vpop.permute.xlu0 %153
    %157 = vset.pattern.permute.xlu0 0
    %158 = vperm.xlu0 %157, %v76
    %v159 = vpop.permute.xlu0 %158
    %162 = vset.pattern.permute.xlu0 0
    %163 = vperm.xlu0 %162, %v77
    %v164 = vpop.permute.xlu0 %163
    %167 = vset.pattern.permute.xlu0 0
    %168 = vperm.xlu0 %167, %v78
    %v169 = vpop.permute.xlu0 %168
    %172 = vset.pattern.permute.xlu0 0
    %173 = vperm.xlu0 %172, %v79
    %v174 = vpop.permute.xlu0 %173
    %177 = vset.pattern.permute.xlu0 0
    %178 = vperm.xlu0 %177, %v80
    %v179 = vpop.permute.xlu0 %178
    %182 = vset.pattern.permute.xlu0 0
    %183 = vperm.xlu0 %182, %v81
    %v184 = vpop.permute.xlu0 %183
    %187 = vset.pattern.permute.xlu0 0
    %188 = vperm.xlu0 %187, %v82
    %v189 = vpop.permute.xlu0 %188
    %192 = vset.pattern.permute.xlu0 0
    %193 = vperm.xlu0 %192, %v83
    %v194 = vpop.permute.xlu0 %193
    %197 = vset.pattern.permute.xlu0 0
    %198 = vperm.xlu0 %197, %v84
    %v199 = vpop.permute.xlu0 %198
    %202 = vset.pattern.permute.xlu0 0
    %203 = vperm.xlu0 %202, %v85
    %v204 = vpop.permute.xlu0 %203
    %vm206 = vcmask 523264
    %v208 = vsel %vm206, %v38, 0
    %v211 = vsel %vm206, %v39, 0
    %v214 = vsel %vm206, %v40, 0
    %v217 = vsel %vm206, %v41, 0
    %v220 = vsel %vm206, %v42, 0
    %v223 = vsel %vm206, %v43, 0
    %v226 = vsel %vm206, %v44, 0
    %v229 = vsel %vm206, %v45, 0
    %v232 = vsel %vm206, %v46, 0
    %v235 = vsel %vm206, %v47, 0
    %v238 = vsel %vm206, %v48, 0
    %v241 = vsel %vm206, %v49, 0
    %v244 = vsel %vm206, %v50, 0
    %v247 = vsel %vm206, %v51, 0
    %v250 = vsel %vm206, %v52, 0
    %v253 = vsel %vm206, %v53, 0
    %v256 = vsel %vm206, %v54, 0
    %v259 = vsel %vm206, %v55, 0
    %v262 = vsel %vm206, %v56, 0
    %v265 = vsel %vm206, %v57, 0
    %v268 = vsel %vm206, %v58, 0
    %v271 = vsel %vm206, %v59, 0
    %v274 = vsel %vm206, %v60, 0
    %v277 = vsel %vm206, %v61, 0
    %v280 = vsel %vm206, %v36, 0
    %v283 = vsel %vm206, %v37, 0
    %285 = vmatprep.subr.mxu0 0.0
    %286 = vmatpush1.xpose.msra.mxu0 %v280
    %287 = vmatprep.subr.mxu0 0.0
    %288 = vmatpush1.xpose.msra.mxu0 %v283
    %289 = vmatprep.subr.mxu0 0.0
    %290 = vmatpush1.xpose.msra.mxu0 0.0
    %291 = vmatprep.subr.mxu0 0.0
    %292 = vmatpush1.xpose.msra.mxu0 0.0
    %293 = vmatprep.subr.mxu0 0.0
    %294 = vmatpush1.xpose.msra.mxu0 0.0
    %295 = vmatprep.subr.mxu0 0.0
    %296 = vmatpush1.xpose.msra.mxu0 0.0
    %297 = vmatprep.subr.mxu0 0.0
    %298 = vmatpush1.xpose.msra.mxu0 0.0
    %299 = vmatprep.subr.mxu0 0.0
    %300 = vmatpush1.xpose.msra.mxu0 0.0
    %301 = vmatprep.subr.mxu0 0.0
    %302 = vmatpush1.xpose.msra.mxu0 0.0
    %303 = vmatprep.subr.mxu0 0.0
    %304 = vmatpush1.xpose.msra.mxu0 0.0
    %305 = vmatprep.subr.mxu0 0.0
    %306 = vmatpush1.xpose.msra.mxu0 0.0
    %307 = vmatprep.subr.mxu0 0.0
    %308 = vmatpush1.xpose.msra.mxu0 0.0
    %309 = vmatprep.subr.mxu0 0.0
    %310 = vmatpush1.xpose.msra.mxu0 0.0
    %311 = vmatprep.subr.mxu0 0.0
    %312 = vmatpush1.xpose.msra.mxu0 0.0
    %313 = vmatprep.subr.mxu0 0.0
    %314 = vmatpush1.xpose.msra.mxu0 0.0
    %315 = vmatprep.subr.mxu0 0.0
    %316 = vmatpush1.xpose.msra.mxu0 0.0
    %317 = vmatprep.subr.mxu0 0.0
    %318 = vmatpush1.xpose.msra.mxu0 0.0
    %319 = vmatprep.subr.mxu0 0.0
    %320 = vmatpush1.xpose.msra.mxu0 0.0
    %321 = vmatprep.subr.mxu0 0.0
    %322 = vmatpush1.xpose.msra.mxu0 0.0
    %323 = vmatprep.subr.mxu0 0.0
    %324 = vmatpush1.xpose.msra.mxu0 0.0
    %325 = vmatprep.subr.mxu0 0.0
    %326 = vmatpush1.xpose.msra.mxu0 0.0
    %327 = vmatprep.subr.mxu0 0.0
    %328 = vmatpush1.xpose.msra.mxu0 0.0
    %329 = vmatprep.subr.mxu0 0.0
    %330 = vmatpush1.xpose.msra.mxu0 0.0
    %331 = vmatprep.subr.mxu0 0.0
    %332 = vmatpush1.xpose.msra.mxu0 0.0
    %333 = vmatprep.subr.mxu0 0.0
    %334 = vmatpush1.xpose.msra.mxu0 0.0
    %335 = vmatprep.subr.mxu0 0.0
    %336 = vmatpush1.xpose.msra.mxu0 0.0
    %337 = vmatprep.subr.mxu0 0.0
    %338 = vmatpush1.xpose.msra.mxu0 0.0
    %339 = vmatprep.subr.mxu0 0.0
    %340 = vmatpush1.xpose.msra.mxu0 0.0
    %341 = vmatprep.subr.mxu0 0.0
    %342 = vmatpush1.xpose.msra.mxu0 0.0
    %343 = vmatprep.subr.mxu0 0.0
    %344 = vmatpush1.xpose.msra.mxu0 0.0
    %345 = vmatprep.subr.mxu0 0.0
    %346 = vmatpush1.xpose.msra.mxu0 0.0
    %347 = vmatprep.subr.mxu0 0.0
    %348 = vmatpush1.xpose.msra.mxu0 0.0
    %349 = vmatprep.mubr.f32.mxu0 0.0
    %350 = vmatmul.mubr.f32.gmra.mrb[0].mxu0 %v208
    %v351 = vpop.f32.mrb[0].mxu0
    %v352 = vadd.f32 %v89, %v351
    %v353 = vpop.f32.mrb[0].mxu0
    %354 = vmatprep.mubr.f32.mxu0 0.0
    %355 = vmatmul.mubr.f32.gmra.mrb[0].mxu0 %v211
    %v356 = vpop.f32.mrb[0].mxu0
    %v357 = vadd.f32 %v94, %v356
    %v358 = vpop.f32.mrb[0].mxu0
    %359 = vmatprep.mubr.f32.mxu0 0.0
    %360 = vmatmul.mubr.f32.gmra.mrb[0].mxu0 %v214
    %v361 = vpop.f32.mrb[0].mxu0
    %v362 = vadd.f32 %v99, %v361
    %v363 = vpop.f32.mrb[0].mxu0
    %364 = vmatprep.mubr.f32.mxu0 0.0
    %365 = vmatmul.mubr.f32.gmra.mrb[0].mxu0 %v217
    %v366 = vpop.f32.mrb[0].mxu0
    %v367 = vadd.f32 %v104, %v366
    %v368 = vpop.f32.mrb[0].mxu0
    %369 = vmatprep.mubr.f32.mxu0 0.0
    %370 = vmatmul.mubr.f32.gmra.mrb[0].mxu0 %v220
    %v371 = vpop.f32.mrb[0].mxu0
    %v372 = vadd.f32 %v109, %v371
    %v373 = vpop.f32.mrb[0].mxu0
    %374 = vmatprep.mubr.f32.mxu0 0.0
    %375 = vmatmul.mubr.f32.gmra.mrb[0].mxu0 %v223
    %v376 = vpop.f32.mrb[0].mxu0
    %v377 = vadd.f32 %v114, %v376
    %v378 = vpop.f32.mrb[0].mxu0
    %379 = vmatprep.mubr.f32.mxu0 0.0
    %380 = vmatmul.mubr.f32.gmra.mrb[0].mxu0 %v226
    %v381 = vpop.f32.mrb[0].mxu0
    %v382 = vadd.f32 %v119, %v381
    %v383 = vpop.f32.mrb[0].mxu0
    %384 = vmatprep.mubr.f32.mxu0 0.0
    %385 = vmatmul.mubr.f32.gmra.mrb[0].mxu0 %v229
    %v386 = vpop.f32.mrb[0].mxu0
    %v387 = vadd.f32 %v124, %v386
    %v388 = vpop.f32.mrb[0].mxu0
    %389 = vmatprep.mubr.f32.mxu0 0.0
    %390 = vmatmul.mubr.f32.gmra.mrb[0].mxu0 %v232
    %v391 = vpop.f32.mrb[0].mxu0
    %v392 = vadd.f32 %v129, %v391
    %v393 = vpop.f32.mrb[0].mxu0
    %394 = vmatprep.mubr.f32.mxu0 0.0
    %395 = vmatmul.mubr.f32.gmra.mrb[0].mxu0 %v235
    %v396 = vpop.f32.mrb[0].mxu0
    %v397 = vadd.f32 %v134, %v396
    %v398 = vpop.f32.mrb[0].mxu0
    %399 = vmatprep.mubr.f32.mxu0 0.0
    %400 = vmatmul.mubr.f32.gmra.mrb[0].mxu0 %v238
    %v401 = vpop.f32.mrb[0].mxu0
    %v402 = vadd.f32 %v139, %v401
    %v403 = vpop.f32.mrb[0].mxu0
    %404 = vmatprep.mubr.f32.mxu0 0.0
    %405 = vmatmul.mubr.f32.gmra.mrb[0].mxu0 %v241
    %v406 = vpop.f32.mrb[0].mxu0
    %v407 = vadd.f32 %v144, %v406
    %v408 = vpop.f32.mrb[0].mxu0
    %409 = vmatprep.mubr.f32.mxu0 0.0
    %410 = vmatmul.mubr.f32.gmra.mrb[0].mxu0 %v244
    %v411 = vpop.f32.mrb[0].mxu0
    %v412 = vadd.f32 %v149, %v411
    %v413 = vpop.f32.mrb[0].mxu0
    %414 = vmatprep.mubr.f32.mxu0 0.0
    %415 = vmatmul.mubr.f32.gmra.mrb[0].mxu0 %v247
    %v416 = vpop.f32.mrb[0].mxu0
    %v417 = vadd.f32 %v154, %v416
    %v418 = vpop.f32.mrb[0].mxu0
    %419 = vmatprep.mubr.f32.mxu0 0.0
    %420 = vmatmul.mubr.f32.gmra.mrb[0].mxu0 %v250
    %v421 = vpop.f32.mrb[0].mxu0
    %v422 = vadd.f32 %v159, %v421
    %v423 = vpop.f32.mrb[0].mxu0
    %424 = vmatprep.mubr.f32.mxu0 0.0
    %425 = vmatmul.mubr.f32.gmra.mrb[0].mxu0 %v253
    %v426 = vpop.f32.mrb[0].mxu0
    %v427 = vadd.f32 %v164, %v426
    %v428 = vpop.f32.mrb[0].mxu0
    %429 = vmatprep.mubr.f32.mxu0 0.0
    %430 = vmatmul.mubr.f32.gmra.mrb[0].mxu0 %v256
    %v431 = vpop.f32.mrb[0].mxu0
    %v432 = vadd.f32 %v169, %v431
    %v433 = vpop.f32.mrb[0].mxu0
    %434 = vmatprep.mubr.f32.mxu0 0.0
    %435 = vmatmul.mubr.f32.gmra.mrb[0].mxu0 %v259
    %v436 = vpop.f32.mrb[0].mxu0
    %v437 = vadd.f32 %v174, %v436
    %v438 = vpop.f32.mrb[0].mxu0
    %439 = vmatprep.mubr.f32.mxu0 0.0
    %440 = vmatmul.mubr.f32.gmra.mrb[0].mxu0 %v262
    %v441 = vpop.f32.mrb[0].mxu0
    %v442 = vadd.f32 %v179, %v441
    %v443 = vpop.f32.mrb[0].mxu0
    %444 = vmatprep.mubr.f32.mxu0 0.0
    %445 = vmatmul.mubr.f32.gmra.mrb[0].mxu0 %v265
    %v446 = vpop.f32.mrb[0].mxu0
    %v447 = vadd.f32 %v184, %v446
    %v448 = vpop.f32.mrb[0].mxu0
    %449 = vmatprep.mubr.f32.mxu0 0.0
    %450 = vmatmul.mubr.f32.gmra.mrb[0].mxu0 %v268
    %v451 = vpop.f32.mrb[0].mxu0
    %v452 = vadd.f32 %v189, %v451
    %v453 = vpop.f32.mrb[0].mxu0
    %454 = vmatprep.mubr.f32.mxu0 0.0
    %455 = vmatmul.mubr.f32.gmra.mrb[0].mxu0 %v271
    %v456 = vpop.f32.mrb[0].mxu0
    %v457 = vadd.f32 %v194, %v456
    %v458 = vpop.f32.mrb[0].mxu0
    %459 = vmatprep.mubr.f32.mxu0 0.0
    %460 = vmatmul.mubr.f32.gmra.mrb[0].mxu0 %v274
    %v461 = vpop.f32.mrb[0].mxu0
    %v462 = vadd.f32 %v199, %v461
    %v463 = vpop.f32.mrb[0].mxu0
    %464 = vmatprep.mubr.f32.mxu0 0.0
    %465 = vmatmul.mubr.f32.gmra.mrb[0].mxu0 %v277
    %v466 = vpop.f32.mrb[0].mxu0
    %v467 = vadd.f32 %v204, %v466
    %v468 = vpop.f32.mrb[0].mxu0
    %469 = vdwg.mxu0
    %v470 = vld [vmem:[%s5] sm:$0x1]
    %v471 = vld [vmem:[%s3] sm:$0xff]
    %v472 = vld [vmem:[%s3 + $0x8] sm:$0xff]
    %v473 = vld [vmem:[%s3 + $0x10] sm:$0xff]
    %v474 = vld [vmem:[%s3 + $0x18] sm:$0xff]
    %vm475 = vcmask 130048
    %v477 = vsel %vm475, %v402, 0
    %v480 = vsel %vm475, %v407, 0
    %482 = vmatprep.subr.mxu0 0.0
    %483 = vmatpush1.msra.mxu0 %v473
    %484 = vmatprep.subr.mxu0 0.0
    %485 = vmatpush1.msra.mxu0 %v474
    %486 = vmatprep.subr.mxu0 0.0
    %487 = vmatpush1.msra.mxu0 0.0
    %488 = vmatprep.subr.mxu0 0.0
    %489 = vmatpush1.msra.mxu0 0.0
    %490 = vmatprep.subr.mxu0 0.0
    %491 = vmatpush1.msra.mxu0 0.0
    %492 = vmatprep.subr.mxu0 0.0
    %493 = vmatpush1.msra.mxu0 0.0
    %494 = vmatprep.subr.mxu0 0.0
    %495 = vmatpush1.msra.mxu0 0.0
    %496 = vmatprep.subr.mxu0 0.0
    %497 = vmatpush1.msra.mxu0 0.0
    %498 = vmatprep.subr.mxu0 0.0
    %499 = vmatpush1.msra.mxu0 0.0
    %500 = vmatprep.subr.mxu0 0.0
    %501 = vmatpush1.msra.mxu0 0.0
    %502 = vmatprep.subr.mxu0 0.0
    %503 = vmatpush1.msra.mxu0 0.0
    %504 = vmatprep.subr.mxu0 0.0
    %505 = vmatpush1.msra.mxu0 0.0
    %506 = vmatprep.subr.mxu0 0.0
    %507 = vmatpush1.msra.mxu0 0.0
    %508 = vmatprep.subr.mxu0 0.0
    %509 = vmatpush1.msra.mxu0 0.0
    %510 = vmatprep.subr.mxu0 0.0
    %511 = vmatpush1.msra.mxu0 0.0
    %512 = vmatprep.subr.mxu0 0.0
    %513 = vmatpush1.msra.mxu0 0.0
    %514 = vmatprep.subr.mxu0 0.0
    %515 = vmatpush1.msra.mxu0 0.0
    %516 = vmatprep.subr.mxu0 0.0
    %517 = vmatpush1.msra.mxu0 0.0
    %518 = vmatprep.subr.mxu0 0.0
    %519 = vmatpush1.msra.mxu0 0.0
    %520 = vmatprep.subr.mxu0 0.0
    %521 = vmatpush1.msra.mxu0 0.0
    %522 = vmatprep.subr.mxu0 0.0
    %523 = vmatpush1.msra.mxu0 0.0
    %524 = vmatprep.subr.mxu0 0.0
    %525 = vmatpush1.msra.mxu0 0.0
    %526 = vmatprep.subr.mxu0 0.0
    %527 = vmatpush1.msra.mxu0 0.0
    %528 = vmatprep.subr.mxu0 0.0
    %529 = vmatpush1.msra.mxu0 0.0
    %530 = vmatprep.subr.mxu0 0.0
    %531 = vmatpush1.msra.mxu0 0.0
    %532 = vmatprep.subr.mxu0 0.0
    %533 = vmatpush1.msra.mxu0 0.0
    %534 = vmatprep.subr.mxu0 0.0
    %535 = vmatpush1.msra.mxu0 0.0
    %536 = vmatprep.subr.mxu0 0.0
    %537 = vmatpush1.msra.mxu0 0.0
    %538 = vmatprep.subr.mxu0 0.0
    %539 = vmatpush1.msra.mxu0 0.0
    %540 = vmatprep.subr.mxu0 0.0
    %541 = vmatpush1.msra.mxu0 0.0
    %542 = vmatprep.subr.mxu0 0.0
    %543 = vmatpush1.msra.mxu0 0.0
    %544 = vmatprep.subr.mxu0 0.0
    %545 = vmatpush1.msra.mxu0 0.0
    %546 = vmatprep.mubr.f32.mxu0 0.0
    %547 = vmatmul.mubr.f32.gmra.mrb[0].mxu0 %v477
    %v548 = vpop.f32.mrb[0].mxu0
    %v549 = vadd.f32 0.0, %v548
    %v550 = vpop.f32.mrb[0].mxu0
    %551 = vmatprep.mubr.f32.mxu0 0.0
    %552 = vmatmul.mubr.f32.gmra.mrb[0].mxu0 %v480
    %v553 = vpop.f32.mrb[0].mxu0
    %v554 = vadd.f32 0.0, %v553
    %v555 = vpop.f32.mrb[0].mxu0
    %556 = vdwg.mxu0
    %v558 = vsel %vm475, %v392, 0
    %v561 = vsel %vm475, %v397, 0
    %563 = vmatprep.subr.mxu0 0.0
    %564 = vmatpush1.msra.mxu0 %v471
    %565 = vmatprep.subr.mxu0 0.0
    %566 = vmatpush1.msra.mxu0 %v472
    %567 = vmatprep.subr.mxu0 0.0
    %568 = vmatpush1.msra.mxu0 0.0
    %569 = vmatprep.subr.mxu0 0.0
    %570 = vmatpush1.msra.mxu0 0.0
    %571 = vmatprep.subr.mxu0 0.0
    %572 = vmatpush1.msra.mxu0 0.0
    %573 = vmatprep.subr.mxu0 0.0
    %574 = vmatpush1.msra.mxu0 0.0
    %575 = vmatprep.subr.mxu0 0.0
    %576 = vmatpush1.msra.mxu0 0.0
    %577 = vmatprep.subr.mxu0 0.0
    %578 = vmatpush1.msra.mxu0 0.0
    %579 = vmatprep.subr.mxu0 0.0
    %580 = vmatpush1.msra.mxu0 0.0
    %581 = vmatprep.subr.mxu0 0.0
    %582 = vmatpush1.msra.mxu0 0.0
    %583 = vmatprep.subr.mxu0 0.0
    %584 = vmatpush1.msra.mxu0 0.0
    %585 = vmatprep.subr.mxu0 0.0
    %586 = vmatpush1.msra.mxu0 0.0
    %587 = vmatprep.subr.mxu0 0.0
    %588 = vmatpush1.msra.mxu0 0.0
    %589 = vmatprep.subr.mxu0 0.0
    %590 = vmatpush1.msra.mxu0 0.0
    %591 = vmatprep.subr.mxu0 0.0
    %592 = vmatpush1.msra.mxu0 0.0
    %593 = vmatprep.subr.mxu0 0.0
    %594 = vmatpush1.msra.mxu0 0.0
    %595 = vmatprep.subr.mxu0 0.0
    %596 = vmatpush1.msra.mxu0 0.0
    %597 = vmatprep.subr.mxu0 0.0
    %598 = vmatpush1.msra.mxu0 0.0
    %599 = vmatprep.subr.mxu0 0.0
    %600 = vmatpush1.msra.mxu0 0.0
    %601 = vmatprep.subr.mxu0 0.0
    %602 = vmatpush1.msra.mxu0 0.0
    %603 = vmatprep.subr.mxu0 0.0
    %604 = vmatpush1.msra.mxu0 0.0
    %605 = vmatprep.subr.mxu0 0.0
    %606 = vmatpush1.msra.mxu0 0.0
    %607 = vmatprep.subr.mxu0 0.0
    %608 = vmatpush1.msra.mxu0 0.0
    %609 = vmatprep.subr.mxu0 0.0
    %610 = vmatpush1.msra.mxu0 0.0
    %611 = vmatprep.subr.mxu0 0.0
    %612 = vmatpush1.msra.mxu0 0.0
    %613 = vmatprep.subr.mxu0 0.0
    %614 = vmatpush1.msra.mxu0 0.0
    %615 = vmatprep.subr.mxu0 0.0
    %616 = vmatpush1.msra.mxu0 0.0
    %617 = vmatprep.subr.mxu0 0.0
    %618 = vmatpush1.msra.mxu0 0.0
    %619 = vmatprep.subr.mxu0 0.0
    %620 = vmatpush1.msra.mxu0 0.0
    %621 = vmatprep.subr.mxu0 0.0
    %622 = vmatpush1.msra.mxu0 0.0
    %623 = vmatprep.subr.mxu0 0.0
    %624 = vmatpush1.msra.mxu0 0.0
    %625 = vmatprep.subr.mxu0 0.0
    %626 = vmatpush1.msra.mxu0 0.0
    %627 = vmatprep.mubr.f32.mxu0 0.0
    %628 = vmatmul.mubr.f32.gmra.mrb[0].mxu0 %v558
    %v629 = vpop.f32.mrb[0].mxu0
    %v630 = vadd.f32 %v549, %v629
    %v631 = vpop.f32.mrb[0].mxu0
    %632 = vmatprep.mubr.f32.mxu0 0.0
    %633 = vmatmul.mubr.f32.gmra.mrb[0].mxu0 %v561
    %v634 = vpop.f32.mrb[0].mxu0
    %v635 = vadd.f32 %v554, %v634
    %v636 = vpop.f32.mrb[0].mxu0
    %637 = vdwg.mxu0
    %v638 = vld [vmem:[%s3 + $0x20] sm:$0xff]
    %v639 = vld [vmem:[%s3 + $0x28] sm:$0xff]
    %v641 = vsel %vm475, %v412, 0
    %v644 = vsel %vm475, %v417, 0
    %646 = vmatprep.subr.mxu0 0.0
    %647 = vmatpush1.msra.mxu0 %v638
    %648 = vmatprep.subr.mxu0 0.0
    %649 = vmatpush1.msra.mxu0 %v639
    %650 = vmatprep.subr.mxu0 0.0
    %651 = vmatpush1.msra.mxu0 0.0
    %652 = vmatprep.subr.mxu0 0.0
    %653 = vmatpush1.msra.mxu0 0.0
    %654 = vmatprep.subr.mxu0 0.0
    %655 = vmatpush1.msra.mxu0 0.0
    %656 = vmatprep.subr.mxu0 0.0
    %657 = vmatpush1.msra.mxu0 0.0
    %658 = vmatprep.subr.mxu0 0.0
    %659 = vmatpush1.msra.mxu0 0.0
    %660 = vmatprep.subr.mxu0 0.0
    %661 = vmatpush1.msra.mxu0 0.0
    %662 = vmatprep.subr.mxu0 0.0
    %663 = vmatpush1.msra.mxu0 0.0
    %664 = vmatprep.subr.mxu0 0.0
    %665 = vmatpush1.msra.mxu0 0.0
    %666 = vmatprep.subr.mxu0 0.0
    %667 = vmatpush1.msra.mxu0 0.0
    %668 = vmatprep.subr.mxu0 0.0
    %669 = vmatpush1.msra.mxu0 0.0
    %670 = vmatprep.subr.mxu0 0.0
    %671 = vmatpush1.msra.mxu0 0.0
    %672 = vmatprep.subr.mxu0 0.0
    %673 = vmatpush1.msra.mxu0 0.0
    %674 = vmatprep.subr.mxu0 0.0
    %675 = vmatpush1.msra.mxu0 0.0
    %676 = vmatprep.subr.mxu0 0.0
    %677 = vmatpush1.msra.mxu0 0.0
    %678 = vmatprep.subr.mxu0 0.0
    %679 = vmatpush1.msra.mxu0 0.0
    %680 = vmatprep.subr.mxu0 0.0
    %681 = vmatpush1.msra.mxu0 0.0
    %682 = vmatprep.subr.mxu0 0.0
    %683 = vmatpush1.msra.mxu0 0.0
    %684 = vmatprep.subr.mxu0 0.0
    %685 = vmatpush1.msra.mxu0 0.0
    %686 = vmatprep.subr.mxu0 0.0
    %687 = vmatpush1.msra.mxu0 0.0
    %688 = vmatprep.subr.mxu0 0.0
    %689 = vmatpush1.msra.mxu0 0.0
    %690 = vmatprep.subr.mxu0 0.0
    %691 = vmatpush1.msra.mxu0 0.0
    %692 = vmatprep.subr.mxu0 0.0
    %693 = vmatpush1.msra.mxu0 0.0
    %694 = vmatprep.subr.mxu0 0.0
    %695 = vmatpush1.msra.mxu0 0.0
    %696 = vmatprep.subr.mxu0 0.0
    %697 = vmatpush1.msra.mxu0 0.0
    %698 = vmatprep.subr.mxu0 0.0
    %699 = vmatpush1.msra.mxu0 0.0
    %700 = vmatprep.subr.mxu0 0.0
    %701 = vmatpush1.msra.mxu0 0.0
    %702 = vmatprep.subr.mxu0 0.0
    %703 = vmatpush1.msra.mxu0 0.0
    %704 = vmatprep.subr.mxu0 0.0
    %705 = vmatpush1.msra.mxu0 0.0
    %706 = vmatprep.subr.mxu0 0.0
    %707 = vmatpush1.msra.mxu0 0.0
    %708 = vmatprep.subr.mxu0 0.0
    %709 = vmatpush1.msra.mxu0 0.0
    %710 = vmatprep.mubr.f32.mxu0 0.0
    %711 = vmatmul.mubr.f32.gmra.mrb[0].mxu0 %v641
    %v712 = vpop.f32.mrb[0].mxu0
    %v713 = vadd.f32 0.0, %v712
    %v714 = vpop.f32.mrb[0].mxu0
    %715 = vmatprep.mubr.f32.mxu0 0.0
    %716 = vmatmul.mubr.f32.gmra.mrb[0].mxu0 %v644
    %v717 = vpop.f32.mrb[0].mxu0
    %v718 = vadd.f32 0.0, %v717
    %v719 = vpop.f32.mrb[0].mxu0
    %720 = vdwg.mxu0
    %v721 = vadd.f32 %v630, %v713
    %v722 = vadd.f32 %v635, %v718
    %v723 = vld [vmem:[%s3 + $0x30] sm:$0xff]
    %v724 = vld [vmem:[%s3 + $0x38] sm:$0xff]
    %v726 = vsel %vm475, %v422, 0
    %v729 = vsel %vm475, %v427, 0
    %731 = vmatprep.subr.mxu0 0.0
    %732 = vmatpush1.msra.mxu0 %v723
    %733 = vmatprep.subr.mxu0 0.0
    %734 = vmatpush1.msra.mxu0 %v724
    %735 = vmatprep.subr.mxu0 0.0
    %736 = vmatpush1.msra.mxu0 0.0
    %737 = vmatprep.subr.mxu0 0.0
    %738 = vmatpush1.msra.mxu0 0.0
    %739 = vmatprep.subr.mxu0 0.0
    %740 = vmatpush1.msra.mxu0 0.0
    %741 = vmatprep.subr.mxu0 0.0
    %742 = vmatpush1.msra.mxu0 0.0
    %743 = vmatprep.subr.mxu0 0.0
    %744 = vmatpush1.msra.mxu0 0.0
    %745 = vmatprep.subr.mxu0 0.0
    %746 = vmatpush1.msra.mxu0 0.0
    %747 = vmatprep.subr.mxu0 0.0
    %748 = vmatpush1.msra.mxu0 0.0
    %749 = vmatprep.subr.mxu0 0.0
    %750 = vmatpush1.msra.mxu0 0.0
    %751 = vmatprep.subr.mxu0 0.0
    %752 = vmatpush1.msra.mxu0 0.0
    %753 = vmatprep.subr.mxu0 0.0
    %754 = vmatpush1.msra.mxu0 0.0
    %755 = vmatprep.subr.mxu0 0.0
    %756 = vmatpush1.msra.mxu0 0.0
    %757 = vmatprep.subr.mxu0 0.0
    %758 = vmatpush1.msra.mxu0 0.0
    %759 = vmatprep.subr.mxu0 0.0
    %760 = vmatpush1.msra.mxu0 0.0
    %761 = vmatprep.subr.mxu0 0.0
    %762 = vmatpush1.msra.mxu0 0.0
    %763 = vmatprep.subr.mxu0 0.0
    %764 = vmatpush1.msra.mxu0 0.0
    %765 = vmatprep.subr.mxu0 0.0
    %766 = vmatpush1.msra.mxu0 0.0
    %767 = vmatprep.subr.mxu0 0.0
    %768 = vmatpush1.msra.mxu0 0.0
    %769 = vmatprep.subr.mxu0 0.0
    %770 = vmatpush1.msra.mxu0 0.0
    %771 = vmatprep.subr.mxu0 0.0
    %772 = vmatpush1.msra.mxu0 0.0
    %773 = vmatprep.subr.mxu0 0.0
    %774 = vmatpush1.msra.mxu0 0.0
    %775 = vmatprep.subr.mxu0 0.0
    %776 = vmatpush1.msra.mxu0 0.0
    %777 = vmatprep.subr.mxu0 0.0
    %778 = vmatpush1.msra.mxu0 0.0
    %779 = vmatprep.subr.mxu0 0.0
    %780 = vmatpush1.msra.mxu0 0.0
    %781 = vmatprep.subr.mxu0 0.0
    %782 = vmatpush1.msra.mxu0 0.0
    %783 = vmatprep.subr.mxu0 0.0
    %784 = vmatpush1.msra.mxu0 0.0
    %785 = vmatprep.subr.mxu0 0.0
    %786 = vmatpush1.msra.mxu0 0.0
    %787 = vmatprep.subr.mxu0 0.0
    %788 = vmatpush1.msra.mxu0 0.0
    %789 = vmatprep.subr.mxu0 0.0
    %790 = vmatpush1.msra.mxu0 0.0
    %791 = vmatprep.subr.mxu0 0.0
    %792 = vmatpush1.msra.mxu0 0.0
    %793 = vmatprep.subr.mxu0 0.0
    %794 = vmatpush1.msra.mxu0 0.0
    %795 = vmatprep.mubr.f32.mxu0 0.0
    %796 = vmatmul.mubr.f32.gmra.mrb[0].mxu0 %v726
    %v797 = vpop.f32.mrb[0].mxu0
    %v798 = vadd.f32 0.0, %v797
    %v799 = vpop.f32.mrb[0].mxu0
    %800 = vmatprep.mubr.f32.mxu0 0.0
    %801 = vmatmul.mubr.f32.gmra.mrb[0].mxu0 %v729
    %v802 = vpop.f32.mrb[0].mxu0
    %v803 = vadd.f32 0.0, %v802
    %v804 = vpop.f32.mrb[0].mxu0
    %805 = vdwg.mxu0
    %v806 = vadd.f32 %v721, %v798
    %v807 = vadd.f32 %v722, %v803
    %v809 = vsel %vm475, %v352, 0
    %v812 = vsel %vm475, %v357, 0
    %814 = vmatprep.subr.mxu0 0.0
    %815 = vmatpush1.msra.mxu0 %v806
    %816 = vmatprep.subr.mxu0 0.0
    %817 = vmatpush1.msra.mxu0 %v807
    %818 = vmatprep.subr.mxu0 0.0
    %819 = vmatpush1.msra.mxu0 0.0
    %820 = vmatprep.subr.mxu0 0.0
    %821 = vmatpush1.msra.mxu0 0.0
    %822 = vmatprep.subr.mxu0 0.0
    %823 = vmatpush1.msra.mxu0 0.0
    %824 = vmatprep.subr.mxu0 0.0
    %825 = vmatpush1.msra.mxu0 0.0
    %826 = vmatprep.subr.mxu0 0.0
    %827 = vmatpush1.msra.mxu0 0.0
    %828 = vmatprep.subr.mxu0 0.0
    %829 = vmatpush1.msra.mxu0 0.0
    %830 = vmatprep.subr.mxu0 0.0
    %831 = vmatpush1.msra.mxu0 0.0
    %832 = vmatprep.subr.mxu0 0.0
    %833 = vmatpush1.msra.mxu0 0.0
    %834 = vmatprep.subr.mxu0 0.0
    %835 = vmatpush1.msra.mxu0 0.0
    %836 = vmatprep.subr.mxu0 0.0
    %837 = vmatpush1.msra.mxu0 0.0
    %838 = vmatprep.subr.mxu0 0.0
    %839 = vmatpush1.msra.mxu0 0.0
    %840 = vmatprep.subr.mxu0 0.0
    %841 = vmatpush1.msra.mxu0 0.0
    %842 = vmatprep.subr.mxu0 0.0
    %843 = vmatpush1.msra.mxu0 0.0
    %844 = vmatprep.subr.mxu0 0.0
    %845 = vmatpush1.msra.mxu0 0.0
    %846 = vmatprep.subr.mxu0 0.0
    %847 = vmatpush1.msra.mxu0 0.0
    %848 = vmatprep.subr.mxu0 0.0
    %849 = vmatpush1.msra.mxu0 0.0
    %850 = vmatprep.subr.mxu0 0.0
    %851 = vmatpush1.msra.mxu0 0.0
    %852 = vmatprep.subr.mxu0 0.0
    %853 = vmatpush1.msra.mxu0 0.0
    %854 = vmatprep.subr.mxu0 0.0
    %855 = vmatpush1.msra.mxu0 0.0
    %856 = vmatprep.subr.mxu0 0.0
    %857 = vmatpush1.msra.mxu0 0.0
    %858 = vmatprep.subr.mxu0 0.0
    %859 = vmatpush1.msra.mxu0 0.0
    %860 = vmatprep.subr.mxu0 0.0
    %861 = vmatpush1.msra.mxu0 0.0
    %862 = vmatprep.subr.mxu0 0.0
    %863 = vmatpush1.msra.mxu0 0.0
    %864 = vmatprep.subr.mxu0 0.0
    %865 = vmatpush1.msra.mxu0 0.0
    %866 = vmatprep.subr.mxu0 0.0
    %867 = vmatpush1.msra.mxu0 0.0
    %868 = vmatprep.subr.mxu0 0.0
    %869 = vmatpush1.msra.mxu0 0.0
    %870 = vmatprep.subr.mxu0 0.0
    %871 = vmatpush1.msra.mxu0 0.0
    %872 = vmatprep.subr.mxu0 0.0
    %873 = vmatpush1.msra.mxu0 0.0
    %874 = vmatprep.subr.mxu0 0.0
    %875 = vmatpush1.msra.mxu0 0.0
    %876 = vmatprep.subr.mxu0 0.0
    %877 = vmatpush1.msra.mxu0 0.0
    %878 = vmatprep.mubr.f32.mxu0 0.0
    %879 = vmatmul.mubr.f32.gmra.mrb[0].mxu0 %v809
    %v880 = vpop.f32.mrb[0].mxu0
    %v881 = vadd.f32 0.0, %v880
    %v882 = vpop.f32.mrb[0].mxu0
    %883 = vmatprep.mubr.f32.mxu0 0.0
    %884 = vmatmul.mubr.f32.gmra.mrb[0].mxu0 %v812
    %v885 = vpop.f32.mrb[0].mxu0
    %v886 = vadd.f32 0.0, %v885
    %v887 = vpop.f32.mrb[0].mxu0
    %888 = vdwg.mxu0
    %v889 = vsel %vm475, %v881, -inf
    %890 = vmax.xlane.f32.xlu0 %v889
    %v891 = vpop.xlane.xlu0 %890
    %v892 = vsel %vm475, %v886, -inf
    %893 = vmax.xlane.f32.xlu0 %v892
    %v894 = vpop.xlane.xlu0 %893
    %v895 = vsub.f32 %v881, %v891
    %v896 = vsub.f32 %v886, %v894
    %v897 = vmul.f32 %v895, 1.442695
    %v898 = vpow.pop %v897
    %v899 = vmul.f32 %v896, 1.442695
    %v900 = vpow.pop %v899
    %v901 = vsel %vm475, %v898, 0.0
    %902 = vadd.xlane.f32.xlu0 %v901
    %v903 = vpop.xlane.xlu0 %902
    %v904 = vsel %vm475, %v900, 0.0
    %905 = vadd.xlane.f32.xlu0 %v904
    %v906 = vpop.xlane.xlu0 %905
    %v907 = vrcp.pop %v903
    %v908 = vrcp.pop %v906
    %v909 = vmul.f32 %v898, %v907
    %v910 = vmul.f32 %v900, %v908
    %v912 = vsel %vm475, %v909, 0
    %v915 = vsel %vm475, %v910, 0
    %917 = vmatprep.subr.mxu0 0.0
    %918 = vmatpush1.msra.mxu0 %v432
    %919 = vmatprep.subr.mxu0 0.0
    %920 = vmatpush1.msra.mxu0 %v437
    %921 = vmatprep.subr.mxu0 0.0
    %922 = vmatpush1.msra.mxu0 0.0
    %923 = vmatprep.subr.mxu0 0.0
    %924 = vmatpush1.msra.mxu0 0.0
    %925 = vmatprep.subr.mxu0 0.0
    %926 = vmatpush1.msra.mxu0 0.0
    %927 = vmatprep.subr.mxu0 0.0
    %928 = vmatpush1.msra.mxu0 0.0
    %929 = vmatprep.subr.mxu0 0.0
    %930 = vmatpush1.msra.mxu0 0.0
    %931 = vmatprep.subr.mxu0 0.0
    %932 = vmatpush1.msra.mxu0 0.0
    %933 = vmatprep.subr.mxu0 0.0
    %934 = vmatpush1.msra.mxu0 0.0
    %935 = vmatprep.subr.mxu0 0.0
    %936 = vmatpush1.msra.mxu0 0.0
    %937 = vmatprep.subr.mxu0 0.0
    %938 = vmatpush1.msra.mxu0 0.0
    %939 = vmatprep.subr.mxu0 0.0
    %940 = vmatpush1.msra.mxu0 0.0
    %941 = vmatprep.subr.mxu0 0.0
    %942 = vmatpush1.msra.mxu0 0.0
    %943 = vmatprep.subr.mxu0 0.0
    %944 = vmatpush1.msra.mxu0 0.0
    %945 = vmatprep.subr.mxu0 0.0
    %946 = vmatpush1.msra.mxu0 0.0
    %947 = vmatprep.subr.mxu0 0.0
    %948 = vmatpush1.msra.mxu0 0.0
    %949 = vmatprep.subr.mxu0 0.0
    %950 = vmatpush1.msra.mxu0 0.0
    %951 = vmatprep.subr.mxu0 0.0
    %952 = vmatpush1.msra.mxu0 0.0
    %953 = vmatprep.subr.mxu0 0.0
    %954 = vmatpush1.msra.mxu0 0.0
    %955 = vmatprep.subr.mxu0 0.0
    %956 = vmatpush1.msra.mxu0 0.0
    %957 = vmatprep.subr.mxu0 0.0
    %958 = vmatpush1.msra.mxu0 0.0
    %959 = vmatprep.subr.mxu0 0.0
    %960 = vmatpush1.msra.mxu0 0.0
    %961 = vmatprep.subr.mxu0 0.0
    %962 = vmatpush1.msra.mxu0 0.0
    %963 = vmatprep.subr.mxu0 0.0
    %964 = vmatpush1.msra.mxu0 0.0
    %965 = vmatprep.subr.mxu0 0.0
    %966 = vmatpush1.msra.mxu0 0.0
    %967 = vmatprep.subr.mxu0 0.0
    %968 = vmatpush1.msra.mxu0 0.0
    %969 = vmatprep.subr.mxu0 0.0
    %970 = vmatpush1.msra.mxu0 0.0
    %971 = vmatprep.subr.mxu0 0.0
    %972 = vmatpush1.msra.mxu0 0.0
    %973 = vmatprep.subr.mxu0 0.0
    %974 = vmatpush1.msra.mxu0 0.0
    %975 = vmatprep.subr.mxu0 0.0
    %976 = vmatpush1.msra.mxu0 0.0
    %977 = vmatprep.subr.mxu0 0.0
    %978 = vmatpush1.msra.mxu0 0.0
    %979 = vmatprep.subr.mxu0 0.0
    %980 = vmatpush1.msra.mxu0 0.0
    %981 = vmatprep.mubr.f32.mxu0 0.0
    %982 = vmatmul.mubr.f32.gmra.mrb[0].mxu0 %v912
    %v983 = vpop.f32.mrb[0].mxu0
    %v984 = vadd.f32 0.0, %v983
    %v985 = vpop.f32.mrb[0].mxu0
    %986 = vmatprep.mubr.f32.mxu0 0.0
    %987 = vmatmul.mubr.f32.gmra.mrb[0].mxu0 %v915
    %v988 = vpop.f32.mrb[0].mxu0
    %v989 = vadd.f32 0.0, %v988
    %v990 = vpop.f32.mrb[0].mxu0
    %991 = vdwg.mxu0
    %v992 = vld [vmem:[%s4] sm:$0xff]
    %v993 = vld [vmem:[%s4 + $0x8] sm:$0xff]
    %v995 = vsel %vm475, %v984, 0
    %v998 = vsel %vm475, %v989, 0
    %1000 = vmatprep.subr.mxu0 0.0
    %1001 = vmatpush1.msra.mxu0 %v992
    %1002 = vmatprep.subr.mxu0 0.0
    %1003 = vmatpush1.msra.mxu0 %v993
    %1004 = vmatprep.subr.mxu0 0.0
    %1005 = vmatpush1.msra.mxu0 0.0
    %1006 = vmatprep.subr.mxu0 0.0
    %1007 = vmatpush1.msra.mxu0 0.0
    %1008 = vmatprep.subr.mxu0 0.0
    %1009 = vmatpush1.msra.mxu0 0.0
    %1010 = vmatprep.subr.mxu0 0.0
    %1011 = vmatpush1.msra.mxu0 0.0
    %1012 = vmatprep.subr.mxu0 0.0
    %1013 = vmatpush1.msra.mxu0 0.0
    %1014 = vmatprep.subr.mxu0 0.0
    %1015 = vmatpush1.msra.mxu0 0.0
    %1016 = vmatprep.subr.mxu0 0.0
    %1017 = vmatpush1.msra.mxu0 0.0
    %1018 = vmatprep.subr.mxu0 0.0
    %1019 = vmatpush1.msra.mxu0 0.0
    %1020 = vmatprep.subr.mxu0 0.0
    %1021 = vmatpush1.msra.mxu0 0.0
    %1022 = vmatprep.subr.mxu0 0.0
    %1023 = vmatpush1.msra.mxu0 0.0
    %1024 = vmatprep.subr.mxu0 0.0
    %1025 = vmatpush1.msra.mxu0 0.0
    %1026 = vmatprep.subr.mxu0 0.0
    %1027 = vmatpush1.msra.mxu0 0.0
    %1028 = vmatprep.subr.mxu0 0.0
    %1029 = vmatpush1.msra.mxu0 0.0
    %1030 = vmatprep.subr.mxu0 0.0
    %1031 = vmatpush1.msra.mxu0 0.0
    %1032 = vmatprep.subr.mxu0 0.0
    %1033 = vmatpush1.msra.mxu0 0.0
    %1034 = vmatprep.subr.mxu0 0.0
    %1035 = vmatpush1.msra.mxu0 0.0
    %1036 = vmatprep.subr.mxu0 0.0
    %1037 = vmatpush1.msra.mxu0 0.0
    %1038 = vmatprep.subr.mxu0 0.0
    %1039 = vmatpush1.msra.mxu0 0.0
    %1040 = vmatprep.subr.mxu0 0.0
    %1041 = vmatpush1.msra.mxu0 0.0
    %1042 = vmatprep.subr.mxu0 0.0
    %1043 = vmatpush1.msra.mxu0 0.0
    %1044 = vmatprep.subr.mxu0 0.0
    %1045 = vmatpush1.msra.mxu0 0.0
    %1046 = vmatprep.subr.mxu0 0.0
    %1047 = vmatpush1.msra.mxu0 0.0
    %1048 = vmatprep.subr.mxu0 0.0
    %1049 = vmatpush1.msra.mxu0 0.0
    %1050 = vmatprep.subr.mxu0 0.0
    %1051 = vmatpush1.msra.mxu0 0.0
    %1052 = vmatprep.subr.mxu0 0.0
    %1053 = vmatpush1.msra.mxu0 0.0
    %1054 = vmatprep.subr.mxu0 0.0
    %1055 = vmatpush1.msra.mxu0 0.0
    %1056 = vmatprep.subr.mxu0 0.0
    %1057 = vmatpush1.msra.mxu0 0.0
    %1058 = vmatprep.subr.mxu0 0.0
    %1059 = vmatpush1.msra.mxu0 0.0
    %1060 = vmatprep.subr.mxu0 0.0
    %1061 = vmatpush1.msra.mxu0 0.0
    %1062 = vmatprep.subr.mxu0 0.0
    %1063 = vmatpush1.msra.mxu0 0.0
    %1064 = vmatprep.mubr.f32.mxu0 0.0
    %1065 = vmatmul.mubr.f32.gmra.mrb[0].mxu0 %v995
    %v1066 = vpop.f32.mrb[0].mxu0
    %v1067 = vadd.f32 0.0, %v1066
    %v1068 = vpop.f32.mrb[0].mxu0
    %1069 = vmatprep.mubr.f32.mxu0 0.0
    %1070 = vmatmul.mubr.f32.gmra.mrb[0].mxu0 %v998
    %v1071 = vpop.f32.mrb[0].mxu0
    %v1072 = vadd.f32 0.0, %v1071
    %v1073 = vpop.f32.mrb[0].mxu0
    %1074 = vdwg.mxu0
    %v1076 = vlaneseq
    %v1077 = vshrl.u32 %v1076, 7
    %v1078 = vsub.s32 0, %v1077
    %v1079 = vrot.slane %v470, %v1078
    %v1081 = vadd.f32 %v1079, %v1067
    %v1082 = vadd.f32 %v1079, %v1072
    %v1083 = vld [vmem:[%s3 + $0x40] sm:$0xff]
    %v1084 = vld [vmem:[%s3 + $0x48] sm:$0xff]
    %v1085 = vld [vmem:[%s3 + $0x50] sm:$0xff]
    %v1086 = vld [vmem:[%s3 + $0x58] sm:$0xff]
    %1087 = vmatprep.subr.mxu0 0.0
    %1088 = vmatpush1.msra.mxu0 %v1085
    %1089 = vmatprep.subr.mxu0 0.0
    %1090 = vmatpush1.msra.mxu0 %v1086
    %1091 = vmatprep.subr.mxu0 0.0
    %1092 = vmatpush1.msra.mxu0 0.0
    %1093 = vmatprep.subr.mxu0 0.0
    %1094 = vmatpush1.msra.mxu0 0.0
    %1095 = vmatprep.subr.mxu0 0.0
    %1096 = vmatpush1.msra.mxu0 0.0
    %1097 = vmatprep.subr.mxu0 0.0
    %1098 = vmatpush1.msra.mxu0 0.0
    %1099 = vmatprep.subr.mxu0 0.0
    %1100 = vmatpush1.msra.mxu0 0.0
    %1101 = vmatprep.subr.mxu0 0.0
    %1102 = vmatpush1.msra.mxu0 0.0
    %1103 = vmatprep.subr.mxu0 0.0
    %1104 = vmatpush1.msra.mxu0 0.0
    %1105 = vmatprep.subr.mxu0 0.0
    %1106 = vmatpush1.msra.mxu0 0.0
    %1107 = vmatprep.subr.mxu0 0.0
    %1108 = vmatpush1.msra.mxu0 0.0
    %1109 = vmatprep.subr.mxu0 0.0
    %1110 = vmatpush1.msra.mxu0 0.0
    %1111 = vmatprep.subr.mxu0 0.0
    %1112 = vmatpush1.msra.mxu0 0.0
    %1113 = vmatprep.subr.mxu0 0.0
    %1114 = vmatpush1.msra.mxu0 0.0
    %1115 = vmatprep.subr.mxu0 0.0
    %1116 = vmatpush1.msra.mxu0 0.0
    %1117 = vmatprep.subr.mxu0 0.0
    %1118 = vmatpush1.msra.mxu0 0.0
    %1119 = vmatprep.subr.mxu0 0.0
    %1120 = vmatpush1.msra.mxu0 0.0
    %1121 = vmatprep.subr.mxu0 0.0
    %1122 = vmatpush1.msra.mxu0 0.0
    %1123 = vmatprep.subr.mxu0 0.0
    %1124 = vmatpush1.msra.mxu0 0.0
    %1125 = vmatprep.subr.mxu0 0.0
    %1126 = vmatpush1.msra.mxu0 0.0
    %1127 = vmatprep.subr.mxu0 0.0
    %1128 = vmatpush1.msra.mxu0 0.0
    %1129 = vmatprep.subr.mxu0 0.0
    %1130 = vmatpush1.msra.mxu0 0.0
    %1131 = vmatprep.subr.mxu0 0.0
    %1132 = vmatpush1.msra.mxu0 0.0
    %1133 = vmatprep.subr.mxu0 0.0
    %1134 = vmatpush1.msra.mxu0 0.0
    %1135 = vmatprep.subr.mxu0 0.0
    %1136 = vmatpush1.msra.mxu0 0.0
    %1137 = vmatprep.subr.mxu0 0.0
    %1138 = vmatpush1.msra.mxu0 0.0
    %1139 = vmatprep.subr.mxu0 0.0
    %1140 = vmatpush1.msra.mxu0 0.0
    %1141 = vmatprep.subr.mxu0 0.0
    %1142 = vmatpush1.msra.mxu0 0.0
    %1143 = vmatprep.subr.mxu0 0.0
    %1144 = vmatpush1.msra.mxu0 0.0
    %1145 = vmatprep.subr.mxu0 0.0
    %1146 = vmatpush1.msra.mxu0 0.0
    %1147 = vmatprep.subr.mxu0 0.0
    %1148 = vmatpush1.msra.mxu0 0.0
    %1149 = vmatprep.subr.mxu0 0.0
    %1150 = vmatpush1.msra.mxu0 0.0
    %1151 = vmatprep.mubr.f32.mxu0 0.0
    %1152 = vmatmul.mubr.f32.gmra.mrb[0].mxu0 %v477
    %v1153 = vpop.f32.mrb[0].mxu0
    %v1154 = vadd.f32 0.0, %v1153
    %v1155 = vpop.f32.mrb[0].mxu0
    %1156 = vmatprep.mubr.f32.mxu0 0.0
    %1157 = vmatmul.mubr.f32.gmra.mrb[0].mxu0 %v480
    %v1158 = vpop.f32.mrb[0].mxu0
    %v1159 = vadd.f32 0.0, %v1158
    %v1160 = vpop.f32.mrb[0].mxu0
    %1161 = vdwg.mxu0
    %1162 = vmatprep.subr.mxu0 0.0
    %1163 = vmatpush1.msra.mxu0 %v1083
    %1164 = vmatprep.subr.mxu0 0.0
    %1165 = vmatpush1.msra.mxu0 %v1084
    %1166 = vmatprep.subr.mxu0 0.0
    %1167 = vmatpush1.msra.mxu0 0.0
    %1168 = vmatprep.subr.mxu0 0.0
    %1169 = vmatpush1.msra.mxu0 0.0
    %1170 = vmatprep.subr.mxu0 0.0
    %1171 = vmatpush1.msra.mxu0 0.0
    %1172 = vmatprep.subr.mxu0 0.0
    %1173 = vmatpush1.msra.mxu0 0.0
    %1174 = vmatprep.subr.mxu0 0.0
    %1175 = vmatpush1.msra.mxu0 0.0
    %1176 = vmatprep.subr.mxu0 0.0
    %1177 = vmatpush1.msra.mxu0 0.0
    %1178 = vmatprep.subr.mxu0 0.0
    %1179 = vmatpush1.msra.mxu0 0.0
    %1180 = vmatprep.subr.mxu0 0.0
    %1181 = vmatpush1.msra.mxu0 0.0
    %1182 = vmatprep.subr.mxu0 0.0
    %1183 = vmatpush1.msra.mxu0 0.0
    %1184 = vmatprep.subr.mxu0 0.0
    %1185 = vmatpush1.msra.mxu0 0.0
    %1186 = vmatprep.subr.mxu0 0.0
    %1187 = vmatpush1.msra.mxu0 0.0
    %1188 = vmatprep.subr.mxu0 0.0
    %1189 = vmatpush1.msra.mxu0 0.0
    %1190 = vmatprep.subr.mxu0 0.0
    %1191 = vmatpush1.msra.mxu0 0.0
    %1192 = vmatprep.subr.mxu0 0.0
    %1193 = vmatpush1.msra.mxu0 0.0
    %1194 = vmatprep.subr.mxu0 0.0
    %1195 = vmatpush1.msra.mxu0 0.0
    %1196 = vmatprep.subr.mxu0 0.0
    %1197 = vmatpush1.msra.mxu0 0.0
    %1198 = vmatprep.subr.mxu0 0.0
    %1199 = vmatpush1.msra.mxu0 0.0
    %1200 = vmatprep.subr.mxu0 0.0
    %1201 = vmatpush1.msra.mxu0 0.0
    %1202 = vmatprep.subr.mxu0 0.0
    %1203 = vmatpush1.msra.mxu0 0.0
    %1204 = vmatprep.subr.mxu0 0.0
    %1205 = vmatpush1.msra.mxu0 0.0
    %1206 = vmatprep.subr.mxu0 0.0
    %1207 = vmatpush1.msra.mxu0 0.0
    %1208 = vmatprep.subr.mxu0 0.0
    %1209 = vmatpush1.msra.mxu0 0.0
    %1210 = vmatprep.subr.mxu0 0.0
    %1211 = vmatpush1.msra.mxu0 0.0
    %1212 = vmatprep.subr.mxu0 0.0
    %1213 = vmatpush1.msra.mxu0 0.0
    %1214 = vmatprep.subr.mxu0 0.0
    %1215 = vmatpush1.msra.mxu0 0.0
    %1216 = vmatprep.subr.mxu0 0.0
    %1217 = vmatpush1.msra.mxu0 0.0
    %1218 = vmatprep.subr.mxu0 0.0
    %1219 = vmatpush1.msra.mxu0 0.0
    %1220 = vmatprep.subr.mxu0 0.0
    %1221 = vmatpush1.msra.mxu0 0.0
    %1222 = vmatprep.subr.mxu0 0.0
    %1223 = vmatpush1.msra.mxu0 0.0
    %1224 = vmatprep.subr.mxu0 0.0
    %1225 = vmatpush1.msra.mxu0 0.0
    %1226 = vmatprep.mubr.f32.mxu0 0.0
    %1227 = vmatmul.mubr.f32.gmra.mrb[0].mxu0 %v558
    %v1228 = vpop.f32.mrb[0].mxu0
    %v1229 = vadd.f32 %v1154, %v1228
    %v1230 = vpop.f32.mrb[0].mxu0
    %1231 = vmatprep.mubr.f32.mxu0 0.0
    %1232 = vmatmul.mubr.f32.gmra.mrb[0].mxu0 %v561
    %v1233 = vpop.f32.mrb[0].mxu0
    %v1234 = vadd.f32 %v1159, %v1233
    %v1235 = vpop.f32.mrb[0].mxu0
    %1236 = vdwg.mxu0
    %v1237 = vld [vmem:[%s3 + $0x60] sm:$0xff]
    %v1238 = vld [vmem:[%s3 + $0x68] sm:$0xff]
    %1239 = vmatprep.subr.mxu0 0.0
    %1240 = vmatpush1.msra.mxu0 %v1237
    %1241 = vmatprep.subr.mxu0 0.0
    %1242 = vmatpush1.msra.mxu0 %v1238
    %1243 = vmatprep.subr.mxu0 0.0
    %1244 = vmatpush1.msra.mxu0 0.0
    %1245 = vmatprep.subr.mxu0 0.0
    %1246 = vmatpush1.msra.mxu0 0.0
    %1247 = vmatprep.subr.mxu0 0.0
    %1248 = vmatpush1.msra.mxu0 0.0
    %1249 = vmatprep.subr.mxu0 0.0
    %1250 = vmatpush1.msra.mxu0 0.0
    %1251 = vmatprep.subr.mxu0 0.0
    %1252 = vmatpush1.msra.mxu0 0.0
    %1253 = vmatprep.subr.mxu0 0.0
    %1254 = vmatpush1.msra.mxu0 0.0
    %1255 = vmatprep.subr.mxu0 0.0
    %1256 = vmatpush1.msra.mxu0 0.0
    %1257 = vmatprep.subr.mxu0 0.0
    %1258 = vmatpush1.msra.mxu0 0.0
    %1259 = vmatprep.subr.mxu0 0.0
    %1260 = vmatpush1.msra.mxu0 0.0
    %1261 = vmatprep.subr.mxu0 0.0
    %1262 = vmatpush1.msra.mxu0 0.0
    %1263 = vmatprep.subr.mxu0 0.0
    %1264 = vmatpush1.msra.mxu0 0.0
    %1265 = vmatprep.subr.mxu0 0.0
    %1266 = vmatpush1.msra.mxu0 0.0
    %1267 = vmatprep.subr.mxu0 0.0
    %1268 = vmatpush1.msra.mxu0 0.0
    %1269 = vmatprep.subr.mxu0 0.0
    %1270 = vmatpush1.msra.mxu0 0.0
    %1271 = vmatprep.subr.mxu0 0.0
    %1272 = vmatpush1.msra.mxu0 0.0
    %1273 = vmatprep.subr.mxu0 0.0
    %1274 = vmatpush1.msra.mxu0 0.0
    %1275 = vmatprep.subr.mxu0 0.0
    %1276 = vmatpush1.msra.mxu0 0.0
    %1277 = vmatprep.subr.mxu0 0.0
    %1278 = vmatpush1.msra.mxu0 0.0
    %1279 = vmatprep.subr.mxu0 0.0
    %1280 = vmatpush1.msra.mxu0 0.0
    %1281 = vmatprep.subr.mxu0 0.0
    %1282 = vmatpush1.msra.mxu0 0.0
    %1283 = vmatprep.subr.mxu0 0.0
    %1284 = vmatpush1.msra.mxu0 0.0
    %1285 = vmatprep.subr.mxu0 0.0
    %1286 = vmatpush1.msra.mxu0 0.0
    %1287 = vmatprep.subr.mxu0 0.0
    %1288 = vmatpush1.msra.mxu0 0.0
    %1289 = vmatprep.subr.mxu0 0.0
    %1290 = vmatpush1.msra.mxu0 0.0
    %1291 = vmatprep.subr.mxu0 0.0
    %1292 = vmatpush1.msra.mxu0 0.0
    %1293 = vmatprep.subr.mxu0 0.0
    %1294 = vmatpush1.msra.mxu0 0.0
    %1295 = vmatprep.subr.mxu0 0.0
    %1296 = vmatpush1.msra.mxu0 0.0
    %1297 = vmatprep.subr.mxu0 0.0
    %1298 = vmatpush1.msra.mxu0 0.0
    %1299 = vmatprep.subr.mxu0 0.0
    %1300 = vmatpush1.msra.mxu0 0.0
    %1301 = vmatprep.subr.mxu0 0.0
    %1302 = vmatpush1.msra.mxu0 0.0
    %1303 = vmatprep.mubr.f32.mxu0 0.0
    %1304 = vmatmul.mubr.f32.gmra.mrb[0].mxu0 %v641
    %v1305 = vpop.f32.mrb[0].mxu0
    %v1306 = vadd.f32 0.0, %v1305
    %v1307 = vpop.f32.mrb[0].mxu0
    %1308 = vmatprep.mubr.f32.mxu0 0.0
    %1309 = vmatmul.mubr.f32.gmra.mrb[0].mxu0 %v644
    %v1310 = vpop.f32.mrb[0].mxu0
    %v1311 = vadd.f32 0.0, %v1310
    %v1312 = vpop.f32.mrb[0].mxu0
    %1313 = vdwg.mxu0
    %v1314 = vadd.f32 %v1229, %v1306
    %v1315 = vadd.f32 %v1234, %v1311
    %v1316 = vld [vmem:[%s3 + $0x70] sm:$0xff]
    %v1317 = vld [vmem:[%s3 + $0x78] sm:$0xff]
    %1318 = vmatprep.subr.mxu0 0.0
    %1319 = vmatpush1.msra.mxu0 %v1316
    %1320 = vmatprep.subr.mxu0 0.0
    %1321 = vmatpush1.msra.mxu0 %v1317
    %1322 = vmatprep.subr.mxu0 0.0
    %1323 = vmatpush1.msra.mxu0 0.0
    %1324 = vmatprep.subr.mxu0 0.0
    %1325 = vmatpush1.msra.mxu0 0.0
    %1326 = vmatprep.subr.mxu0 0.0
    %1327 = vmatpush1.msra.mxu0 0.0
    %1328 = vmatprep.subr.mxu0 0.0
    %1329 = vmatpush1.msra.mxu0 0.0
    %1330 = vmatprep.subr.mxu0 0.0
    %1331 = vmatpush1.msra.mxu0 0.0
    %1332 = vmatprep.subr.mxu0 0.0
    %1333 = vmatpush1.msra.mxu0 0.0
    %1334 = vmatprep.subr.mxu0 0.0
    %1335 = vmatpush1.msra.mxu0 0.0
    %1336 = vmatprep.subr.mxu0 0.0
    %1337 = vmatpush1.msra.mxu0 0.0
    %1338 = vmatprep.subr.mxu0 0.0
    %1339 = vmatpush1.msra.mxu0 0.0
    %1340 = vmatprep.subr.mxu0 0.0
    %1341 = vmatpush1.msra.mxu0 0.0
    %1342 = vmatprep.subr.mxu0 0.0
    %1343 = vmatpush1.msra.mxu0 0.0
    %1344 = vmatprep.subr.mxu0 0.0
    %1345 = vmatpush1.msra.mxu0 0.0
    %1346 = vmatprep.subr.mxu0 0.0
    %1347 = vmatpush1.msra.mxu0 0.0
    %1348 = vmatprep.subr.mxu0 0.0
    %1349 = vmatpush1.msra.mxu0 0.0
    %1350 = vmatprep.subr.mxu0 0.0
    %1351 = vmatpush1.msra.mxu0 0.0
    %1352 = vmatprep.subr.mxu0 0.0
    %1353 = vmatpush1.msra.mxu0 0.0
    %1354 = vmatprep.subr.mxu0 0.0
    %1355 = vmatpush1.msra.mxu0 0.0
    %1356 = vmatprep.subr.mxu0 0.0
    %1357 = vmatpush1.msra.mxu0 0.0
    %1358 = vmatprep.subr.mxu0 0.0
    %1359 = vmatpush1.msra.mxu0 0.0
    %1360 = vmatprep.subr.mxu0 0.0
    %1361 = vmatpush1.msra.mxu0 0.0
    %1362 = vmatprep.subr.mxu0 0.0
    %1363 = vmatpush1.msra.mxu0 0.0
    %1364 = vmatprep.subr.mxu0 0.0
    %1365 = vmatpush1.msra.mxu0 0.0
    %1366 = vmatprep.subr.mxu0 0.0
    %1367 = vmatpush1.msra.mxu0 0.0
    %1368 = vmatprep.subr.mxu0 0.0
    %1369 = vmatpush1.msra.mxu0 0.0
    %1370 = vmatprep.subr.mxu0 0.0
    %1371 = vmatpush1.msra.mxu0 0.0
    %1372 = vmatprep.subr.mxu0 0.0
    %1373 = vmatpush1.msra.mxu0 0.0
    %1374 = vmatprep.subr.mxu0 0.0
    %1375 = vmatpush1.msra.mxu0 0.0
    %1376 = vmatprep.subr.mxu0 0.0
    %1377 = vmatpush1.msra.mxu0 0.0
    %1378 = vmatprep.subr.mxu0 0.0
    %1379 = vmatpush1.msra.mxu0 0.0
    %1380 = vmatprep.subr.mxu0 0.0
    %1381 = vmatpush1.msra.mxu0 0.0
    %1382 = vmatprep.mubr.f32.mxu0 0.0
    %1383 = vmatmul.mubr.f32.gmra.mrb[0].mxu0 %v726
    %v1384 = vpop.f32.mrb[0].mxu0
    %v1385 = vadd.f32 0.0, %v1384
    %v1386 = vpop.f32.mrb[0].mxu0
    %1387 = vmatprep.mubr.f32.mxu0 0.0
    %1388 = vmatmul.mubr.f32.gmra.mrb[0].mxu0 %v729
    %v1389 = vpop.f32.mrb[0].mxu0
    %v1390 = vadd.f32 0.0, %v1389
    %v1391 = vpop.f32.mrb[0].mxu0
    %1392 = vdwg.mxu0
    %v1393 = vadd.f32 %v1314, %v1385
    %v1394 = vadd.f32 %v1315, %v1390
    %v1396 = vsel %vm475, %v362, 0
    %v1399 = vsel %vm475, %v367, 0
    %1401 = vmatprep.subr.mxu0 0.0
    %1402 = vmatpush1.msra.mxu0 %v1393
    %1403 = vmatprep.subr.mxu0 0.0
    %1404 = vmatpush1.msra.mxu0 %v1394
    %1405 = vmatprep.subr.mxu0 0.0
    %1406 = vmatpush1.msra.mxu0 0.0
    %1407 = vmatprep.subr.mxu0 0.0
    %1408 = vmatpush1.msra.mxu0 0.0
    %1409 = vmatprep.subr.mxu0 0.0
    %1410 = vmatpush1.msra.mxu0 0.0
    %1411 = vmatprep.subr.mxu0 0.0
    %1412 = vmatpush1.msra.mxu0 0.0
    %1413 = vmatprep.subr.mxu0 0.0
    %1414 = vmatpush1.msra.mxu0 0.0
    %1415 = vmatprep.subr.mxu0 0.0
    %1416 = vmatpush1.msra.mxu0 0.0
    %1417 = vmatprep.subr.mxu0 0.0
    %1418 = vmatpush1.msra.mxu0 0.0
    %1419 = vmatprep.subr.mxu0 0.0
    %1420 = vmatpush1.msra.mxu0 0.0
    %1421 = vmatprep.subr.mxu0 0.0
    %1422 = vmatpush1.msra.mxu0 0.0
    %1423 = vmatprep.subr.mxu0 0.0
    %1424 = vmatpush1.msra.mxu0 0.0
    %1425 = vmatprep.subr.mxu0 0.0
    %1426 = vmatpush1.msra.mxu0 0.0
    %1427 = vmatprep.subr.mxu0 0.0
    %1428 = vmatpush1.msra.mxu0 0.0
    %1429 = vmatprep.subr.mxu0 0.0
    %1430 = vmatpush1.msra.mxu0 0.0
    %1431 = vmatprep.subr.mxu0 0.0
    %1432 = vmatpush1.msra.mxu0 0.0
    %1433 = vmatprep.subr.mxu0 0.0
    %1434 = vmatpush1.msra.mxu0 0.0
    %1435 = vmatprep.subr.mxu0 0.0
    %1436 = vmatpush1.msra.mxu0 0.0
    %1437 = vmatprep.subr.mxu0 0.0
    %1438 = vmatpush1.msra.mxu0 0.0
    %1439 = vmatprep.subr.mxu0 0.0
    %1440 = vmatpush1.msra.mxu0 0.0
    %1441 = vmatprep.subr.mxu0 0.0
    %1442 = vmatpush1.msra.mxu0 0.0
    %1443 = vmatprep.subr.mxu0 0.0
    %1444 = vmatpush1.msra.mxu0 0.0
    %1445 = vmatprep.subr.mxu0 0.0
    %1446 = vmatpush1.msra.mxu0 0.0
    %1447 = vmatprep.subr.mxu0 0.0
    %1448 = vmatpush1.msra.mxu0 0.0
    %1449 = vmatprep.subr.mxu0 0.0
    %1450 = vmatpush1.msra.mxu0 0.0
    %1451 = vmatprep.subr.mxu0 0.0
    %1452 = vmatpush1.msra.mxu0 0.0
    %1453 = vmatprep.subr.mxu0 0.0
    %1454 = vmatpush1.msra.mxu0 0.0
    %1455 = vmatprep.subr.mxu0 0.0
    %1456 = vmatpush1.msra.mxu0 0.0
    %1457 = vmatprep.subr.mxu0 0.0
    %1458 = vmatpush1.msra.mxu0 0.0
    %1459 = vmatprep.subr.mxu0 0.0
    %1460 = vmatpush1.msra.mxu0 0.0
    %1461 = vmatprep.subr.mxu0 0.0
    %1462 = vmatpush1.msra.mxu0 0.0
    %1463 = vmatprep.subr.mxu0 0.0
    %1464 = vmatpush1.msra.mxu0 0.0
    %1465 = vmatprep.mubr.f32.mxu0 0.0
    %1466 = vmatmul.mubr.f32.gmra.mrb[0].mxu0 %v1396
    %v1467 = vpop.f32.mrb[0].mxu0
    %v1468 = vadd.f32 0.0, %v1467
    %v1469 = vpop.f32.mrb[0].mxu0
    %1470 = vmatprep.mubr.f32.mxu0 0.0
    %1471 = vmatmul.mubr.f32.gmra.mrb[0].mxu0 %v1399
    %v1472 = vpop.f32.mrb[0].mxu0
    %v1473 = vadd.f32 0.0, %v1472
    %v1474 = vpop.f32.mrb[0].mxu0
    %1475 = vdwg.mxu0
    %v1476 = vsel %vm475, %v1468, -inf
    %1477 = vmax.xlane.f32.xlu0 %v1476
    %v1478 = vpop.xlane.xlu0 %1477
    %v1479 = vsel %vm475, %v1473, -inf
    %1480 = vmax.xlane.f32.xlu0 %v1479
    %v1481 = vpop.xlane.xlu0 %1480
    %v1482 = vsub.f32 %v1468, %v1478
    %v1483 = vsub.f32 %v1473, %v1481
    %v1484 = vmul.f32 %v1482, 1.442695
    %v1485 = vpow.pop %v1484
    %v1486 = vmul.f32 %v1483, 1.442695
    %v1487 = vpow.pop %v1486
    %v1488 = vsel %vm475, %v1485, 0.0
    %1489 = vadd.xlane.f32.xlu0 %v1488
    %v1490 = vpop.xlane.xlu0 %1489
    %v1491 = vsel %vm475, %v1487, 0.0
    %1492 = vadd.xlane.f32.xlu0 %v1491
    %v1493 = vpop.xlane.xlu0 %1492
    %v1494 = vrcp.pop %v1490
    %v1495 = vrcp.pop %v1493
    %v1496 = vmul.f32 %v1485, %v1494
    %v1497 = vmul.f32 %v1487, %v1495
    %v1499 = vsel %vm475, %v1496, 0
    %v1502 = vsel %vm475, %v1497, 0
    %1504 = vmatprep.subr.mxu0 0.0
    %1505 = vmatpush1.msra.mxu0 %v442
    %1506 = vmatprep.subr.mxu0 0.0
    %1507 = vmatpush1.msra.mxu0 %v447
    %1508 = vmatprep.subr.mxu0 0.0
    %1509 = vmatpush1.msra.mxu0 0.0
    %1510 = vmatprep.subr.mxu0 0.0
    %1511 = vmatpush1.msra.mxu0 0.0
    %1512 = vmatprep.subr.mxu0 0.0
    %1513 = vmatpush1.msra.mxu0 0.0
    %1514 = vmatprep.subr.mxu0 0.0
    %1515 = vmatpush1.msra.mxu0 0.0
    %1516 = vmatprep.subr.mxu0 0.0
    %1517 = vmatpush1.msra.mxu0 0.0
    %1518 = vmatprep.subr.mxu0 0.0
    %1519 = vmatpush1.msra.mxu0 0.0
    %1520 = vmatprep.subr.mxu0 0.0
    %1521 = vmatpush1.msra.mxu0 0.0
    %1522 = vmatprep.subr.mxu0 0.0
    %1523 = vmatpush1.msra.mxu0 0.0
    %1524 = vmatprep.subr.mxu0 0.0
    %1525 = vmatpush1.msra.mxu0 0.0
    %1526 = vmatprep.subr.mxu0 0.0
    %1527 = vmatpush1.msra.mxu0 0.0
    %1528 = vmatprep.subr.mxu0 0.0
    %1529 = vmatpush1.msra.mxu0 0.0
    %1530 = vmatprep.subr.mxu0 0.0
    %1531 = vmatpush1.msra.mxu0 0.0
    %1532 = vmatprep.subr.mxu0 0.0
    %1533 = vmatpush1.msra.mxu0 0.0
    %1534 = vmatprep.subr.mxu0 0.0
    %1535 = vmatpush1.msra.mxu0 0.0
    %1536 = vmatprep.subr.mxu0 0.0
    %1537 = vmatpush1.msra.mxu0 0.0
    %1538 = vmatprep.subr.mxu0 0.0
    %1539 = vmatpush1.msra.mxu0 0.0
    %1540 = vmatprep.subr.mxu0 0.0
    %1541 = vmatpush1.msra.mxu0 0.0
    %1542 = vmatprep.subr.mxu0 0.0
    %1543 = vmatpush1.msra.mxu0 0.0
    %1544 = vmatprep.subr.mxu0 0.0
    %1545 = vmatpush1.msra.mxu0 0.0
    %1546 = vmatprep.subr.mxu0 0.0
    %1547 = vmatpush1.msra.mxu0 0.0
    %1548 = vmatprep.subr.mxu0 0.0
    %1549 = vmatpush1.msra.mxu0 0.0
    %1550 = vmatprep.subr.mxu0 0.0
    %1551 = vmatpush1.msra.mxu0 0.0
    %1552 = vmatprep.subr.mxu0 0.0
    %1553 = vmatpush1.msra.mxu0 0.0
    %1554 = vmatprep.subr.mxu0 0.0
    %1555 = vmatpush1.msra.mxu0 0.0
    %1556 = vmatprep.subr.mxu0 0.0
    %1557 = vmatpush1.msra.mxu0 0.0
    %1558 = vmatprep.subr.mxu0 0.0
    %1559 = vmatpush1.msra.mxu0 0.0
    %1560 = vmatprep.subr.mxu0 0.0
    %1561 = vmatpush1.msra.mxu0 0.0
    %1562 = vmatprep.subr.mxu0 0.0
    %1563 = vmatpush1.msra.mxu0 0.0
    %1564 = vmatprep.subr.mxu0 0.0
    %1565 = vmatpush1.msra.mxu0 0.0
    %1566 = vmatprep.subr.mxu0 0.0
    %1567 = vmatpush1.msra.mxu0 0.0
    %1568 = vmatprep.mubr.f32.mxu0 0.0
    %1569 = vmatmul.mubr.f32.gmra.mrb[0].mxu0 %v1499
    %v1570 = vpop.f32.mrb[0].mxu0
    %v1571 = vadd.f32 0.0, %v1570
    %v1572 = vpop.f32.mrb[0].mxu0
    %1573 = vmatprep.mubr.f32.mxu0 0.0
    %1574 = vmatmul.mubr.f32.gmra.mrb[0].mxu0 %v1502
    %v1575 = vpop.f32.mrb[0].mxu0
    %v1576 = vadd.f32 0.0, %v1575
    %v1577 = vpop.f32.mrb[0].mxu0
    %1578 = vdwg.mxu0
    %v1579 = vld [vmem:[%s4 + $0x10] sm:$0xff]
    %v1580 = vld [vmem:[%s4 + $0x18] sm:$0xff]
    %v1582 = vsel %vm475, %v1571, 0
    %v1585 = vsel %vm475, %v1576, 0
    %1587 = vmatprep.subr.mxu0 0.0
    %1588 = vmatpush1.msra.mxu0 %v1579
    %1589 = vmatprep.subr.mxu0 0.0
    %1590 = vmatpush1.msra.mxu0 %v1580
    %1591 = vmatprep.subr.mxu0 0.0
    %1592 = vmatpush1.msra.mxu0 0.0
    %1593 = vmatprep.subr.mxu0 0.0
    %1594 = vmatpush1.msra.mxu0 0.0
    %1595 = vmatprep.subr.mxu0 0.0
    %1596 = vmatpush1.msra.mxu0 0.0
    %1597 = vmatprep.subr.mxu0 0.0
    %1598 = vmatpush1.msra.mxu0 0.0
    %1599 = vmatprep.subr.mxu0 0.0
    %1600 = vmatpush1.msra.mxu0 0.0
    %1601 = vmatprep.subr.mxu0 0.0
    %1602 = vmatpush1.msra.mxu0 0.0
    %1603 = vmatprep.subr.mxu0 0.0
    %1604 = vmatpush1.msra.mxu0 0.0
    %1605 = vmatprep.subr.mxu0 0.0
    %1606 = vmatpush1.msra.mxu0 0.0
    %1607 = vmatprep.subr.mxu0 0.0
    %1608 = vmatpush1.msra.mxu0 0.0
    %1609 = vmatprep.subr.mxu0 0.0
    %1610 = vmatpush1.msra.mxu0 0.0
    %1611 = vmatprep.subr.mxu0 0.0
    %1612 = vmatpush1.msra.mxu0 0.0
    %1613 = vmatprep.subr.mxu0 0.0
    %1614 = vmatpush1.msra.mxu0 0.0
    %1615 = vmatprep.subr.mxu0 0.0
    %1616 = vmatpush1.msra.mxu0 0.0
    %1617 = vmatprep.subr.mxu0 0.0
    %1618 = vmatpush1.msra.mxu0 0.0
    %1619 = vmatprep.subr.mxu0 0.0
    %1620 = vmatpush1.msra.mxu0 0.0
    %1621 = vmatprep.subr.mxu0 0.0
    %1622 = vmatpush1.msra.mxu0 0.0
    %1623 = vmatprep.subr.mxu0 0.0
    %1624 = vmatpush1.msra.mxu0 0.0
    %1625 = vmatprep.subr.mxu0 0.0
    %1626 = vmatpush1.msra.mxu0 0.0
    %1627 = vmatprep.subr.mxu0 0.0
    %1628 = vmatpush1.msra.mxu0 0.0
    %1629 = vmatprep.subr.mxu0 0.0
    %1630 = vmatpush1.msra.mxu0 0.0
    %1631 = vmatprep.subr.mxu0 0.0
    %1632 = vmatpush1.msra.mxu0 0.0
    %1633 = vmatprep.subr.mxu0 0.0
    %1634 = vmatpush1.msra.mxu0 0.0
    %1635 = vmatprep.subr.mxu0 0.0
    %1636 = vmatpush1.msra.mxu0 0.0
    %1637 = vmatprep.subr.mxu0 0.0
    %1638 = vmatpush1.msra.mxu0 0.0
    %1639 = vmatprep.subr.mxu0 0.0
    %1640 = vmatpush1.msra.mxu0 0.0
    %1641 = vmatprep.subr.mxu0 0.0
    %1642 = vmatpush1.msra.mxu0 0.0
    %1643 = vmatprep.subr.mxu0 0.0
    %1644 = vmatpush1.msra.mxu0 0.0
    %1645 = vmatprep.subr.mxu0 0.0
    %1646 = vmatpush1.msra.mxu0 0.0
    %1647 = vmatprep.subr.mxu0 0.0
    %1648 = vmatpush1.msra.mxu0 0.0
    %1649 = vmatprep.subr.mxu0 0.0
    %1650 = vmatpush1.msra.mxu0 0.0
    %1651 = vmatprep.mubr.f32.mxu0 0.0
    %1652 = vmatmul.mubr.f32.gmra.mrb[0].mxu0 %v1582
    %v1653 = vpop.f32.mrb[0].mxu0
    %v1654 = vadd.f32 0.0, %v1653
    %v1655 = vpop.f32.mrb[0].mxu0
    %1656 = vmatprep.mubr.f32.mxu0 0.0
    %1657 = vmatmul.mubr.f32.gmra.mrb[0].mxu0 %v1585
    %v1658 = vpop.f32.mrb[0].mxu0
    %v1659 = vadd.f32 0.0, %v1658
    %v1660 = vpop.f32.mrb[0].mxu0
    %1661 = vdwg.mxu0
    %v1662 = vadd.f32 %v1081, %v1654
    %v1663 = vadd.f32 %v1082, %v1659
    %v1664 = vld [vmem:[%s3 + $0x80] sm:$0xff]
    %v1665 = vld [vmem:[%s3 + $0x88] sm:$0xff]
    %v1666 = vld [vmem:[%s3 + $0x90] sm:$0xff]
    %v1667 = vld [vmem:[%s3 + $0x98] sm:$0xff]
    %1668 = vmatprep.subr.mxu0 0.0
    %1669 = vmatpush1.msra.mxu0 %v1666
    %1670 = vmatprep.subr.mxu0 0.0
    %1671 = vmatpush1.msra.mxu0 %v1667
    %1672 = vmatprep.subr.mxu0 0.0
    %1673 = vmatpush1.msra.mxu0 0.0
    %1674 = vmatprep.subr.mxu0 0.0
    %1675 = vmatpush1.msra.mxu0 0.0
    %1676 = vmatprep.subr.mxu0 0.0
    %1677 = vmatpush1.msra.mxu0 0.0
    %1678 = vmatprep.subr.mxu0 0.0
    %1679 = vmatpush1.msra.mxu0 0.0
    %1680 = vmatprep.subr.mxu0 0.0
    %1681 = vmatpush1.msra.mxu0 0.0
    %1682 = vmatprep.subr.mxu0 0.0
    %1683 = vmatpush1.msra.mxu0 0.0
    %1684 = vmatprep.subr.mxu0 0.0
    %1685 = vmatpush1.msra.mxu0 0.0
    %1686 = vmatprep.subr.mxu0 0.0
    %1687 = vmatpush1.msra.mxu0 0.0
    %1688 = vmatprep.subr.mxu0 0.0
    %1689 = vmatpush1.msra.mxu0 0.0
    %1690 = vmatprep.subr.mxu0 0.0
    %1691 = vmatpush1.msra.mxu0 0.0
    %1692 = vmatprep.subr.mxu0 0.0
    %1693 = vmatpush1.msra.mxu0 0.0
    %1694 = vmatprep.subr.mxu0 0.0
    %1695 = vmatpush1.msra.mxu0 0.0
    %1696 = vmatprep.subr.mxu0 0.0
    %1697 = vmatpush1.msra.mxu0 0.0
    %1698 = vmatprep.subr.mxu0 0.0
    %1699 = vmatpush1.msra.mxu0 0.0
    %1700 = vmatprep.subr.mxu0 0.0
    %1701 = vmatpush1.msra.mxu0 0.0
    %1702 = vmatprep.subr.mxu0 0.0
    %1703 = vmatpush1.msra.mxu0 0.0
    %1704 = vmatprep.subr.mxu0 0.0
    %1705 = vmatpush1.msra.mxu0 0.0
    %1706 = vmatprep.subr.mxu0 0.0
    %1707 = vmatpush1.msra.mxu0 0.0
    %1708 = vmatprep.subr.mxu0 0.0
    %1709 = vmatpush1.msra.mxu0 0.0
    %1710 = vmatprep.subr.mxu0 0.0
    %1711 = vmatpush1.msra.mxu0 0.0
    %1712 = vmatprep.subr.mxu0 0.0
    %1713 = vmatpush1.msra.mxu0 0.0
    %1714 = vmatprep.subr.mxu0 0.0
    %1715 = vmatpush1.msra.mxu0 0.0
    %1716 = vmatprep.subr.mxu0 0.0
    %1717 = vmatpush1.msra.mxu0 0.0
    %1718 = vmatprep.subr.mxu0 0.0
    %1719 = vmatpush1.msra.mxu0 0.0
    %1720 = vmatprep.subr.mxu0 0.0
    %1721 = vmatpush1.msra.mxu0 0.0
    %1722 = vmatprep.subr.mxu0 0.0
    %1723 = vmatpush1.msra.mxu0 0.0
    %1724 = vmatprep.subr.mxu0 0.0
    %1725 = vmatpush1.msra.mxu0 0.0
    %1726 = vmatprep.subr.mxu0 0.0
    %1727 = vmatpush1.msra.mxu0 0.0
    %1728 = vmatprep.subr.mxu0 0.0
    %1729 = vmatpush1.msra.mxu0 0.0
    %1730 = vmatprep.subr.mxu0 0.0
    %1731 = vmatpush1.msra.mxu0 0.0
    %1732 = vmatprep.mubr.f32.mxu0 0.0
    %1733 = vmatmul.mubr.f32.gmra.mrb[0].mxu0 %v477
    %v1734 = vpop.f32.mrb[0].mxu0
    %v1735 = vadd.f32 0.0, %v1734
    %v1736 = vpop.f32.mrb[0].mxu0
    %1737 = vmatprep.mubr.f32.mxu0 0.0
    %1738 = vmatmul.mubr.f32.gmra.mrb[0].mxu0 %v480
    %v1739 = vpop.f32.mrb[0].mxu0
    %v1740 = vadd.f32 0.0, %v1739
    %v1741 = vpop.f32.mrb[0].mxu0
    %1742 = vdwg.mxu0
    %1743 = vmatprep.subr.mxu0 0.0
    %1744 = vmatpush1.msra.mxu0 %v1664
    %1745 = vmatprep.subr.mxu0 0.0
    %1746 = vmatpush1.msra.mxu0 %v1665
    %1747 = vmatprep.subr.mxu0 0.0
    %1748 = vmatpush1.msra.mxu0 0.0
    %1749 = vmatprep.subr.mxu0 0.0
    %1750 = vmatpush1.msra.mxu0 0.0
    %1751 = vmatprep.subr.mxu0 0.0
    %1752 = vmatpush1.msra.mxu0 0.0
    %1753 = vmatprep.subr.mxu0 0.0
    %1754 = vmatpush1.msra.mxu0 0.0
    %1755 = vmatprep.subr.mxu0 0.0
    %1756 = vmatpush1.msra.mxu0 0.0
    %1757 = vmatprep.subr.mxu0 0.0
    %1758 = vmatpush1.msra.mxu0 0.0
    %1759 = vmatprep.subr.mxu0 0.0
    %1760 = vmatpush1.msra.mxu0 0.0
    %1761 = vmatprep.subr.mxu0 0.0
    %1762 = vmatpush1.msra.mxu0 0.0
    %1763 = vmatprep.subr.mxu0 0.0
    %1764 = vmatpush1.msra.mxu0 0.0
    %1765 = vmatprep.subr.mxu0 0.0
    %1766 = vmatpush1.msra.mxu0 0.0
    %1767 = vmatprep.subr.mxu0 0.0
    %1768 = vmatpush1.msra.mxu0 0.0
    %1769 = vmatprep.subr.mxu0 0.0
    %1770 = vmatpush1.msra.mxu0 0.0
    %1771 = vmatprep.subr.mxu0 0.0
    %1772 = vmatpush1.msra.mxu0 0.0
    %1773 = vmatprep.subr.mxu0 0.0
    %1774 = vmatpush1.msra.mxu0 0.0
    %1775 = vmatprep.subr.mxu0 0.0
    %1776 = vmatpush1.msra.mxu0 0.0
    %1777 = vmatprep.subr.mxu0 0.0
    %1778 = vmatpush1.msra.mxu0 0.0
    %1779 = vmatprep.subr.mxu0 0.0
    %1780 = vmatpush1.msra.mxu0 0.0
    %1781 = vmatprep.subr.mxu0 0.0
    %1782 = vmatpush1.msra.mxu0 0.0
    %1783 = vmatprep.subr.mxu0 0.0
    %1784 = vmatpush1.msra.mxu0 0.0
    %1785 = vmatprep.subr.mxu0 0.0
    %1786 = vmatpush1.msra.mxu0 0.0
    %1787 = vmatprep.subr.mxu0 0.0
    %1788 = vmatpush1.msra.mxu0 0.0
    %1789 = vmatprep.subr.mxu0 0.0
    %1790 = vmatpush1.msra.mxu0 0.0
    %1791 = vmatprep.subr.mxu0 0.0
    %1792 = vmatpush1.msra.mxu0 0.0
    %1793 = vmatprep.subr.mxu0 0.0
    %1794 = vmatpush1.msra.mxu0 0.0
    %1795 = vmatprep.subr.mxu0 0.0
    %1796 = vmatpush1.msra.mxu0 0.0
    %1797 = vmatprep.subr.mxu0 0.0
    %1798 = vmatpush1.msra.mxu0 0.0
    %1799 = vmatprep.subr.mxu0 0.0
    %1800 = vmatpush1.msra.mxu0 0.0
    %1801 = vmatprep.subr.mxu0 0.0
    %1802 = vmatpush1.msra.mxu0 0.0
    %1803 = vmatprep.subr.mxu0 0.0
    %1804 = vmatpush1.msra.mxu0 0.0
    %1805 = vmatprep.subr.mxu0 0.0
    %1806 = vmatpush1.msra.mxu0 0.0
    %1807 = vmatprep.mubr.f32.mxu0 0.0
    %1808 = vmatmul.mubr.f32.gmra.mrb[0].mxu0 %v558
    %v1809 = vpop.f32.mrb[0].mxu0
    %v1810 = vadd.f32 %v1735, %v1809
    %v1811 = vpop.f32.mrb[0].mxu0
    %1812 = vmatprep.mubr.f32.mxu0 0.0
    %1813 = vmatmul.mubr.f32.gmra.mrb[0].mxu0 %v561
    %v1814 = vpop.f32.mrb[0].mxu0
    %v1815 = vadd.f32 %v1740, %v1814
    %v1816 = vpop.f32.mrb[0].mxu0
    %1817 = vdwg.mxu0
    %v1818 = vld [vmem:[%s3 + $0xa0] sm:$0xff]
    %v1819 = vld [vmem:[%s3 + $0xa8] sm:$0xff]
    %1820 = vmatprep.subr.mxu0 0.0
    %1821 = vmatpush1.msra.mxu0 %v1818
    %1822 = vmatprep.subr.mxu0 0.0
    %1823 = vmatpush1.msra.mxu0 %v1819
    %1824 = vmatprep.subr.mxu0 0.0
    %1825 = vmatpush1.msra.mxu0 0.0
    %1826 = vmatprep.subr.mxu0 0.0
    %1827 = vmatpush1.msra.mxu0 0.0
    %1828 = vmatprep.subr.mxu0 0.0
    %1829 = vmatpush1.msra.mxu0 0.0
    %1830 = vmatprep.subr.mxu0 0.0
    %1831 = vmatpush1.msra.mxu0 0.0
    %1832 = vmatprep.subr.mxu0 0.0
    %1833 = vmatpush1.msra.mxu0 0.0
    %1834 = vmatprep.subr.mxu0 0.0
    %1835 = vmatpush1.msra.mxu0 0.0
    %1836 = vmatprep.subr.mxu0 0.0
    %1837 = vmatpush1.msra.mxu0 0.0
    %1838 = vmatprep.subr.mxu0 0.0
    %1839 = vmatpush1.msra.mxu0 0.0
    %1840 = vmatprep.subr.mxu0 0.0
    %1841 = vmatpush1.msra.mxu0 0.0
    %1842 = vmatprep.subr.mxu0 0.0
    %1843 = vmatpush1.msra.mxu0 0.0
    %1844 = vmatprep.subr.mxu0 0.0
    %1845 = vmatpush1.msra.mxu0 0.0
    %1846 = vmatprep.subr.mxu0 0.0
    %1847 = vmatpush1.msra.mxu0 0.0
    %1848 = vmatprep.subr.mxu0 0.0
    %1849 = vmatpush1.msra.mxu0 0.0
    %1850 = vmatprep.subr.mxu0 0.0
    %1851 = vmatpush1.msra.mxu0 0.0
    %1852 = vmatprep.subr.mxu0 0.0
    %1853 = vmatpush1.msra.mxu0 0.0
    %1854 = vmatprep.subr.mxu0 0.0
    %1855 = vmatpush1.msra.mxu0 0.0
    %1856 = vmatprep.subr.mxu0 0.0
    %1857 = vmatpush1.msra.mxu0 0.0
    %1858 = vmatprep.subr.mxu0 0.0
    %1859 = vmatpush1.msra.mxu0 0.0
    %1860 = vmatprep.subr.mxu0 0.0
    %1861 = vmatpush1.msra.mxu0 0.0
    %1862 = vmatprep.subr.mxu0 0.0
    %1863 = vmatpush1.msra.mxu0 0.0
    %1864 = vmatprep.subr.mxu0 0.0
    %1865 = vmatpush1.msra.mxu0 0.0
    %1866 = vmatprep.subr.mxu0 0.0
    %1867 = vmatpush1.msra.mxu0 0.0
    %1868 = vmatprep.subr.mxu0 0.0
    %1869 = vmatpush1.msra.mxu0 0.0
    %1870 = vmatprep.subr.mxu0 0.0
    %1871 = vmatpush1.msra.mxu0 0.0
    %1872 = vmatprep.subr.mxu0 0.0
    %1873 = vmatpush1.msra.mxu0 0.0
    %1874 = vmatprep.subr.mxu0 0.0
    %1875 = vmatpush1.msra.mxu0 0.0
    %1876 = vmatprep.subr.mxu0 0.0
    %1877 = vmatpush1.msra.mxu0 0.0
    %1878 = vmatprep.subr.mxu0 0.0
    %1879 = vmatpush1.msra.mxu0 0.0
    %1880 = vmatprep.subr.mxu0 0.0
    %1881 = vmatpush1.msra.mxu0 0.0
    %1882 = vmatprep.subr.mxu0 0.0
    %1883 = vmatpush1.msra.mxu0 0.0
    %1884 = vmatprep.mubr.f32.mxu0 0.0
    %1885 = vmatmul.mubr.f32.gmra.mrb[0].mxu0 %v641
    %v1886 = vpop.f32.mrb[0].mxu0
    %v1887 = vadd.f32 0.0, %v1886
    %v1888 = vpop.f32.mrb[0].mxu0
    %1889 = vmatprep.mubr.f32.mxu0 0.0
    %1890 = vmatmul.mubr.f32.gmra.mrb[0].mxu0 %v644
    %v1891 = vpop.f32.mrb[0].mxu0
    %v1892 = vadd.f32 0.0, %v1891
    %v1893 = vpop.f32.mrb[0].mxu0
    %1894 = vdwg.mxu0
    %v1895 = vadd.f32 %v1810, %v1887
    %v1896 = vadd.f32 %v1815, %v1892
    %v1897 = vld [vmem:[%s3 + $0xb0] sm:$0xff]
    %v1898 = vld [vmem:[%s3 + $0xb8] sm:$0xff]
    %1899 = vmatprep.subr.mxu0 0.0
    %1900 = vmatpush1.msra.mxu0 %v1897
    %1901 = vmatprep.subr.mxu0 0.0
    %1902 = vmatpush1.msra.mxu0 %v1898
    %1903 = vmatprep.subr.mxu0 0.0
    %1904 = vmatpush1.msra.mxu0 0.0
    %1905 = vmatprep.subr.mxu0 0.0
    %1906 = vmatpush1.msra.mxu0 0.0
    %1907 = vmatprep.subr.mxu0 0.0
    %1908 = vmatpush1.msra.mxu0 0.0
    %1909 = vmatprep.subr.mxu0 0.0
    %1910 = vmatpush1.msra.mxu0 0.0
    %1911 = vmatprep.subr.mxu0 0.0
    %1912 = vmatpush1.msra.mxu0 0.0
    %1913 = vmatprep.subr.mxu0 0.0
    %1914 = vmatpush1.msra.mxu0 0.0
    %1915 = vmatprep.subr.mxu0 0.0
    %1916 = vmatpush1.msra.mxu0 0.0
    %1917 = vmatprep.subr.mxu0 0.0
    %1918 = vmatpush1.msra.mxu0 0.0
    %1919 = vmatprep.subr.mxu0 0.0
    %1920 = vmatpush1.msra.mxu0 0.0
    %1921 = vmatprep.subr.mxu0 0.0
    %1922 = vmatpush1.msra.mxu0 0.0
    %1923 = vmatprep.subr.mxu0 0.0
    %1924 = vmatpush1.msra.mxu0 0.0
    %1925 = vmatprep.subr.mxu0 0.0
    %1926 = vmatpush1.msra.mxu0 0.0
    %1927 = vmatprep.subr.mxu0 0.0
    %1928 = vmatpush1.msra.mxu0 0.0
    %1929 = vmatprep.subr.mxu0 0.0
    %1930 = vmatpush1.msra.mxu0 0.0
    %1931 = vmatprep.subr.mxu0 0.0
    %1932 = vmatpush1.msra.mxu0 0.0
    %1933 = vmatprep.subr.mxu0 0.0
    %1934 = vmatpush1.msra.mxu0 0.0
    %1935 = vmatprep.subr.mxu0 0.0
    %1936 = vmatpush1.msra.mxu0 0.0
    %1937 = vmatprep.subr.mxu0 0.0
    %1938 = vmatpush1.msra.mxu0 0.0
    %1939 = vmatprep.subr.mxu0 0.0
    %1940 = vmatpush1.msra.mxu0 0.0
    %1941 = vmatprep.subr.mxu0 0.0
    %1942 = vmatpush1.msra.mxu0 0.0
    %1943 = vmatprep.subr.mxu0 0.0
    %1944 = vmatpush1.msra.mxu0 0.0
    %1945 = vmatprep.subr.mxu0 0.0
    %1946 = vmatpush1.msra.mxu0 0.0
    %1947 = vmatprep.subr.mxu0 0.0
    %1948 = vmatpush1.msra.mxu0 0.0
    %1949 = vmatprep.subr.mxu0 0.0
    %1950 = vmatpush1.msra.mxu0 0.0
    %1951 = vmatprep.subr.mxu0 0.0
    %1952 = vmatpush1.msra.mxu0 0.0
    %1953 = vmatprep.subr.mxu0 0.0
    %1954 = vmatpush1.msra.mxu0 0.0
    %1955 = vmatprep.subr.mxu0 0.0
    %1956 = vmatpush1.msra.mxu0 0.0
    %1957 = vmatprep.subr.mxu0 0.0
    %1958 = vmatpush1.msra.mxu0 0.0
    %1959 = vmatprep.subr.mxu0 0.0
    %1960 = vmatpush1.msra.mxu0 0.0
    %1961 = vmatprep.subr.mxu0 0.0
    %1962 = vmatpush1.msra.mxu0 0.0
    %1963 = vmatprep.mubr.f32.mxu0 0.0
    %1964 = vmatmul.mubr.f32.gmra.mrb[0].mxu0 %v726
    %v1965 = vpop.f32.mrb[0].mxu0
    %v1966 = vadd.f32 0.0, %v1965
    %v1967 = vpop.f32.mrb[0].mxu0
    %1968 = vmatprep.mubr.f32.mxu0 0.0
    %1969 = vmatmul.mubr.f32.gmra.mrb[0].mxu0 %v729
    %v1970 = vpop.f32.mrb[0].mxu0
    %v1971 = vadd.f32 0.0, %v1970
    %v1972 = vpop.f32.mrb[0].mxu0
    %1973 = vdwg.mxu0
    %v1974 = vadd.f32 %v1895, %v1966
    %v1975 = vadd.f32 %v1896, %v1971
    %v1977 = vsel %vm475, %v372, 0
    %v1980 = vsel %vm475, %v377, 0
    %1982 = vmatprep.subr.mxu0 0.0
    %1983 = vmatpush1.msra.mxu0 %v1974
    %1984 = vmatprep.subr.mxu0 0.0
    %1985 = vmatpush1.msra.mxu0 %v1975
    %1986 = vmatprep.subr.mxu0 0.0
    %1987 = vmatpush1.msra.mxu0 0.0
    %1988 = vmatprep.subr.mxu0 0.0
    %1989 = vmatpush1.msra.mxu0 0.0
    %1990 = vmatprep.subr.mxu0 0.0
    %1991 = vmatpush1.msra.mxu0 0.0
    %1992 = vmatprep.subr.mxu0 0.0
    %1993 = vmatpush1.msra.mxu0 0.0
    %1994 = vmatprep.subr.mxu0 0.0
    %1995 = vmatpush1.msra.mxu0 0.0
    %1996 = vmatprep.subr.mxu0 0.0
    %1997 = vmatpush1.msra.mxu0 0.0
    %1998 = vmatprep.subr.mxu0 0.0
    %1999 = vmatpush1.msra.mxu0 0.0
    %2000 = vmatprep.subr.mxu0 0.0
    %2001 = vmatpush1.msra.mxu0 0.0
    %2002 = vmatprep.subr.mxu0 0.0
    %2003 = vmatpush1.msra.mxu0 0.0
    %2004 = vmatprep.subr.mxu0 0.0
    %2005 = vmatpush1.msra.mxu0 0.0
    %2006 = vmatprep.subr.mxu0 0.0
    %2007 = vmatpush1.msra.mxu0 0.0
    %2008 = vmatprep.subr.mxu0 0.0
    %2009 = vmatpush1.msra.mxu0 0.0
    %2010 = vmatprep.subr.mxu0 0.0
    %2011 = vmatpush1.msra.mxu0 0.0
    %2012 = vmatprep.subr.mxu0 0.0
    %2013 = vmatpush1.msra.mxu0 0.0
    %2014 = vmatprep.subr.mxu0 0.0
    %2015 = vmatpush1.msra.mxu0 0.0
    %2016 = vmatprep.subr.mxu0 0.0
    %2017 = vmatpush1.msra.mxu0 0.0
    %2018 = vmatprep.subr.mxu0 0.0
    %2019 = vmatpush1.msra.mxu0 0.0
    %2020 = vmatprep.subr.mxu0 0.0
    %2021 = vmatpush1.msra.mxu0 0.0
    %2022 = vmatprep.subr.mxu0 0.0
    %2023 = vmatpush1.msra.mxu0 0.0
    %2024 = vmatprep.subr.mxu0 0.0
    %2025 = vmatpush1.msra.mxu0 0.0
    %2026 = vmatprep.subr.mxu0 0.0
    %2027 = vmatpush1.msra.mxu0 0.0
    %2028 = vmatprep.subr.mxu0 0.0
    %2029 = vmatpush1.msra.mxu0 0.0
    %2030 = vmatprep.subr.mxu0 0.0
    %2031 = vmatpush1.msra.mxu0 0.0
    %2032 = vmatprep.subr.mxu0 0.0
    %2033 = vmatpush1.msra.mxu0 0.0
    %2034 = vmatprep.subr.mxu0 0.0
    %2035 = vmatpush1.msra.mxu0 0.0
    %2036 = vmatprep.subr.mxu0 0.0
    %2037 = vmatpush1.msra.mxu0 0.0
    %2038 = vmatprep.subr.mxu0 0.0
    %2039 = vmatpush1.msra.mxu0 0.0
    %2040 = vmatprep.subr.mxu0 0.0
    %2041 = vmatpush1.msra.mxu0 0.0
    %2042 = vmatprep.subr.mxu0 0.0
    %2043 = vmatpush1.msra.mxu0 0.0
    %2044 = vmatprep.subr.mxu0 0.0
    %2045 = vmatpush1.msra.mxu0 0.0
    %2046 = vmatprep.mubr.f32.mxu0 0.0
    %2047 = vmatmul.mubr.f32.gmra.mrb[0].mxu0 %v1977
    %v2048 = vpop.f32.mrb[0].mxu0
    %v2049 = vadd.f32 0.0, %v2048
    %v2050 = vpop.f32.mrb[0].mxu0
    %2051 = vmatprep.mubr.f32.mxu0 0.0
    %2052 = vmatmul.mubr.f32.gmra.mrb[0].mxu0 %v1980
    %v2053 = vpop.f32.mrb[0].mxu0
    %v2054 = vadd.f32 0.0, %v2053
    %v2055 = vpop.f32.mrb[0].mxu0
    %2056 = vdwg.mxu0
    %v2057 = vsel %vm475, %v2049, -inf
    %2058 = vmax.xlane.f32.xlu0 %v2057
    %v2059 = vpop.xlane.xlu0 %2058
    %v2060 = vsel %vm475, %v2054, -inf
    %2061 = vmax.xlane.f32.xlu0 %v2060
    %v2062 = vpop.xlane.xlu0 %2061
    %v2063 = vsub.f32 %v2049, %v2059
    %v2064 = vsub.f32 %v2054, %v2062
    %v2065 = vmul.f32 %v2063, 1.442695
    %v2066 = vpow.pop %v2065
    %v2067 = vmul.f32 %v2064, 1.442695
    %v2068 = vpow.pop %v2067
    %v2069 = vsel %vm475, %v2066, 0.0
    %2070 = vadd.xlane.f32.xlu0 %v2069
    %v2071 = vpop.xlane.xlu0 %2070
    %v2072 = vsel %vm475, %v2068, 0.0
    %2073 = vadd.xlane.f32.xlu0 %v2072
    %v2074 = vpop.xlane.xlu0 %2073
    %v2075 = vrcp.pop %v2071
    %v2076 = vrcp.pop %v2074
    %v2077 = vmul.f32 %v2066, %v2075
    %v2078 = vmul.f32 %v2068, %v2076
    %v2080 = vsel %vm475, %v2077, 0
    %v2083 = vsel %vm475, %v2078, 0
    %2085 = vmatprep.subr.mxu0 0.0
    %2086 = vmatpush1.msra.mxu0 %v452
    %2087 = vmatprep.subr.mxu0 0.0
    %2088 = vmatpush1.msra.mxu0 %v457
    %2089 = vmatprep.subr.mxu0 0.0
    %2090 = vmatpush1.msra.mxu0 0.0
    %2091 = vmatprep.subr.mxu0 0.0
    %2092 = vmatpush1.msra.mxu0 0.0
    %2093 = vmatprep.subr.mxu0 0.0
    %2094 = vmatpush1.msra.mxu0 0.0
    %2095 = vmatprep.subr.mxu0 0.0
    %2096 = vmatpush1.msra.mxu0 0.0
    %2097 = vmatprep.subr.mxu0 0.0
    %2098 = vmatpush1.msra.mxu0 0.0
    %2099 = vmatprep.subr.mxu0 0.0
    %2100 = vmatpush1.msra.mxu0 0.0
    %2101 = vmatprep.subr.mxu0 0.0
    %2102 = vmatpush1.msra.mxu0 0.0
    %2103 = vmatprep.subr.mxu0 0.0
    %2104 = vmatpush1.msra.mxu0 0.0
    %2105 = vmatprep.subr.mxu0 0.0
    %2106 = vmatpush1.msra.mxu0 0.0
    %2107 = vmatprep.subr.mxu0 0.0
    %2108 = vmatpush1.msra.mxu0 0.0
    %2109 = vmatprep.subr.mxu0 0.0
    %2110 = vmatpush1.msra.mxu0 0.0
    %2111 = vmatprep.subr.mxu0 0.0
    %2112 = vmatpush1.msra.mxu0 0.0
    %2113 = vmatprep.subr.mxu0 0.0
    %2114 = vmatpush1.msra.mxu0 0.0
    %2115 = vmatprep.subr.mxu0 0.0
    %2116 = vmatpush1.msra.mxu0 0.0
    %2117 = vmatprep.subr.mxu0 0.0
    %2118 = vmatpush1.msra.mxu0 0.0
    %2119 = vmatprep.subr.mxu0 0.0
    %2120 = vmatpush1.msra.mxu0 0.0
    %2121 = vmatprep.subr.mxu0 0.0
    %2122 = vmatpush1.msra.mxu0 0.0
    %2123 = vmatprep.subr.mxu0 0.0
    %2124 = vmatpush1.msra.mxu0 0.0
    %2125 = vmatprep.subr.mxu0 0.0
    %2126 = vmatpush1.msra.mxu0 0.0
    %2127 = vmatprep.subr.mxu0 0.0
    %2128 = vmatpush1.msra.mxu0 0.0
    %2129 = vmatprep.subr.mxu0 0.0
    %2130 = vmatpush1.msra.mxu0 0.0
    %2131 = vmatprep.subr.mxu0 0.0
    %2132 = vmatpush1.msra.mxu0 0.0
    %2133 = vmatprep.subr.mxu0 0.0
    %2134 = vmatpush1.msra.mxu0 0.0
    %2135 = vmatprep.subr.mxu0 0.0
    %2136 = vmatpush1.msra.mxu0 0.0
    %2137 = vmatprep.subr.mxu0 0.0
    %2138 = vmatpush1.msra.mxu0 0.0
    %2139 = vmatprep.subr.mxu0 0.0
    %2140 = vmatpush1.msra.mxu0 0.0
    %2141 = vmatprep.subr.mxu0 0.0
    %2142 = vmatpush1.msra.mxu0 0.0
    %2143 = vmatprep.subr.mxu0 0.0
    %2144 = vmatpush1.msra.mxu0 0.0
    %2145 = vmatprep.subr.mxu0 0.0
    %2146 = vmatpush1.msra.mxu0 0.0
    %2147 = vmatprep.subr.mxu0 0.0
    %2148 = vmatpush1.msra.mxu0 0.0
    %2149 = vmatprep.mubr.f32.mxu0 0.0
    %2150 = vmatmul.mubr.f32.gmra.mrb[0].mxu0 %v2080
    %v2151 = vpop.f32.mrb[0].mxu0
    %v2152 = vadd.f32 0.0, %v2151
    %v2153 = vpop.f32.mrb[0].mxu0
    %2154 = vmatprep.mubr.f32.mxu0 0.0
    %2155 = vmatmul.mubr.f32.gmra.mrb[0].mxu0 %v2083
    %v2156 = vpop.f32.mrb[0].mxu0
    %v2157 = vadd.f32 0.0, %v2156
    %v2158 = vpop.f32.mrb[0].mxu0
    %2159 = vdwg.mxu0
    %v2160 = vld [vmem:[%s4 + $0x20] sm:$0xff]
    %v2161 = vld [vmem:[%s4 + $0x28] sm:$0xff]
    %v2163 = vsel %vm475, %v2152, 0
    %v2166 = vsel %vm475, %v2157, 0
    %2168 = vmatprep.subr.mxu0 0.0
    %2169 = vmatpush1.msra.mxu0 %v2160
    %2170 = vmatprep.subr.mxu0 0.0
    %2171 = vmatpush1.msra.mxu0 %v2161
    %2172 = vmatprep.subr.mxu0 0.0
    %2173 = vmatpush1.msra.mxu0 0.0
    %2174 = vmatprep.subr.mxu0 0.0
    %2175 = vmatpush1.msra.mxu0 0.0
    %2176 = vmatprep.subr.mxu0 0.0
    %2177 = vmatpush1.msra.mxu0 0.0
    %2178 = vmatprep.subr.mxu0 0.0
    %2179 = vmatpush1.msra.mxu0 0.0
    %2180 = vmatprep.subr.mxu0 0.0
    %2181 = vmatpush1.msra.mxu0 0.0
    %2182 = vmatprep.subr.mxu0 0.0
    %2183 = vmatpush1.msra.mxu0 0.0
    %2184 = vmatprep.subr.mxu0 0.0
    %2185 = vmatpush1.msra.mxu0 0.0
    %2186 = vmatprep.subr.mxu0 0.0
    %2187 = vmatpush1.msra.mxu0 0.0
    %2188 = vmatprep.subr.mxu0 0.0
    %2189 = vmatpush1.msra.mxu0 0.0
    %2190 = vmatprep.subr.mxu0 0.0
    %2191 = vmatpush1.msra.mxu0 0.0
    %2192 = vmatprep.subr.mxu0 0.0
    %2193 = vmatpush1.msra.mxu0 0.0
    %2194 = vmatprep.subr.mxu0 0.0
    %2195 = vmatpush1.msra.mxu0 0.0
    %2196 = vmatprep.subr.mxu0 0.0
    %2197 = vmatpush1.msra.mxu0 0.0
    %2198 = vmatprep.subr.mxu0 0.0
    %2199 = vmatpush1.msra.mxu0 0.0
    %2200 = vmatprep.subr.mxu0 0.0
    %2201 = vmatpush1.msra.mxu0 0.0
    %2202 = vmatprep.subr.mxu0 0.0
    %2203 = vmatpush1.msra.mxu0 0.0
    %2204 = vmatprep.subr.mxu0 0.0
    %2205 = vmatpush1.msra.mxu0 0.0
    %2206 = vmatprep.subr.mxu0 0.0
    %2207 = vmatpush1.msra.mxu0 0.0
    %2208 = vmatprep.subr.mxu0 0.0
    %2209 = vmatpush1.msra.mxu0 0.0
    %2210 = vmatprep.subr.mxu0 0.0
    %2211 = vmatpush1.msra.mxu0 0.0
    %2212 = vmatprep.subr.mxu0 0.0
    %2213 = vmatpush1.msra.mxu0 0.0
    %2214 = vmatprep.subr.mxu0 0.0
    %2215 = vmatpush1.msra.mxu0 0.0
    %2216 = vmatprep.subr.mxu0 0.0
    %2217 = vmatpush1.msra.mxu0 0.0
    %2218 = vmatprep.subr.mxu0 0.0
    %2219 = vmatpush1.msra.mxu0 0.0
    %2220 = vmatprep.subr.mxu0 0.0
    %2221 = vmatpush1.msra.mxu0 0.0
    %2222 = vmatprep.subr.mxu0 0.0
    %2223 = vmatpush1.msra.mxu0 0.0
    %2224 = vmatprep.subr.mxu0 0.0
    %2225 = vmatpush1.msra.mxu0 0.0
    %2226 = vmatprep.subr.mxu0 0.0
    %2227 = vmatpush1.msra.mxu0 0.0
    %2228 = vmatprep.subr.mxu0 0.0
    %2229 = vmatpush1.msra.mxu0 0.0
    %2230 = vmatprep.subr.mxu0 0.0
    %2231 = vmatpush1.msra.mxu0 0.0
    %2232 = vmatprep.mubr.f32.mxu0 0.0
    %2233 = vmatmul.mubr.f32.gmra.mrb[0].mxu0 %v2163
    %v2234 = vpop.f32.mrb[0].mxu0
    %v2235 = vadd.f32 0.0, %v2234
    %v2236 = vpop.f32.mrb[0].mxu0
    %2237 = vmatprep.mubr.f32.mxu0 0.0
    %2238 = vmatmul.mubr.f32.gmra.mrb[0].mxu0 %v2166
    %v2239 = vpop.f32.mrb[0].mxu0
    %v2240 = vadd.f32 0.0, %v2239
    %v2241 = vpop.f32.mrb[0].mxu0
    %2242 = vdwg.mxu0
    %v2243 = vadd.f32 %v1662, %v2235
    %v2244 = vadd.f32 %v1663, %v2240
    %v2245 = vld [vmem:[%s3 + $0xc0] sm:$0xff]
    %v2246 = vld [vmem:[%s3 + $0xc8] sm:$0xff]
    %v2247 = vld [vmem:[%s3 + $0xd0] sm:$0xff]
    %v2248 = vld [vmem:[%s3 + $0xd8] sm:$0xff]
    %2249 = vmatprep.subr.mxu0 0.0
    %2250 = vmatpush1.msra.mxu0 %v2247
    %2251 = vmatprep.subr.mxu0 0.0
    %2252 = vmatpush1.msra.mxu0 %v2248
    %2253 = vmatprep.subr.mxu0 0.0
    %2254 = vmatpush1.msra.mxu0 0.0
    %2255 = vmatprep.subr.mxu0 0.0
    %2256 = vmatpush1.msra.mxu0 0.0
    %2257 = vmatprep.subr.mxu0 0.0
    %2258 = vmatpush1.msra.mxu0 0.0
    %2259 = vmatprep.subr.mxu0 0.0
    %2260 = vmatpush1.msra.mxu0 0.0
    %2261 = vmatprep.subr.mxu0 0.0
    %2262 = vmatpush1.msra.mxu0 0.0
    %2263 = vmatprep.subr.mxu0 0.0
    %2264 = vmatpush1.msra.mxu0 0.0
    %2265 = vmatprep.subr.mxu0 0.0
    %2266 = vmatpush1.msra.mxu0 0.0
    %2267 = vmatprep.subr.mxu0 0.0
    %2268 = vmatpush1.msra.mxu0 0.0
    %2269 = vmatprep.subr.mxu0 0.0
    %2270 = vmatpush1.msra.mxu0 0.0
    %2271 = vmatprep.subr.mxu0 0.0
    %2272 = vmatpush1.msra.mxu0 0.0
    %2273 = vmatprep.subr.mxu0 0.0
    %2274 = vmatpush1.msra.mxu0 0.0
    %2275 = vmatprep.subr.mxu0 0.0
    %2276 = vmatpush1.msra.mxu0 0.0
    %2277 = vmatprep.subr.mxu0 0.0
    %2278 = vmatpush1.msra.mxu0 0.0
    %2279 = vmatprep.subr.mxu0 0.0
    %2280 = vmatpush1.msra.mxu0 0.0
    %2281 = vmatprep.subr.mxu0 0.0
    %2282 = vmatpush1.msra.mxu0 0.0
    %2283 = vmatprep.subr.mxu0 0.0
    %2284 = vmatpush1.msra.mxu0 0.0
    %2285 = vmatprep.subr.mxu0 0.0
    %2286 = vmatpush1.msra.mxu0 0.0
    %2287 = vmatprep.subr.mxu0 0.0
    %2288 = vmatpush1.msra.mxu0 0.0
    %2289 = vmatprep.subr.mxu0 0.0
    %2290 = vmatpush1.msra.mxu0 0.0
    %2291 = vmatprep.subr.mxu0 0.0
    %2292 = vmatpush1.msra.mxu0 0.0
    %2293 = vmatprep.subr.mxu0 0.0
    %2294 = vmatpush1.msra.mxu0 0.0
    %2295 = vmatprep.subr.mxu0 0.0
    %2296 = vmatpush1.msra.mxu0 0.0
    %2297 = vmatprep.subr.mxu0 0.0
    %2298 = vmatpush1.msra.mxu0 0.0
    %2299 = vmatprep.subr.mxu0 0.0
    %2300 = vmatpush1.msra.mxu0 0.0
    %2301 = vmatprep.subr.mxu0 0.0
    %2302 = vmatpush1.msra.mxu0 0.0
    %2303 = vmatprep.subr.mxu0 0.0
    %2304 = vmatpush1.msra.mxu0 0.0
    %2305 = vmatprep.subr.mxu0 0.0
    %2306 = vmatpush1.msra.mxu0 0.0
    %2307 = vmatprep.subr.mxu0 0.0
    %2308 = vmatpush1.msra.mxu0 0.0
    %2309 = vmatprep.subr.mxu0 0.0
    %2310 = vmatpush1.msra.mxu0 0.0
    %2311 = vmatprep.subr.mxu0 0.0
    %2312 = vmatpush1.msra.mxu0 0.0
    %2313 = vmatprep.mubr.f32.mxu0 0.0
    %2314 = vmatmul.mubr.f32.gmra.mrb[0].mxu0 %v477
    %v2315 = vpop.f32.mrb[0].mxu0
    %v2316 = vadd.f32 0.0, %v2315
    %v2317 = vpop.f32.mrb[0].mxu0
    %2318 = vmatprep.mubr.f32.mxu0 0.0
    %2319 = vmatmul.mubr.f32.gmra.mrb[0].mxu0 %v480
    %v2320 = vpop.f32.mrb[0].mxu0
    %v2321 = vadd.f32 0.0, %v2320
    %v2322 = vpop.f32.mrb[0].mxu0
    %2323 = vdwg.mxu0
    %2324 = vmatprep.subr.mxu0 0.0
    %2325 = vmatpush1.msra.mxu0 %v2245
    %2326 = vmatprep.subr.mxu0 0.0
    %2327 = vmatpush1.msra.mxu0 %v2246
    %2328 = vmatprep.subr.mxu0 0.0
    %2329 = vmatpush1.msra.mxu0 0.0
    %2330 = vmatprep.subr.mxu0 0.0
    %2331 = vmatpush1.msra.mxu0 0.0
    %2332 = vmatprep.subr.mxu0 0.0
    %2333 = vmatpush1.msra.mxu0 0.0
    %2334 = vmatprep.subr.mxu0 0.0
    %2335 = vmatpush1.msra.mxu0 0.0
    %2336 = vmatprep.subr.mxu0 0.0
    %2337 = vmatpush1.msra.mxu0 0.0
    %2338 = vmatprep.subr.mxu0 0.0
    %2339 = vmatpush1.msra.mxu0 0.0
    %2340 = vmatprep.subr.mxu0 0.0
    %2341 = vmatpush1.msra.mxu0 0.0
    %2342 = vmatprep.subr.mxu0 0.0
    %2343 = vmatpush1.msra.mxu0 0.0
    %2344 = vmatprep.subr.mxu0 0.0
    %2345 = vmatpush1.msra.mxu0 0.0
    %2346 = vmatprep.subr.mxu0 0.0
    %2347 = vmatpush1.msra.mxu0 0.0
    %2348 = vmatprep.subr.mxu0 0.0
    %2349 = vmatpush1.msra.mxu0 0.0
    %2350 = vmatprep.subr.mxu0 0.0
    %2351 = vmatpush1.msra.mxu0 0.0
    %2352 = vmatprep.subr.mxu0 0.0
    %2353 = vmatpush1.msra.mxu0 0.0
    %2354 = vmatprep.subr.mxu0 0.0
    %2355 = vmatpush1.msra.mxu0 0.0
    %2356 = vmatprep.subr.mxu0 0.0
    %2357 = vmatpush1.msra.mxu0 0.0
    %2358 = vmatprep.subr.mxu0 0.0
    %2359 = vmatpush1.msra.mxu0 0.0
    %2360 = vmatprep.subr.mxu0 0.0
    %2361 = vmatpush1.msra.mxu0 0.0
    %2362 = vmatprep.subr.mxu0 0.0
    %2363 = vmatpush1.msra.mxu0 0.0
    %2364 = vmatprep.subr.mxu0 0.0
    %2365 = vmatpush1.msra.mxu0 0.0
    %2366 = vmatprep.subr.mxu0 0.0
    %2367 = vmatpush1.msra.mxu0 0.0
    %2368 = vmatprep.subr.mxu0 0.0
    %2369 = vmatpush1.msra.mxu0 0.0
    %2370 = vmatprep.subr.mxu0 0.0
    %2371 = vmatpush1.msra.mxu0 0.0
    %2372 = vmatprep.subr.mxu0 0.0
    %2373 = vmatpush1.msra.mxu0 0.0
    %2374 = vmatprep.subr.mxu0 0.0
    %2375 = vmatpush1.msra.mxu0 0.0
    %2376 = vmatprep.subr.mxu0 0.0
    %2377 = vmatpush1.msra.mxu0 0.0
    %2378 = vmatprep.subr.mxu0 0.0
    %2379 = vmatpush1.msra.mxu0 0.0
    %2380 = vmatprep.subr.mxu0 0.0
    %2381 = vmatpush1.msra.mxu0 0.0
    %2382 = vmatprep.subr.mxu0 0.0
    %2383 = vmatpush1.msra.mxu0 0.0
    %2384 = vmatprep.subr.mxu0 0.0
    %2385 = vmatpush1.msra.mxu0 0.0
    %2386 = vmatprep.subr.mxu0 0.0
    %2387 = vmatpush1.msra.mxu0 0.0
    %2388 = vmatprep.mubr.f32.mxu0 0.0
    %2389 = vmatmul.mubr.f32.gmra.mrb[0].mxu0 %v558
    %v2390 = vpop.f32.mrb[0].mxu0
    %v2391 = vadd.f32 %v2316, %v2390
    %v2392 = vpop.f32.mrb[0].mxu0
    %2393 = vmatprep.mubr.f32.mxu0 0.0
    %2394 = vmatmul.mubr.f32.gmra.mrb[0].mxu0 %v561
    %v2395 = vpop.f32.mrb[0].mxu0
    %v2396 = vadd.f32 %v2321, %v2395
    %v2397 = vpop.f32.mrb[0].mxu0
    %2398 = vdwg.mxu0
    %v2399 = vld [vmem:[%s3 + $0xe0] sm:$0xff]
    %v2400 = vld [vmem:[%s3 + $0xe8] sm:$0xff]
    %2401 = vmatprep.subr.mxu0 0.0
    %2402 = vmatpush1.msra.mxu0 %v2399
    %2403 = vmatprep.subr.mxu0 0.0
    %2404 = vmatpush1.msra.mxu0 %v2400
    %2405 = vmatprep.subr.mxu0 0.0
    %2406 = vmatpush1.msra.mxu0 0.0
    %2407 = vmatprep.subr.mxu0 0.0
    %2408 = vmatpush1.msra.mxu0 0.0
    %2409 = vmatprep.subr.mxu0 0.0
    %2410 = vmatpush1.msra.mxu0 0.0
    %2411 = vmatprep.subr.mxu0 0.0
    %2412 = vmatpush1.msra.mxu0 0.0
    %2413 = vmatprep.subr.mxu0 0.0
    %2414 = vmatpush1.msra.mxu0 0.0
    %2415 = vmatprep.subr.mxu0 0.0
    %2416 = vmatpush1.msra.mxu0 0.0
    %2417 = vmatprep.subr.mxu0 0.0
    %2418 = vmatpush1.msra.mxu0 0.0
    %2419 = vmatprep.subr.mxu0 0.0
    %2420 = vmatpush1.msra.mxu0 0.0
    %2421 = vmatprep.subr.mxu0 0.0
    %2422 = vmatpush1.msra.mxu0 0.0
    %2423 = vmatprep.subr.mxu0 0.0
    %2424 = vmatpush1.msra.mxu0 0.0
    %2425 = vmatprep.subr.mxu0 0.0
    %2426 = vmatpush1.msra.mxu0 0.0
    %2427 = vmatprep.subr.mxu0 0.0
    %2428 = vmatpush1.msra.mxu0 0.0
    %2429 = vmatprep.subr.mxu0 0.0
    %2430 = vmatpush1.msra.mxu0 0.0
    %2431 = vmatprep.subr.mxu0 0.0
    %2432 = vmatpush1.msra.mxu0 0.0
    %2433 = vmatprep.subr.mxu0 0.0
    %2434 = vmatpush1.msra.mxu0 0.0
    %2435 = vmatprep.subr.mxu0 0.0
    %2436 = vmatpush1.msra.mxu0 0.0
    %2437 = vmatprep.subr.mxu0 0.0
    %2438 = vmatpush1.msra.mxu0 0.0
    %2439 = vmatprep.subr.mxu0 0.0
    %2440 = vmatpush1.msra.mxu0 0.0
    %2441 = vmatprep.subr.mxu0 0.0
    %2442 = vmatpush1.msra.mxu0 0.0
    %2443 = vmatprep.subr.mxu0 0.0
    %2444 = vmatpush1.msra.mxu0 0.0
    %2445 = vmatprep.subr.mxu0 0.0
    %2446 = vmatpush1.msra.mxu0 0.0
    %2447 = vmatprep.subr.mxu0 0.0
    %2448 = vmatpush1.msra.mxu0 0.0
    %2449 = vmatprep.subr.mxu0 0.0
    %2450 = vmatpush1.msra.mxu0 0.0
    %2451 = vmatprep.subr.mxu0 0.0
    %2452 = vmatpush1.msra.mxu0 0.0
    %2453 = vmatprep.subr.mxu0 0.0
    %2454 = vmatpush1.msra.mxu0 0.0
    %2455 = vmatprep.subr.mxu0 0.0
    %2456 = vmatpush1.msra.mxu0 0.0
    %2457 = vmatprep.subr.mxu0 0.0
    %2458 = vmatpush1.msra.mxu0 0.0
    %2459 = vmatprep.subr.mxu0 0.0
    %2460 = vmatpush1.msra.mxu0 0.0
    %2461 = vmatprep.subr.mxu0 0.0
    %2462 = vmatpush1.msra.mxu0 0.0
    %2463 = vmatprep.subr.mxu0 0.0
    %2464 = vmatpush1.msra.mxu0 0.0
    %2465 = vmatprep.mubr.f32.mxu0 0.0
    %2466 = vmatmul.mubr.f32.gmra.mrb[0].mxu0 %v641
    %v2467 = vpop.f32.mrb[0].mxu0
    %v2468 = vadd.f32 0.0, %v2467
    %v2469 = vpop.f32.mrb[0].mxu0
    %2470 = vmatprep.mubr.f32.mxu0 0.0
    %2471 = vmatmul.mubr.f32.gmra.mrb[0].mxu0 %v644
    %v2472 = vpop.f32.mrb[0].mxu0
    %v2473 = vadd.f32 0.0, %v2472
    %v2474 = vpop.f32.mrb[0].mxu0
    %2475 = vdwg.mxu0
    %v2476 = vadd.f32 %v2391, %v2468
    %v2477 = vadd.f32 %v2396, %v2473
    %v2478 = vld [vmem:[%s3 + $0xf0] sm:$0xff]
    %v2479 = vld [vmem:[%s3 + $0xf8] sm:$0xff]
    %2480 = vmatprep.subr.mxu0 0.0
    %2481 = vmatpush1.msra.mxu0 %v2478
    %2482 = vmatprep.subr.mxu0 0.0
    %2483 = vmatpush1.msra.mxu0 %v2479
    %2484 = vmatprep.subr.mxu0 0.0
    %2485 = vmatpush1.msra.mxu0 0.0
    %2486 = vmatprep.subr.mxu0 0.0
    %2487 = vmatpush1.msra.mxu0 0.0
    %2488 = vmatprep.subr.mxu0 0.0
    %2489 = vmatpush1.msra.mxu0 0.0
    %2490 = vmatprep.subr.mxu0 0.0
    %2491 = vmatpush1.msra.mxu0 0.0
    %2492 = vmatprep.subr.mxu0 0.0
    %2493 = vmatpush1.msra.mxu0 0.0
    %2494 = vmatprep.subr.mxu0 0.0
    %2495 = vmatpush1.msra.mxu0 0.0
    %2496 = vmatprep.subr.mxu0 0.0
    %2497 = vmatpush1.msra.mxu0 0.0
    %2498 = vmatprep.subr.mxu0 0.0
    %2499 = vmatpush1.msra.mxu0 0.0
    %2500 = vmatprep.subr.mxu0 0.0
    %2501 = vmatpush1.msra.mxu0 0.0
    %2502 = vmatprep.subr.mxu0 0.0
    %2503 = vmatpush1.msra.mxu0 0.0
    %2504 = vmatprep.subr.mxu0 0.0
    %2505 = vmatpush1.msra.mxu0 0.0
    %2506 = vmatprep.subr.mxu0 0.0
    %2507 = vmatpush1.msra.mxu0 0.0
    %2508 = vmatprep.subr.mxu0 0.0
    %2509 = vmatpush1.msra.mxu0 0.0
    %2510 = vmatprep.subr.mxu0 0.0
    %2511 = vmatpush1.msra.mxu0 0.0
    %2512 = vmatprep.subr.mxu0 0.0
    %2513 = vmatpush1.msra.mxu0 0.0
    %2514 = vmatprep.subr.mxu0 0.0
    %2515 = vmatpush1.msra.mxu0 0.0
    %2516 = vmatprep.subr.mxu0 0.0
    %2517 = vmatpush1.msra.mxu0 0.0
    %2518 = vmatprep.subr.mxu0 0.0
    %2519 = vmatpush1.msra.mxu0 0.0
    %2520 = vmatprep.subr.mxu0 0.0
    %2521 = vmatpush1.msra.mxu0 0.0
    %2522 = vmatprep.subr.mxu0 0.0
    %2523 = vmatpush1.msra.mxu0 0.0
    %2524 = vmatprep.subr.mxu0 0.0
    %2525 = vmatpush1.msra.mxu0 0.0
    %2526 = vmatprep.subr.mxu0 0.0
    %2527 = vmatpush1.msra.mxu0 0.0
    %2528 = vmatprep.subr.mxu0 0.0
    %2529 = vmatpush1.msra.mxu0 0.0
    %2530 = vmatprep.subr.mxu0 0.0
    %2531 = vmatpush1.msra.mxu0 0.0
    %2532 = vmatprep.subr.mxu0 0.0
    %2533 = vmatpush1.msra.mxu0 0.0
    %2534 = vmatprep.subr.mxu0 0.0
    %2535 = vmatpush1.msra.mxu0 0.0
    %2536 = vmatprep.subr.mxu0 0.0
    %2537 = vmatpush1.msra.mxu0 0.0
    %2538 = vmatprep.subr.mxu0 0.0
    %2539 = vmatpush1.msra.mxu0 0.0
    %2540 = vmatprep.subr.mxu0 0.0
    %2541 = vmatpush1.msra.mxu0 0.0
    %2542 = vmatprep.subr.mxu0 0.0
    %2543 = vmatpush1.msra.mxu0 0.0
    %2544 = vmatprep.mubr.f32.mxu0 0.0
    %2545 = vmatmul.mubr.f32.gmra.mrb[0].mxu0 %v726
    %v2546 = vpop.f32.mrb[0].mxu0
    %v2547 = vadd.f32 0.0, %v2546
    %v2548 = vpop.f32.mrb[0].mxu0
    %2549 = vmatprep.mubr.f32.mxu0 0.0
    %2550 = vmatmul.mubr.f32.gmra.mrb[0].mxu0 %v729
    %v2551 = vpop.f32.mrb[0].mxu0
    %v2552 = vadd.f32 0.0, %v2551
    %v2553 = vpop.f32.mrb[0].mxu0
    %2554 = vdwg.mxu0
    %v2555 = vadd.f32 %v2476, %v2547
    %v2556 = vadd.f32 %v2477, %v2552
    %v2558 = vsel %vm475, %v382, 0
    %v2561 = vsel %vm475, %v387, 0
    %2563 = vmatprep.subr.mxu0 0.0
    %2564 = vmatpush1.msra.mxu0 %v2555
    %2565 = vmatprep.subr.mxu0 0.0
    %2566 = vmatpush1.msra.mxu0 %v2556
    %2567 = vmatprep.subr.mxu0 0.0
    %2568 = vmatpush1.msra.mxu0 0.0
    %2569 = vmatprep.subr.mxu0 0.0
    %2570 = vmatpush1.msra.mxu0 0.0
    %2571 = vmatprep.subr.mxu0 0.0
    %2572 = vmatpush1.msra.mxu0 0.0
    %2573 = vmatprep.subr.mxu0 0.0
    %2574 = vmatpush1.msra.mxu0 0.0
    %2575 = vmatprep.subr.mxu0 0.0
    %2576 = vmatpush1.msra.mxu0 0.0
    %2577 = vmatprep.subr.mxu0 0.0
    %2578 = vmatpush1.msra.mxu0 0.0
    %2579 = vmatprep.subr.mxu0 0.0
    %2580 = vmatpush1.msra.mxu0 0.0
    %2581 = vmatprep.subr.mxu0 0.0
    %2582 = vmatpush1.msra.mxu0 0.0
    %2583 = vmatprep.subr.mxu0 0.0
    %2584 = vmatpush1.msra.mxu0 0.0
    %2585 = vmatprep.subr.mxu0 0.0
    %2586 = vmatpush1.msra.mxu0 0.0
    %2587 = vmatprep.subr.mxu0 0.0
    %2588 = vmatpush1.msra.mxu0 0.0
    %2589 = vmatprep.subr.mxu0 0.0
    %2590 = vmatpush1.msra.mxu0 0.0
    %2591 = vmatprep.subr.mxu0 0.0
    %2592 = vmatpush1.msra.mxu0 0.0
    %2593 = vmatprep.subr.mxu0 0.0
    %2594 = vmatpush1.msra.mxu0 0.0
    %2595 = vmatprep.subr.mxu0 0.0
    %2596 = vmatpush1.msra.mxu0 0.0
    %2597 = vmatprep.subr.mxu0 0.0
    %2598 = vmatpush1.msra.mxu0 0.0
    %2599 = vmatprep.subr.mxu0 0.0
    %2600 = vmatpush1.msra.mxu0 0.0
    %2601 = vmatprep.subr.mxu0 0.0
    %2602 = vmatpush1.msra.mxu0 0.0
    %2603 = vmatprep.subr.mxu0 0.0
    %2604 = vmatpush1.msra.mxu0 0.0
    %2605 = vmatprep.subr.mxu0 0.0
    %2606 = vmatpush1.msra.mxu0 0.0
    %2607 = vmatprep.subr.mxu0 0.0
    %2608 = vmatpush1.msra.mxu0 0.0
    %2609 = vmatprep.subr.mxu0 0.0
    %2610 = vmatpush1.msra.mxu0 0.0
    %2611 = vmatprep.subr.mxu0 0.0
    %2612 = vmatpush1.msra.mxu0 0.0
    %2613 = vmatprep.subr.mxu0 0.0
    %2614 = vmatpush1.msra.mxu0 0.0
    %2615 = vmatprep.subr.mxu0 0.0
    %2616 = vmatpush1.msra.mxu0 0.0
    %2617 = vmatprep.subr.mxu0 0.0
    %2618 = vmatpush1.msra.mxu0 0.0
    %2619 = vmatprep.subr.mxu0 0.0
    %2620 = vmatpush1.msra.mxu0 0.0
    %2621 = vmatprep.subr.mxu0 0.0
    %2622 = vmatpush1.msra.mxu0 0.0
    %2623 = vmatprep.subr.mxu0 0.0
    %2624 = vmatpush1.msra.mxu0 0.0
    %2625 = vmatprep.subr.mxu0 0.0
    %2626 = vmatpush1.msra.mxu0 0.0
    %2627 = vmatprep.mubr.f32.mxu0 0.0
    %2628 = vmatmul.mubr.f32.gmra.mrb[0].mxu0 %v2558
    %v2629 = vpop.f32.mrb[0].mxu0
    %v2630 = vadd.f32 0.0, %v2629
    %v2631 = vpop.f32.mrb[0].mxu0
    %2632 = vmatprep.mubr.f32.mxu0 0.0
    %2633 = vmatmul.mubr.f32.gmra.mrb[0].mxu0 %v2561
    %v2634 = vpop.f32.mrb[0].mxu0
    %v2635 = vadd.f32 0.0, %v2634
    %v2636 = vpop.f32.mrb[0].mxu0
    %2637 = vdwg.mxu0
    %v2638 = vsel %vm475, %v2630, -inf
    %2639 = vmax.xlane.f32.xlu0 %v2638
    %v2640 = vpop.xlane.xlu0 %2639
    %v2641 = vsel %vm475, %v2635, -inf
    %2642 = vmax.xlane.f32.xlu0 %v2641
    %v2643 = vpop.xlane.xlu0 %2642
    %v2644 = vsub.f32 %v2630, %v2640
    %v2645 = vsub.f32 %v2635, %v2643
    %v2646 = vmul.f32 %v2644, 1.442695
    %v2647 = vpow.pop %v2646
    %v2648 = vmul.f32 %v2645, 1.442695
    %v2649 = vpow.pop %v2648
    %v2650 = vsel %vm475, %v2647, 0.0
    %2651 = vadd.xlane.f32.xlu0 %v2650
    %v2652 = vpop.xlane.xlu0 %2651
    %v2653 = vsel %vm475, %v2649, 0.0
    %2654 = vadd.xlane.f32.xlu0 %v2653
    %v2655 = vpop.xlane.xlu0 %2654
    %v2656 = vrcp.pop %v2652
    %v2657 = vrcp.pop %v2655
    %v2658 = vmul.f32 %v2647, %v2656
    %v2659 = vmul.f32 %v2649, %v2657
    %v2661 = vsel %vm475, %v2658, 0
    %v2664 = vsel %vm475, %v2659, 0
    %2666 = vmatprep.subr.mxu0 0.0
    %2667 = vmatpush1.msra.mxu0 %v462
    %2668 = vmatprep.subr.mxu0 0.0
    %2669 = vmatpush1.msra.mxu0 %v467
    %2670 = vmatprep.subr.mxu0 0.0
    %2671 = vmatpush1.msra.mxu0 0.0
    %2672 = vmatprep.subr.mxu0 0.0
    %2673 = vmatpush1.msra.mxu0 0.0
    %2674 = vmatprep.subr.mxu0 0.0
    %2675 = vmatpush1.msra.mxu0 0.0
    %2676 = vmatprep.subr.mxu0 0.0
    %2677 = vmatpush1.msra.mxu0 0.0
    %2678 = vmatprep.subr.mxu0 0.0
    %2679 = vmatpush1.msra.mxu0 0.0
    %2680 = vmatprep.subr.mxu0 0.0
    %2681 = vmatpush1.msra.mxu0 0.0
    %2682 = vmatprep.subr.mxu0 0.0
    %2683 = vmatpush1.msra.mxu0 0.0
    %2684 = vmatprep.subr.mxu0 0.0
    %2685 = vmatpush1.msra.mxu0 0.0
    %2686 = vmatprep.subr.mxu0 0.0
    %2687 = vmatpush1.msra.mxu0 0.0
    %2688 = vmatprep.subr.mxu0 0.0
    %2689 = vmatpush1.msra.mxu0 0.0
    %2690 = vmatprep.subr.mxu0 0.0
    %2691 = vmatpush1.msra.mxu0 0.0
    %2692 = vmatprep.subr.mxu0 0.0
    %2693 = vmatpush1.msra.mxu0 0.0
    %2694 = vmatprep.subr.mxu0 0.0
    %2695 = vmatpush1.msra.mxu0 0.0
    %2696 = vmatprep.subr.mxu0 0.0
    %2697 = vmatpush1.msra.mxu0 0.0
    %2698 = vmatprep.subr.mxu0 0.0
    %2699 = vmatpush1.msra.mxu0 0.0
    %2700 = vmatprep.subr.mxu0 0.0
    %2701 = vmatpush1.msra.mxu0 0.0
    %2702 = vmatprep.subr.mxu0 0.0
    %2703 = vmatpush1.msra.mxu0 0.0
    %2704 = vmatprep.subr.mxu0 0.0
    %2705 = vmatpush1.msra.mxu0 0.0
    %2706 = vmatprep.subr.mxu0 0.0
    %2707 = vmatpush1.msra.mxu0 0.0
    %2708 = vmatprep.subr.mxu0 0.0
    %2709 = vmatpush1.msra.mxu0 0.0
    %2710 = vmatprep.subr.mxu0 0.0
    %2711 = vmatpush1.msra.mxu0 0.0
    %2712 = vmatprep.subr.mxu0 0.0
    %2713 = vmatpush1.msra.mxu0 0.0
    %2714 = vmatprep.subr.mxu0 0.0
    %2715 = vmatpush1.msra.mxu0 0.0
    %2716 = vmatprep.subr.mxu0 0.0
    %2717 = vmatpush1.msra.mxu0 0.0
    %2718 = vmatprep.subr.mxu0 0.0
    %2719 = vmatpush1.msra.mxu0 0.0
    %2720 = vmatprep.subr.mxu0 0.0
    %2721 = vmatpush1.msra.mxu0 0.0
    %2722 = vmatprep.subr.mxu0 0.0
    %2723 = vmatpush1.msra.mxu0 0.0
    %2724 = vmatprep.subr.mxu0 0.0
    %2725 = vmatpush1.msra.mxu0 0.0
    %2726 = vmatprep.subr.mxu0 0.0
    %2727 = vmatpush1.msra.mxu0 0.0
    %2728 = vmatprep.subr.mxu0 0.0
    %2729 = vmatpush1.msra.mxu0 0.0
    %2730 = vmatprep.mubr.f32.mxu0 0.0
    %2731 = vmatmul.mubr.f32.gmra.mrb[0].mxu0 %v2661
    %v2732 = vpop.f32.mrb[0].mxu0
    %v2733 = vadd.f32 0.0, %v2732
    %v2734 = vpop.f32.mrb[0].mxu0
    %2735 = vmatprep.mubr.f32.mxu0 0.0
    %2736 = vmatmul.mubr.f32.gmra.mrb[0].mxu0 %v2664
    %v2737 = vpop.f32.mrb[0].mxu0
    %v2738 = vadd.f32 0.0, %v2737
    %v2739 = vpop.f32.mrb[0].mxu0
    %2740 = vdwg.mxu0
    %v2741 = vld [vmem:[%s4 + $0x30] sm:$0xff]
    %v2742 = vld [vmem:[%s4 + $0x38] sm:$0xff]
    %v2744 = vsel %vm475, %v2733, 0
    %v2747 = vsel %vm475, %v2738, 0
    %2749 = vmatprep.subr.mxu0 0.0
    %2750 = vmatpush1.msra.mxu0 %v2741
    %2751 = vmatprep.subr.mxu0 0.0
    %2752 = vmatpush1.msra.mxu0 %v2742
    %2753 = vmatprep.subr.mxu0 0.0
    %2754 = vmatpush1.msra.mxu0 0.0
    %2755 = vmatprep.subr.mxu0 0.0
    %2756 = vmatpush1.msra.mxu0 0.0
    %2757 = vmatprep.subr.mxu0 0.0
    %2758 = vmatpush1.msra.mxu0 0.0
    %2759 = vmatprep.subr.mxu0 0.0
    %2760 = vmatpush1.msra.mxu0 0.0
    %2761 = vmatprep.subr.mxu0 0.0
    %2762 = vmatpush1.msra.mxu0 0.0
    %2763 = vmatprep.subr.mxu0 0.0
    %2764 = vmatpush1.msra.mxu0 0.0
    %2765 = vmatprep.subr.mxu0 0.0
    %2766 = vmatpush1.msra.mxu0 0.0
    %2767 = vmatprep.subr.mxu0 0.0
    %2768 = vmatpush1.msra.mxu0 0.0
    %2769 = vmatprep.subr.mxu0 0.0
    %2770 = vmatpush1.msra.mxu0 0.0
    %2771 = vmatprep.subr.mxu0 0.0
    %2772 = vmatpush1.msra.mxu0 0.0
    %2773 = vmatprep.subr.mxu0 0.0
    %2774 = vmatpush1.msra.mxu0 0.0
    %2775 = vmatprep.subr.mxu0 0.0
    %2776 = vmatpush1.msra.mxu0 0.0
    %2777 = vmatprep.subr.mxu0 0.0
    %2778 = vmatpush1.msra.mxu0 0.0
    %2779 = vmatprep.subr.mxu0 0.0
    %2780 = vmatpush1.msra.mxu0 0.0
    %2781 = vmatprep.subr.mxu0 0.0
    %2782 = vmatpush1.msra.mxu0 0.0
    %2783 = vmatprep.subr.mxu0 0.0
    %2784 = vmatpush1.msra.mxu0 0.0
    %2785 = vmatprep.subr.mxu0 0.0
    %2786 = vmatpush1.msra.mxu0 0.0
    %2787 = vmatprep.subr.mxu0 0.0
    %2788 = vmatpush1.msra.mxu0 0.0
    %2789 = vmatprep.subr.mxu0 0.0
    %2790 = vmatpush1.msra.mxu0 0.0
    %2791 = vmatprep.subr.mxu0 0.0
    %2792 = vmatpush1.msra.mxu0 0.0
    %2793 = vmatprep.subr.mxu0 0.0
    %2794 = vmatpush1.msra.mxu0 0.0
    %2795 = vmatprep.subr.mxu0 0.0
    %2796 = vmatpush1.msra.mxu0 0.0
    %2797 = vmatprep.subr.mxu0 0.0
    %2798 = vmatpush1.msra.mxu0 0.0
    %2799 = vmatprep.subr.mxu0 0.0
    %2800 = vmatpush1.msra.mxu0 0.0
    %2801 = vmatprep.subr.mxu0 0.0
    %2802 = vmatpush1.msra.mxu0 0.0
    %2803 = vmatprep.subr.mxu0 0.0
    %2804 = vmatpush1.msra.mxu0 0.0
    %2805 = vmatprep.subr.mxu0 0.0
    %2806 = vmatpush1.msra.mxu0 0.0
    %2807 = vmatprep.subr.mxu0 0.0
    %2808 = vmatpush1.msra.mxu0 0.0
    %2809 = vmatprep.subr.mxu0 0.0
    %2810 = vmatpush1.msra.mxu0 0.0
    %2811 = vmatprep.subr.mxu0 0.0
    %2812 = vmatpush1.msra.mxu0 0.0
    %2813 = vmatprep.mubr.f32.mxu0 0.0
    %2814 = vmatmul.mubr.f32.gmra.mrb[0].mxu0 %v2744
    %v2815 = vpop.f32.mrb[0].mxu0
    %v2816 = vadd.f32 0.0, %v2815
    %v2817 = vpop.f32.mrb[0].mxu0
    %2818 = vmatprep.mubr.f32.mxu0 0.0
    %2819 = vmatmul.mubr.f32.gmra.mrb[0].mxu0 %v2747
    %v2820 = vpop.f32.mrb[0].mxu0
    %v2821 = vadd.f32 0.0, %v2820
    %v2822 = vpop.f32.mrb[0].mxu0
    %2823 = vdwg.mxu0
    %v2824 = vadd.f32 %v2243, %v2816
    %v2825 = vadd.f32 %v2244, %v2821
    %v2826 = vld [vmem:[%s8] sm:$0xff]
    %v2827 = vld [vmem:[%s8 + $0x8] sm:$0xff]
    %v2828 = vld [vmem:[%s9] sm:$0xff]
    %v2829 = vld [vmem:[%s9 + $0x8] sm:$0xff]
    %v2830 = vsel %vm206, %v36, 0.0
    %2831 = vadd.xlane.f32.xlu0 %v2830
    %v2832 = vpop.xlane.xlu0 %2831
    %v2833 = vsel %vm206, %v37, 0.0
    %2834 = vadd.xlane.f32.xlu0 %v2833
    %v2835 = vpop.xlane.xlu0 %2834
    %v2836 = vrcp.pop 64.0
    %v2837 = vmul.f32 %v2832, %v2836
    %v2838 = vmul.f32 %v2835, %v2836
    %v2839 = vsub.f32 %v36, %v2837
    %v2840 = vsub.f32 %v37, %v2838
    %v2841 = vmul.f32 %v2839, %v2839
    %v2842 = vmul.f32 %v2840, %v2840
    %v2843 = vsel %vm206, %v2841, 0.0
    %2844 = vadd.xlane.f32.xlu0 %v2843
    %v2845 = vpop.xlane.xlu0 %2844
    %v2846 = vsel %vm206, %v2842, 0.0
    %2847 = vadd.xlane.f32.xlu0 %v2846
    %v2848 = vpop.xlane.xlu0 %2847
    %v2849 = vmul.f32 %v2845, %v2836
    %v2850 = vmul.f32 %v2848, %v2836
    %2852 = vset.pattern.permute.xlu0 0
    %2853 = vperm.xlu0 %2852, %v2826
    %v2854 = vpop.permute.xlu0 %2853
    %2857 = vset.pattern.permute.xlu0 0
    %2858 = vperm.xlu0 %2857, %v2827
    %v2859 = vpop.permute.xlu0 %2858
    %v2861 = vmul.f32 %v2854, %v2839
    %v2862 = vmul.f32 %v2859, %v2840
    %v2863 = vadd.f32 %v2849, 1e-05
    %v2864 = vadd.f32 %v2850, 1e-05
    %v2865 = vrsqrt.pop %v2863
    %v2866 = vrsqrt.pop %v2864
    %v2867 = vmul.f32 %v2861, %v2865
    %v2868 = vmul.f32 %v2862, %v2866
    %2870 = vset.pattern.permute.xlu0 0
    %2871 = vperm.xlu0 %2870, %v2828
    %v2872 = vpop.permute.xlu0 %2871
    %2875 = vset.pattern.permute.xlu0 0
    %2876 = vperm.xlu0 %2875, %v2829
    %v2877 = vpop.permute.xlu0 %2876
    %v2879 = vadd.f32 %v2867, %v2872
    %v2880 = vadd.f32 %v2868, %v2877
    %v2881 = vadd.f32 %v2824, %v2879
    %v2882 = vadd.f32 %v2825, %v2880
    %v2883 = vsel %vm206, %v2881, 0.0
    %2884 = vadd.xlane.f32.xlu0 %v2883
    %v2885 = vpop.xlane.xlu0 %2884
    %v2886 = vsel %vm206, %v2882, 0.0
    %2887 = vadd.xlane.f32.xlu0 %v2886
    %v2888 = vpop.xlane.xlu0 %2887
    %v2889 = vmul.f32 %v2885, %v2836
    %v2890 = vmul.f32 %v2888, %v2836
    %v2891 = vsub.f32 %v2881, %v2889
    %v2892 = vsub.f32 %v2882, %v2890
    %v2893 = vmul.f32 %v2891, %v2891
    %v2894 = vmul.f32 %v2892, %v2892
    %v2895 = vsel %vm206, %v2893, 0.0
    %2896 = vadd.xlane.f32.xlu0 %v2895
    %v2897 = vpop.xlane.xlu0 %2896
    %v2898 = vsel %vm206, %v2894, 0.0
    %2899 = vadd.xlane.f32.xlu0 %v2898
    %v2900 = vpop.xlane.xlu0 %2899
    %v2901 = vmul.f32 %v2897, %v2836
    %v2902 = vmul.f32 %v2900, %v2836
    %v2903 = vmul.f32 %v2854, %v2891
    %v2904 = vmul.f32 %v2859, %v2892
    %v2905 = vadd.f32 %v2901, 1e-05
    %v2906 = vadd.f32 %v2902, 1e-05
    %v2907 = vrsqrt.pop %v2905
    %v2908 = vrsqrt.pop %v2906
    %v2909 = vmul.f32 %v2903, %v2907
    %v2910 = vmul.f32 %v2904, %v2908
    %v2911 = vadd.f32 %v2909, %v2872
    %v2912 = vadd.f32 %v2910, %v2877
    %v2913 = vld [vmem:[%s6] sm:$0xff]
    %v2914 = vld [vmem:[%s6 + $0x8] sm:$0xff]
    %v2915 = vld [vmem:[%s6 + $0x10] sm:$0xff]
    %v2916 = vld [vmem:[%s6 + $0x18] sm:$0xff]
    %v2917 = vld [vmem:[%s6 + $0x20] sm:$0xff]
    %v2918 = vld [vmem:[%s6 + $0x28] sm:$0xff]
    %v2919 = vld [vmem:[%s6 + $0x30] sm:$0xff]
    %v2920 = vld [vmem:[%s6 + $0x38] sm:$0xff]
    %v2921 = vld [vmem:[%s7] sm:$0x1]
    %v2923 = vlaneseq
    %v2924 = vshrl.u32 %v2923, 7
    %v2925 = vsub.s32 0, %v2924
    %v2926 = vrot.slane %v2921, %v2925
    %v2929 = vsel %vm206, %v2911, 0
    %v2932 = vsel %vm206, %v2912, 0
    %2934 = vmatprep.subr.mxu0 0.0
    %2935 = vmatpush1.msra.mxu0 %v2913
    %2936 = vmatprep.subr.mxu0 0.0
    %2937 = vmatpush1.msra.mxu0 %v2914
    %2938 = vmatprep.subr.mxu0 0.0
    %2939 = vmatpush1.msra.mxu0 %v2915
    %2940 = vmatprep.subr.mxu0 0.0
    %2941 = vmatpush1.msra.mxu0 %v2916
    %2942 = vmatprep.subr.mxu0 0.0
    %2943 = vmatpush1.msra.mxu0 %v2917
    %2944 = vmatprep.subr.mxu0 0.0
    %2945 = vmatpush1.msra.mxu0 %v2918
    %2946 = vmatprep.subr.mxu0 0.0
    %2947 = vmatpush1.msra.mxu0 %v2919
    %2948 = vmatprep.subr.mxu0 0.0
    %2949 = vmatpush1.msra.mxu0 %v2920
    %2950 = vmatprep.subr.mxu0 0.0
    %2951 = vmatpush1.msra.mxu0 0.0
    %2952 = vmatprep.subr.mxu0 0.0
    %2953 = vmatpush1.msra.mxu0 0.0
    %2954 = vmatprep.subr.mxu0 0.0
    %2955 = vmatpush1.msra.mxu0 0.0
    %2956 = vmatprep.subr.mxu0 0.0
    %2957 = vmatpush1.msra.mxu0 0.0
    %2958 = vmatprep.subr.mxu0 0.0
    %2959 = vmatpush1.msra.mxu0 0.0
    %2960 = vmatprep.subr.mxu0 0.0
    %2961 = vmatpush1.msra.mxu0 0.0
    %2962 = vmatprep.subr.mxu0 0.0
    %2963 = vmatpush1.msra.mxu0 0.0
    %2964 = vmatprep.subr.mxu0 0.0
    %2965 = vmatpush1.msra.mxu0 0.0
    %2966 = vmatprep.subr.mxu0 0.0
    %2967 = vmatpush1.msra.mxu0 0.0
    %2968 = vmatprep.subr.mxu0 0.0
    %2969 = vmatpush1.msra.mxu0 0.0
    %2970 = vmatprep.subr.mxu0 0.0
    %2971 = vmatpush1.msra.mxu0 0.0
    %2972 = vmatprep.subr.mxu0 0.0
    %2973 = vmatpush1.msra.mxu0 0.0
    %2974 = vmatprep.subr.mxu0 0.0
    %2975 = vmatpush1.msra.mxu0 0.0
    %2976 = vmatprep.subr.mxu0 0.0
    %2977 = vmatpush1.msra.mxu0 0.0
    %2978 = vmatprep.subr.mxu0 0.0
    %2979 = vmatpush1.msra.mxu0 0.0
    %2980 = vmatprep.subr.mxu0 0.0
    %2981 = vmatpush1.msra.mxu0 0.0
    %2982 = vmatprep.subr.mxu0 0.0
    %2983 = vmatpush1.msra.mxu0 0.0
    %2984 = vmatprep.subr.mxu0 0.0
    %2985 = vmatpush1.msra.mxu0 0.0
    %2986 = vmatprep.subr.mxu0 0.0
    %2987 = vmatpush1.msra.mxu0 0.0
    %2988 = vmatprep.subr.mxu0 0.0
    %2989 = vmatpush1.msra.mxu0 0.0
    %2990 = vmatprep.subr.mxu0 0.0
    %2991 = vmatpush1.msra.mxu0 0.0
    %2992 = vmatprep.subr.mxu0 0.0
    %2993 = vmatpush1.msra.mxu0 0.0
    %2994 = vmatprep.subr.mxu0 0.0
    %2995 = vmatpush1.msra.mxu0 0.0
    %2996 = vmatprep.subr.mxu0 0.0
    %2997 = vmatpush1.msra.mxu0 0.0
    %2998 = vmatprep.mubr.f32.mxu0 0.0
    %2999 = vmatmul.mubr.f32.gmra.mrb[0].mxu0 %v2929
    %v3000 = vpop.f32.mrb[0].mxu0
    %v3001 = vadd.f32 %v2926, %v3000
    %v3002 = vpop.f32.mrb[0].mxu0
    %3003 = vmatprep.mubr.f32.mxu0 0.0
    %3004 = vmatmul.mubr.f32.gmra.mrb[0].mxu0 %v2932
    %v3005 = vpop.f32.mrb[0].mxu0
    %v3006 = vadd.f32 %v2926, %v3005
    %v3007 = vpop.f32.mrb[0].mxu0
    %3008 = vdwg.mxu0
    %v3009 = vadd.f32 %v3001, %v2881
    %v3010 = vadd.f32 %v3006, %v2882
    %3011 = vst.msk [vmem:[#allocation2] sm:$0xff] %vm206, %v3009
    %3012 = vst.msk [vmem:[#allocation2 + $0x8] sm:$0xff] %vm206, %v3010
    // Predicated region
    $region42: #{encoder_forward.1} parent=1 // pred_check
      _
    $region43: #{encoder_forward.1} parent=1 // pred_check_branch
      %3014 = sbr.rel (0) target = $region45
    $region44: #{encoder_forward.1} parent=1 // pred_region
      %s3016 = ssub.s32 256, 256
      %3017 = vsyncadd [#allocation3], %s3016
      %s3018 = sshll.u32 [#allocation2], 4
      %s3019 = int_to_ptr.vmem [resolvable:$true] %s3018
      %3024 = dma.vmem_to_hbm [thread:$0]  %s3019, 256, %s10, [#allocation3], 128, 128, 8
    $region45: #{encoder_forward.1} parent=1 // pred_fallthru
      _
    // Predicated region
    $region46: #{encoder_forward.1} parent=1 // pred_check
      _
    $region47: #{encoder_forward.1} parent=1 // pred_check_branch
      %3026 = sbr.rel (0) target = $region49
    $region48: #{encoder_forward.1} parent=1 // pred_region
      %3027 = dma.done [#allocation3], 256
    $region49: #{encoder_forward.1} parent=1 // pred_fallthru
      _
    %3028 = vsyncpa [#allocation3], 1

</llo_original>
